<compile_context>
chip_gen: v7x
topology: tpu7x:2x2x1
jax: 0.10.0
libtpu: 0.0.40
codegen_flags: <defaults>
</compile_context>

<pallas_src>
import functools

import numpy as np
import jax
import jax.numpy as jnp
from jax import lax
from jax.experimental import pallas as pl
from jax.experimental.pallas import tpu as pltpu

VMEM_LIMIT = 32 * 1024 * 1024  # safe on v5e/v6e (128 MiB) and v7x (64 MiB)


# ----------------------------------------------------------------------------
# tile-size helpers (respect the (8,128) block constraints; fall back to the
# full dim for tiny / non-aligned toy shapes)
# ----------------------------------------------------------------------------
def _tile_lane(dim, pref=256):
    """Tile for a last (lane) dimension: multiple of 128 or the full dim."""
    for p in (pref, 128):
        if p <= dim and dim % p == 0:
            return p
    return dim


def _tile_sub(dim, pref=256):
    """Tile for a second-to-last (sublane) dimension: multiple of 8 or full."""
    for p in (pref, 128, 64, 32, 16, 8):
        if p <= dim and dim % p == 0:
            return p
    return dim


# ----------------------------------------------------------------------------
# tiled matmul kernel:  out = [res +] act(x @ w [+ bias])
#   grid (M/tm, N/tn, K/tk), fp32 accumulator scratch, bf16 MXU inputs
# ----------------------------------------------------------------------------
def _make_matmul_kernel(has_bias, has_res, activation):
    def kernel(*refs):
        x_ref, w_ref = refs[0], refs[1]
        idx = 2
        b_ref = r_ref = None
        if has_bias:
            b_ref = refs[idx]; idx += 1
        if has_res:
            r_ref = refs[idx]; idx += 1
        o_ref, acc_ref = refs[idx], refs[idx + 1]

        k = pl.program_id(2)

        @pl.when(k == 0)
        def _():
            acc_ref[...] = jnp.zeros_like(acc_ref)

        acc_ref[...] += jnp.dot(x_ref[...], w_ref[...],
                                preferred_element_type=jnp.float32)

        @pl.when(k == pl.num_programs(2) - 1)
        def _():
            y = acc_ref[...]
            if has_bias:
                y = y + b_ref[...].astype(jnp.float32)
            if activation == "gelu":
                y = jax.nn.gelu(y, approximate=True)
            if has_res:
                y = y + r_ref[...].astype(jnp.float32)
            o_ref[...] = y.astype(o_ref.dtype)

    return kernel


def matmul(x, w, *, bias=None, residual=None, activation=None,
           out_dtype=jnp.bfloat16, tm_pref=256, tn_pref=256, tk_pref=512):
    M, K = x.shape
    N = w.shape[1]
    tm = _tile_sub(M, tm_pref)
    tn = _tile_lane(N, tn_pref)
    tk = _tile_lane(K, tk_pref)

    in_specs = [pl.BlockSpec((tm, tk), lambda i, j, k: (i, k)),
                pl.BlockSpec((tk, tn), lambda i, j, k: (k, j))]
    args = [x, w]
    if bias is not None:
        in_specs.append(pl.BlockSpec((1, tn), lambda i, j, k: (0, j)))
        args.append(bias)
    if residual is not None:
        in_specs.append(pl.BlockSpec((tm, tn), lambda i, j, k: (i, j)))
        args.append(residual)

    kernel = _make_matmul_kernel(bias is not None, residual is not None,
                                 activation)
    return pl.pallas_call(
        kernel,
        out_shape=jax.ShapeDtypeStruct((M, N), out_dtype),
        grid=(M // tm, N // tn, K // tk),
        in_specs=in_specs,
        out_specs=pl.BlockSpec((tm, tn), lambda i, j, k: (i, j)),
        scratch_shapes=[pltpu.VMEM((tm, tn), jnp.float32)],
        compiler_params=pltpu.CompilerParams(
            dimension_semantics=("parallel", "parallel", "arbitrary"),
            vmem_limit_bytes=VMEM_LIMIT),
    )(*args)


# ----------------------------------------------------------------------------
# LayerNorm fused into the consumer matmul:  out = act(LN(x) @ w [+ bias])
#   grid (M/tm, N/tn) with full K resident (needed for the LN statistics)
# ----------------------------------------------------------------------------
def _make_ln_matmul_kernel(has_bias, activation):
    def kernel(*refs):
        x_ref, g_ref, bln_ref, w_ref = refs[:4]
        idx = 4
        b_ref = None
        if has_bias:
            b_ref = refs[idx]; idx += 1
        o_ref = refs[idx]

        x = x_ref[...].astype(jnp.float32)
        mu = jnp.mean(x, axis=-1, keepdims=True)
        var = jnp.mean(jnp.square(x - mu), axis=-1, keepdims=True)
        xn = (x - mu) * lax.rsqrt(var + 1e-5)
        xn = xn * g_ref[...].astype(jnp.float32) + bln_ref[...].astype(jnp.float32)

        y = jnp.dot(xn.astype(w_ref.dtype), w_ref[...],
                    preferred_element_type=jnp.float32)
        if has_bias:
            y = y + b_ref[...].astype(jnp.float32)
        if activation == "gelu":
            y = jax.nn.gelu(y, approximate=True)
        o_ref[...] = y.astype(o_ref.dtype)

    return kernel


def ln_matmul(x, g, b, w, *, bias=None, activation=None,
              out_dtype=jnp.bfloat16, tm_pref=256, tn_pref=256):
    M, K = x.shape
    N = w.shape[1]
    tm = _tile_sub(M, tm_pref)
    tn = _tile_lane(N, tn_pref)

    in_specs = [pl.BlockSpec((tm, K), lambda i, j: (i, 0)),
                pl.BlockSpec((1, K), lambda i, j: (0, 0)),
                pl.BlockSpec((1, K), lambda i, j: (0, 0)),
                pl.BlockSpec((K, tn), lambda i, j: (0, j))]
    args = [x, g, b, w]
    if bias is not None:
        in_specs.append(pl.BlockSpec((1, tn), lambda i, j: (0, j)))
        args.append(bias)

    kernel = _make_ln_matmul_kernel(bias is not None, activation)
    return pl.pallas_call(
        kernel,
        out_shape=jax.ShapeDtypeStruct((M, N), out_dtype),
        grid=(M // tm, N // tn),
        in_specs=in_specs,
        out_specs=pl.BlockSpec((tm, tn), lambda i, j: (i, j)),
        compiler_params=pltpu.CompilerParams(
            dimension_semantics=("parallel", "parallel"),
            vmem_limit_bytes=VMEM_LIMIT),
    )(*args)


# ----------------------------------------------------------------------------
# flash-style causal attention: q,k,v [B*H, T, Dh] -> o [B*H, T, Dh]
# ----------------------------------------------------------------------------
def _make_flash_kernel(scale, tq, tkv):
    def kernel(q_ref, k_ref, v_ref, o_ref, m_ref, l_ref, acc_ref):
        qi = pl.program_id(1)
        ki = pl.program_id(2)

        @pl.when(ki == 0)
        def _():
            m_ref[...] = jnp.full_like(m_ref, -jnp.inf)
            l_ref[...] = jnp.zeros_like(l_ref)
            acc_ref[...] = jnp.zeros_like(acc_ref)

        # skip kv blocks that lie entirely above the causal diagonal
        @pl.when(ki * tkv <= qi * tq + tq - 1)
        def _():
            q = q_ref[0]                                  # (tq, Dh) bf16
            k = k_ref[0]                                  # (tkv, Dh) bf16
            v = v_ref[0]                                  # (tkv, Dh) bf16
            s = lax.dot_general(q, k, (((1,), (1,)), ((), ())),
                                preferred_element_type=jnp.float32) * scale
            row = qi * tq + lax.broadcasted_iota(jnp.int32, s.shape, 0)
            col = ki * tkv + lax.broadcasted_iota(jnp.int32, s.shape, 1)
            s = jnp.where(col <= row, s, jnp.float32(-1e30))

            m_prev = m_ref[...]
            m_new = jnp.maximum(m_prev, jnp.max(s, axis=-1, keepdims=True))
            alpha = jnp.exp(m_prev - m_new)
            p = jnp.exp(s - m_new)
            l_ref[...] = l_ref[...] * alpha + jnp.sum(p, axis=-1, keepdims=True)
            acc_ref[...] = acc_ref[...] * alpha + lax.dot_general(
                p.astype(v.dtype), v, (((1,), (0,)), ((), ())),
                preferred_element_type=jnp.float32)
            m_ref[...] = m_new

        @pl.when(ki == pl.num_programs(2) - 1)
        def _():
            inv = pl.reciprocal(l_ref[...], approx=True)
            o_ref[0] = (acc_ref[...] * inv).astype(o_ref.dtype)

    return kernel


def flash_attention(q, k, v):
    BH, T, Dh = q.shape
    tq = _tile_sub(T, 128)
    tkv = _tile_sub(T, 128)
    scale = float(Dh) ** -0.5
    kernel = _make_flash_kernel(scale, tq, tkv)
    return pl.pallas_call(
        kernel,
        out_shape=jax.ShapeDtypeStruct((BH, T, Dh), q.dtype),
        grid=(BH, T // tq, T // tkv),
        in_specs=[pl.BlockSpec((1, tq, Dh), lambda b, qi, ki: (b, qi, 0)),
                  pl.BlockSpec((1, tkv, Dh), lambda b, qi, ki: (b, ki, 0)),
                  pl.BlockSpec((1, tkv, Dh), lambda b, qi, ki: (b, ki, 0))],
        out_specs=pl.BlockSpec((1, tq, Dh), lambda b, qi, ki: (b, qi, 0)),
        scratch_shapes=[pltpu.VMEM((tq, 1), jnp.float32),
                        pltpu.VMEM((tq, 1), jnp.float32),
                        pltpu.VMEM((tq, Dh), jnp.float32)],
        compiler_params=pltpu.CompilerParams(
            dimension_semantics=("parallel", "parallel", "arbitrary"),
            vmem_limit_bytes=VMEM_LIMIT),
    )(q, k, v)


# ----------------------------------------------------------------------------
# per-token cross entropy, streamed over vocab tiles (online logsumexp)
# ----------------------------------------------------------------------------
def _make_ce_kernel(tv):
    def kernel(logits_ref, tgt_ref, loss_ref, m_ref, s_ref, p_ref):
        j = pl.program_id(1)

        @pl.when(j == 0)
        def _():
            m_ref[...] = jnp.full_like(m_ref, -jnp.inf)
            s_ref[...] = jnp.zeros_like(s_ref)
            p_ref[...] = jnp.zeros_like(p_ref)

        lg = logits_ref[...].astype(jnp.float32)            # (tm, tv)
        tgt = tgt_ref[...]                                   # (tm, 1) int32
        col = j * tv + lax.broadcasted_iota(jnp.int32, lg.shape, 1)

        m_prev = m_ref[...]
        m_new = jnp.maximum(m_prev, jnp.max(lg, axis=-1, keepdims=True))
        s_ref[...] = s_ref[...] * jnp.exp(m_prev - m_new) + jnp.sum(
            jnp.exp(lg - m_new), axis=-1, keepdims=True)
        m_ref[...] = m_new
        p_ref[...] = p_ref[...] + jnp.sum(
            jnp.where(col == tgt, lg, 0.0), axis=-1, keepdims=True)

        @pl.when(j == pl.num_programs(1) - 1)
        def _():
            loss_ref[...] = m_ref[...] + jnp.log(s_ref[...]) - p_ref[...]

    return kernel


def cross_entropy_per_token(logits, targets):
    M, V = logits.shape
    tm = _tile_sub(M, 256)
    tv = _tile_lane(V, 512)
    tgt = targets.reshape(M, 1).astype(jnp.int32)
    kernel = _make_ce_kernel(tv)
    return pl.pallas_call(
        kernel,
        out_shape=jax.ShapeDtypeStruct((M, 1), jnp.float32),
        grid=(M // tm, V // tv),
        in_specs=[pl.BlockSpec((tm, tv), lambda i, j: (i, j)),
                  pl.BlockSpec((tm, 1), lambda i, j: (i, 0))],
        out_specs=pl.BlockSpec((tm, 1), lambda i, j: (i, 0)),
        scratch_shapes=[pltpu.VMEM((tm, 1), jnp.float32),
                        pltpu.VMEM((tm, 1), jnp.float32),
                        pltpu.VMEM((tm, 1), jnp.float32)],
        compiler_params=pltpu.CompilerParams(
            dimension_semantics=("parallel", "arbitrary"),
            vmem_limit_bytes=VMEM_LIMIT),
    )(logits, tgt)


# ----------------------------------------------------------------------------
# parameter construction (deterministic, matching ImageGPT.__init__ shapes)
# weights are stored bf16 (MXU inputs); LN params / biases stay fp32.
# ----------------------------------------------------------------------------
def init_params(key, shape, in_features, embd_dim, proj_dim, n_head, n_layer,
                n_vocab, ff_mult):
    T = int(np.prod(shape))
    ks = jax.random.split(key, 3 + 12 * n_layer)
    it = iter(ks)

    def nrm(shp, std=0.02, dtype=jnp.bfloat16):
        return (std * jax.random.normal(next(it), shp, jnp.float32)).astype(dtype)

    p = {
        # fc_in: Linear(in_features, embd_dim, bias=False), weight ~ N(0, 0.02)
        "w_in_t": nrm((in_features, embd_dim)),
        "sos": nrm((embd_dim,), dtype=jnp.float32),
        "pos_emb": nrm((T, embd_dim), dtype=jnp.float32),
        # fc_out: Linear(embd_dim, n_vocab, bias=False), weight = zeros
        "w_out_t": jnp.zeros((embd_dim, n_vocab), jnp.bfloat16),
        "ln_f_g": jnp.ones((1, embd_dim), jnp.float32),
        "ln_f_b": jnp.zeros((1, embd_dim), jnp.float32),
        "layers": [],
    }
    ff_dim = ff_mult * embd_dim
    P = proj_dim
    for _ in range(n_layer):
        wq, wk, wv = nrm((embd_dim, P)), nrm((embd_dim, P)), nrm((embd_dim, P))
        bq = nrm((1, P), dtype=jnp.float32)
        bk = nrm((1, P), dtype=jnp.float32)
        bv = nrm((1, P), dtype=jnp.float32)
        lp = {
            "ln1_g": jnp.ones((1, embd_dim), jnp.float32),
            "ln1_b": jnp.zeros((1, embd_dim), jnp.float32),
            "w_qkv_t": jnp.concatenate([wq, wk, wv], axis=1),   # [D, 3P]
            "b_qkv": jnp.concatenate([bq, bk, bv], axis=1),     # [1, 3P]
            "wo_t": nrm((P, embd_dim)), "bo": nrm((1, embd_dim), dtype=jnp.float32),
            "ln2_g": jnp.ones((1, embd_dim), jnp.float32),
            "ln2_b": jnp.zeros((1, embd_dim), jnp.float32),
            "w1_t": nrm((embd_dim, ff_dim)), "b1": nrm((1, ff_dim), dtype=jnp.float32),
            "w2_t": nrm((ff_dim, embd_dim)), "b2": nrm((1, embd_dim), dtype=jnp.float32),
        }
        p["layers"].append(lp)
    return p


# ----------------------------------------------------------------------------
# forward pass (ImageGPT.forward in training mode: decode_step=None)
# ----------------------------------------------------------------------------
@functools.partial(jax.jit, static_argnames=("shape", "n_head"))
def imagegpt_forward(quantized, encodings, params, *, shape, n_head):
    B = quantized.shape[0]
    T = int(np.prod(shape))
    Cin = quantized.shape[-1]
    D = params["w_in_t"].shape[1]
    P = params["layers"][0]["wo_t"].shape[0]
    H = n_head
    Dh = P // H
    V = params["w_out_t"].shape[1]
    M = B * T

    x = quantized.reshape(M, Cin).astype(jnp.bfloat16)

    # fc_in (bias-free)
    h = matmul(x, params["w_in_t"]).reshape(B, T, D)

    # right shift (autoregressive) + learned position embedding
    sos = jnp.broadcast_to(params["sos"].astype(jnp.bfloat16).reshape(1, 1, D),
                           (B, 1, D))
    h = jnp.concatenate([sos, h[:, :-1, :]], axis=1)
    h = (h + params["pos_emb"][None].astype(jnp.bfloat16)).astype(jnp.bfloat16)
    h = h.reshape(M, D)

    for lp in params["layers"]:
        # --- causal multi-head self attention (pre-LN, fused LN+QKV) ---
        qkv = ln_matmul(h, lp["ln1_g"], lp["ln1_b"], lp["w_qkv_t"],
                        bias=lp["b_qkv"])                       # [M, 3P]
        qkv = jnp.transpose(qkv.reshape(B, T, 3, H, Dh), (2, 0, 3, 1, 4))
        q = qkv[0].reshape(B * H, T, Dh)
        kk = qkv[1].reshape(B * H, T, Dh)
        vv = qkv[2].reshape(B * H, T, Dh)
        a = flash_attention(q, kk, vv)                          # [B*H, T, Dh]
        a = a.reshape(B, H, T, Dh).transpose(0, 2, 1, 3).reshape(M, P)
        # out projection with fused bias + residual add
        h = matmul(a, lp["wo_t"], bias=lp["bo"], residual=h)

        # --- MLP (pre-LN, GELU), LN fused into w1, residual fused into w2 ---
        f = ln_matmul(h, lp["ln2_g"], lp["ln2_b"], lp["w1_t"],
                      bias=lp["b1"], activation="gelu")
        h = matmul(f, lp["w2_t"], bias=lp["b2"], residual=h)

    # final (unconditional) LayerNorm fused into fc_out (bias-free)
    logits = ln_matmul(h, params["ln_f_g"], params["ln_f_b"], params["w_out_t"],
                       out_dtype=jnp.float32)                   # [M, V]

    # CrossEntropyLoss(shift_dim(logits, -1, 1), encodings) == mean over tokens
    tok_loss = cross_entropy_per_token(logits, encodings.reshape(M))
    loss = jnp.mean(tok_loss)

    gen_logits = logits.reshape((B,) + tuple(shape) + (V,))
    return {"gen_logits": gen_logits, "loss": loss}


# ----------------------------------------------------------------------------
# main
# ----------------------------------------------------------------------------
if __name__ == "__main__":
    # ImageGPT config (small): shape=(4,4), in_features=16, out_features=32,
    # proj_dim=32, n_head=2, n_layer=2, n_vocab=64, ff_mult=2, no conditioning.
    shape = (4, 4)
    in_features = 16
    embd_dim = 32
    proj_dim = 32
    n_head = 2
    n_layer = 2
    n_vocab = 64
    ff_mult = 2
    B = 2

    key = jax.random.PRNGKey(0)
    kp, kq, ke = jax.random.split(key, 3)

    params = init_params(kp, shape, in_features, embd_dim, proj_dim, n_head,
                         n_layer, n_vocab, ff_mult)

    quantized = jax.random.normal(kq, (B,) + shape + (in_features,), jnp.float32)
    encodings = jax.random.randint(ke, (B,) + shape, 0, n_vocab, jnp.int32)

    out = imagegpt_forward(quantized, encodings, params, shape=shape,
                           n_head=n_head)
    out = jax.block_until_ready(out)

    # sanity: fc_out is zero-initialized (as in the torch module), so the
    # generative logits are exactly zero and loss == log(n_vocab)
    assert out["gen_logits"].shape == (B,) + shape + (n_vocab,)
    assert np.isfinite(float(out["loss"]))
    assert np.isclose(float(out["loss"]), float(np.log(n_vocab)), atol=1e-4), \
        out["loss"]

    print("KERNEL_OK")
</pallas_src>

<mosaic_0001>
module attributes {stable_mosaic.version = 11 : i64} {
  func.func @kernel(%arg0: i32, %arg1: i32, %arg2: i32, %arg3: memref<32x16xbf16, #tpu.memory_space<vmem>>, %arg4: memref<16x32xbf16, #tpu.memory_space<vmem>>, %arg5: memref<32x32xbf16, #tpu.memory_space<vmem>>, %arg6: memref<32x32xf32, #tpu.memory_space<vmem>>) attributes {dimension_semantics = [#tpu.dimension_semantics<parallel>, #tpu.dimension_semantics<parallel>, #tpu.dimension_semantics<arbitrary>], iteration_bounds = array<i64: 1, 1, 1>, scalar_prefetch = 0 : i64, scratch_operands = 1 : i64, tpu.core_type = #tpu.core_type<tc>, window_params = [{transform_indices = @transform_0, window_bounds = array<i64: 32, 16>}, {transform_indices = @transform_1, window_bounds = array<i64: 16, 32>}, {transform_indices = @transform_2, window_bounds = array<i64: 32, 32>}]} {
    %c0_i32 = arith.constant 0 : i32
    %0 = arith.cmpi eq, %arg2, %c0_i32 : i32
    %1 = arith.extui %0 : i1 to i32
    %c0_i32_0 = arith.constant 0 : i32
    %2 = arith.cmpi ne, %1, %c0_i32_0 : i32
    scf.if %2 {
      %cst_10 = arith.constant 0.000000e+00 : f32
      %12 = vector.broadcast %cst_10 : f32 to vector<32x32xf32>
      %c0_11 = arith.constant 0 : index
      %c0_12 = arith.constant 0 : index
      %13 = vector.load %arg6[%c0_11, %c0_12] : memref<32x32xf32, #tpu.memory_space<vmem>>, vector<32x32xf32>
      tpu.vector_store %arg6[%c0_11, %c0_12], %12 {strides = array<i32>} : memref<32x32xf32, #tpu.memory_space<vmem>>, vector<32x32xf32>,
    } else {
    }
    %c0 = arith.constant 0 : index
    %c0_1 = arith.constant 0 : index
    %3 = vector.load %arg6[%c0, %c0_1] : memref<32x32xf32, #tpu.memory_space<vmem>>, vector<32x32xf32>
    %c0_2 = arith.constant 0 : index
    %c0_3 = arith.constant 0 : index
    %4 = vector.load %arg3[%c0_2, %c0_3] : memref<32x16xbf16, #tpu.memory_space<vmem>>, vector<32x16xbf16>
    %c0_4 = arith.constant 0 : index
    %c0_5 = arith.constant 0 : index
    %5 = vector.load %arg4[%c0_4, %c0_5] : memref<16x32xbf16, #tpu.memory_space<vmem>>, vector<16x32xbf16>
    %cst = arith.constant dense<0.000000e+00> : vector<32x32xf32>
    %6 = tpu.matmul %4, %5, %cst {dimension_numbers = #tpu.dot_dimension_numbers<[1], [0], [0], [1], [0, 0, 1, 1], [], []>} : vector<32x16xbf16>, vector<16x32xbf16>, vector<32x32xf32> -> vector<32x32xf32>
    %7 = arith.addf %3, %6 : vector<32x32xf32>
    %c0_6 = arith.constant 0 : index
    %c0_7 = arith.constant 0 : index
    %8 = vector.load %arg6[%c0_6, %c0_7] : memref<32x32xf32, #tpu.memory_space<vmem>>, vector<32x32xf32>
    tpu.vector_store %arg6[%c0_6, %c0_7], %7 {strides = array<i32>} : memref<32x32xf32, #tpu.memory_space<vmem>>, vector<32x32xf32>,
    %c0_i32_8 = arith.constant 0 : i32
    %9 = arith.cmpi eq, %arg2, %c0_i32_8 : i32
    %10 = arith.extui %9 : i1 to i32
    %c0_i32_9 = arith.constant 0 : i32
    %11 = arith.cmpi ne, %10, %c0_i32_9 : i32
    scf.if %11 {
      %c0_10 = arith.constant 0 : index
      %c0_11 = arith.constant 0 : index
      %12 = vector.load %arg6[%c0_10, %c0_11] : memref<32x32xf32, #tpu.memory_space<vmem>>, vector<32x32xf32>
      %13 = arith.truncf %12 : vector<32x32xf32> to vector<32x32xbf16>
      %c0_12 = arith.constant 0 : index
      %c0_13 = arith.constant 0 : index
      %14 = vector.load %arg5[%c0_12, %c0_13] : memref<32x32xbf16, #tpu.memory_space<vmem>>, vector<32x32xbf16>
      tpu.vector_store %arg5[%c0_12, %c0_13], %13 {strides = array<i32>} : memref<32x32xbf16, #tpu.memory_space<vmem>>, vector<32x32xbf16>,
    } else {
    }
    return
  }
  func.func @transform_0(%arg0: i32, %arg1: i32, %arg2: i32) -> (i32, i32) {
    %c0_i32 = arith.constant 0 : i32
    return %arg0, %arg2 : i32, i32
  }
  func.func @transform_1(%arg0: i32, %arg1: i32, %arg2: i32) -> (i32, i32) {
    %c0_i32 = arith.constant 0 : i32
    return %arg2, %arg1 : i32, i32
  }
  func.func @transform_2(%arg0: i32, %arg1: i32, %arg2: i32) -> (i32, i32) {
    %c0_i32 = arith.constant 0 : i32
    return %arg0, %arg1 : i32, i32
  }
}

module attributes {stable_mosaic.version = 11 : i64} {
  func.func @kernel(%arg0: i32, %arg1: i32, %arg2: memref<32x32xbf16, #tpu.memory_space<vmem>>, %arg3: memref<1x32xf32, #tpu.memory_space<vmem>>, %arg4: memref<1x32xf32, #tpu.memory_space<vmem>>, %arg5: memref<32x96xbf16, #tpu.memory_space<vmem>>, %arg6: memref<1x96xf32, #tpu.memory_space<vmem>>, %arg7: memref<32x96xbf16, #tpu.memory_space<vmem>>) attributes {dimension_semantics = [#tpu.dimension_semantics<parallel>, #tpu.dimension_semantics<parallel>], iteration_bounds = array<i64: 1, 1>, scalar_prefetch = 0 : i64, scratch_operands = 0 : i64, tpu.core_type = #tpu.core_type<tc>, window_params = [{transform_indices = @transform_0, window_bounds = array<i64: 32, 32>}, {pipeline_mode = #tpu.pipeline_mode<synchronous>, transform_indices = @transform_1, window_bounds = array<i64: 1, 32>}, {pipeline_mode = #tpu.pipeline_mode<synchronous>, transform_indices = @transform_2, window_bounds = array<i64: 1, 32>}, {transform_indices = @transform_3, window_bounds = array<i64: 32, 96>}, {transform_indices = @transform_4, window_bounds = array<i64: 1, 96>}, {transform_indices = @transform_5, window_bounds = array<i64: 32, 96>}]} {
    %c0 = arith.constant 0 : index
    %c0_0 = arith.constant 0 : index
    %0 = vector.load %arg2[%c0, %c0_0] : memref<32x32xbf16, #tpu.memory_space<vmem>>, vector<32x32xbf16>
    %1 = arith.extf %0 : vector<32x32xbf16> to vector<32x32xf32>
    %cst = arith.constant dense<0.000000e+00> : vector<32xf32>
    %2 = vector.multi_reduction <add>, %1, %cst [1] : vector<32x32xf32> to vector<32xf32>
    %3 = vector.shape_cast %2 : vector<32xf32> to vector<32x1xf32>
    %cst_1 = arith.constant 3.200000e+01 : f32
    %4 = vector.broadcast %cst_1 : f32 to vector<32x1xf32>
    %5 = arith.divf %3, %4 : vector<32x1xf32>
    %6 = vector.broadcast %5 : vector<32x1xf32> to vector<32x32xf32>
    %7 = arith.subf %1, %6 : vector<32x32xf32>
    %8 = arith.mulf %7, %7 : vector<32x32xf32>
    %cst_2 = arith.constant dense<0.000000e+00> : vector<32xf32>
    %9 = vector.multi_reduction <add>, %8, %cst_2 [1] : vector<32x32xf32> to vector<32xf32>
    %10 = vector.shape_cast %9 : vector<32xf32> to vector<32x1xf32>
    %cst_3 = arith.constant 3.200000e+01 : f32
    %11 = vector.broadcast %cst_3 : f32 to vector<32x1xf32>
    %12 = arith.divf %10, %11 : vector<32x1xf32>
    %13 = vector.broadcast %5 : vector<32x1xf32> to vector<32x32xf32>
    %14 = arith.subf %1, %13 : vector<32x32xf32>
    %cst_4 = arith.constant 9.99999974E-6 : f32
    %15 = vector.broadcast %cst_4 : f32 to vector<32x1xf32>
    %16 = arith.addf %12, %15 : vector<32x1xf32>
    %17 = math.rsqrt %16 : vector<32x1xf32>
    %18 = vector.broadcast %17 : vector<32x1xf32> to vector<32x32xf32>
    %19 = arith.mulf %14, %18 : vector<32x32xf32>
    %c0_5 = arith.constant 0 : index
    %c0_6 = arith.constant 0 : index
    %20 = vector.load %arg3[%c0_5, %c0_6] : memref<1x32xf32, #tpu.memory_space<vmem>>, vector<1x32xf32>
    %21 = vector.broadcast %20 : vector<1x32xf32> to vector<32x32xf32>
    %22 = arith.mulf %19, %21 : vector<32x32xf32>
    %c0_7 = arith.constant 0 : index
    %c0_8 = arith.constant 0 : index
    %23 = vector.load %arg4[%c0_7, %c0_8] : memref<1x32xf32, #tpu.memory_space<vmem>>, vector<1x32xf32>
    %24 = vector.broadcast %23 : vector<1x32xf32> to vector<32x32xf32>
    %25 = arith.addf %22, %24 : vector<32x32xf32>
    %26 = arith.truncf %25 : vector<32x32xf32> to vector<32x32xbf16>
    %c0_9 = arith.constant 0 : index
    %c0_10 = arith.constant 0 : index
    %27 = vector.load %arg5[%c0_9, %c0_10] : memref<32x96xbf16, #tpu.memory_space<vmem>>, vector<32x96xbf16>
    %cst_11 = arith.constant dense<0.000000e+00> : vector<32x96xf32>
    %28 = tpu.matmul %26, %27, %cst_11 {dimension_numbers = #tpu.dot_dimension_numbers<[1], [0], [0], [1], [0, 0, 1, 1], [], []>} : vector<32x32xbf16>, vector<32x96xbf16>, vector<32x96xf32> -> vector<32x96xf32>
    %c0_12 = arith.constant 0 : index
    %c0_13 = arith.constant 0 : index
    %29 = vector.load %arg6[%c0_12, %c0_13] : memref<1x96xf32, #tpu.memory_space<vmem>>, vector<1x96xf32>
    %30 = vector.broadcast %29 : vector<1x96xf32> to vector<32x96xf32>
    %31 = arith.addf %28, %30 : vector<32x96xf32>
    %32 = arith.truncf %31 : vector<32x96xf32> to vector<32x96xbf16>
    %c0_14 = arith.constant 0 : index
    %c0_15 = arith.constant 0 : index
    %33 = vector.load %arg7[%c0_14, %c0_15] : memref<32x96xbf16, #tpu.memory_space<vmem>>, vector<32x96xbf16>
    tpu.vector_store %arg7[%c0_14, %c0_15], %32 {strides = array<i32>} : memref<32x96xbf16, #tpu.memory_space<vmem>>, vector<32x96xbf16>,
    return
  }
  func.func @transform_0(%arg0: i32, %arg1: i32) -> (i32, i32) {
    %c0_i32 = arith.constant 0 : i32
    %c0_i32_0 = arith.constant 0 : i32
    return %arg0, %c0_i32 : i32, i32
  }
  func.func @transform_1(%arg0: i32, %arg1: i32) -> (i32, i32) {
    %c0_i32 = arith.constant 0 : i32
    %c0_i32_0 = arith.constant 0 : i32
    %c0_i32_1 = arith.constant 0 : i32
    return %c0_i32, %c0_i32_0 : i32, i32
  }
  func.func @transform_2(%arg0: i32, %arg1: i32) -> (i32, i32) {
    %c0_i32 = arith.constant 0 : i32
    %c0_i32_0 = arith.constant 0 : i32
    %c0_i32_1 = arith.constant 0 : i32
    return %c0_i32, %c0_i32_0 : i32, i32
  }
  func.func @transform_3(%arg0: i32, %arg1: i32) -> (i32, i32) {
    %c0_i32 = arith.constant 0 : i32
    %c0_i32_0 = arith.constant 0 : i32
    return %c0_i32, %arg1 : i32, i32
  }
  func.func @transform_4(%arg0: i32, %arg1: i32) -> (i32, i32) {
    %c0_i32 = arith.constant 0 : i32
    %c0_i32_0 = arith.constant 0 : i32
    return %c0_i32, %arg1 : i32, i32
  }
  func.func @transform_5(%arg0: i32, %arg1: i32) -> (i32, i32) {
    %c0_i32 = arith.constant 0 : i32
    return %arg0, %arg1 : i32, i32
  }
}

module attributes {stable_mosaic.version = 11 : i64} {
  func.func @kernel(%arg0: i32, %arg1: i32, %arg2: i32, %arg3: memref<1x16x16xbf16, #tpu.memory_space<vmem>>, %arg4: memref<1x16x16xbf16, #tpu.memory_space<vmem>>, %arg5: memref<1x16x16xbf16, #tpu.memory_space<vmem>>, %arg6: memref<1x16x16xbf16, #tpu.memory_space<vmem>>, %arg7: memref<16x1xf32, #tpu.memory_space<vmem>>, %arg8: memref<16x1xf32, #tpu.memory_space<vmem>>, %arg9: memref<16x16xf32, #tpu.memory_space<vmem>>) attributes {dimension_semantics = [#tpu.dimension_semantics<parallel>, #tpu.dimension_semantics<parallel>, #tpu.dimension_semantics<arbitrary>], iteration_bounds = array<i64: 4, 1, 1>, scalar_prefetch = 0 : i64, scratch_operands = 3 : i64, tpu.core_type = #tpu.core_type<tc>, window_params = [{transform_indices = @transform_0, window_bounds = array<i64: 1, 16, 16>}, {transform_indices = @transform_1, window_bounds = array<i64: 1, 16, 16>}, {transform_indices = @transform_2, window_bounds = array<i64: 1, 16, 16>}, {transform_indices = @transform_3, window_bounds = array<i64: 1, 16, 16>}]} {
    %c0_i32 = arith.constant 0 : i32
    %0 = arith.cmpi eq, %arg2, %c0_i32 : i32
    %1 = arith.extui %0 : i1 to i32
    %c0_i32_0 = arith.constant 0 : i32
    %2 = arith.cmpi ne, %1, %c0_i32_0 : i32
    scf.if %2 {
      %cst = arith.constant 0xFF800000 : f32
      %13 = vector.broadcast %cst : f32 to vector<16x1xf32>
      %c0 = arith.constant 0 : index
      %c0_6 = arith.constant 0 : index
      %14 = vector.load %arg7[%c0, %c0_6] : memref<16x1xf32, #tpu.memory_space<vmem>>, vector<16x1xf32>
      tpu.vector_store %arg7[%c0, %c0_6], %13 {strides = array<i32>} : memref<16x1xf32, #tpu.memory_space<vmem>>, vector<16x1xf32>,
      %cst_7 = arith.constant 0.000000e+00 : f32
      %15 = vector.broadcast %cst_7 : f32 to vector<16x1xf32>
      %c0_8 = arith.constant 0 : index
      %c0_9 = arith.constant 0 : index
      %16 = vector.load %arg8[%c0_8, %c0_9] : memref<16x1xf32, #tpu.memory_space<vmem>>, vector<16x1xf32>
      tpu.vector_store %arg8[%c0_8, %c0_9], %15 {strides = array<i32>} : memref<16x1xf32, #tpu.memory_space<vmem>>, vector<16x1xf32>,
      %cst_10 = arith.constant 0.000000e+00 : f32
      %17 = vector.broadcast %cst_10 : f32 to vector<16x16xf32>
      %c0_11 = arith.constant 0 : index
      %c0_12 = arith.constant 0 : index
      %18 = vector.load %arg9[%c0_11, %c0_12] : memref<16x16xf32, #tpu.memory_space<vmem>>, vector<16x16xf32>
      tpu.vector_store %arg9[%c0_11, %c0_12], %17 {strides = array<i32>} : memref<16x16xf32, #tpu.memory_space<vmem>>, vector<16x16xf32>,
    } else {
    }
    %c16_i32 = arith.constant 16 : i32
    %3 = arith.muli %arg2, %c16_i32 : i32
    %c16_i32_1 = arith.constant 16 : i32
    %4 = arith.muli %arg1, %c16_i32_1 : i32
    %c16_i32_2 = arith.constant 16 : i32
    %5 = arith.addi %4, %c16_i32_2 : i32
    %c1_i32 = arith.constant 1 : i32
    %6 = arith.subi %5, %c1_i32 : i32
    %7 = arith.cmpi sle, %3, %6 : i32
    %8 = arith.extui %7 : i1 to i32
    %c0_i32_3 = arith.constant 0 : i32
    %9 = arith.cmpi ne, %8, %c0_i32_3 : i32
    scf.if %9 {
      %c0 = arith.constant 0 : index
      %c0_6 = arith.constant 0 : index
      %c0_7 = arith.constant 0 : index
      %13 = vector.load %arg3[%c0, %c0_6, %c0_7] : memref<1x16x16xbf16, #tpu.memory_space<vmem>>, vector<1x16x16xbf16>
      %14 = vector.shape_cast %13 : vector<1x16x16xbf16> to vector<16x16xbf16>
      %c0_8 = arith.constant 0 : index
      %c0_9 = arith.constant 0 : index
      %c0_10 = arith.constant 0 : index
      %15 = vector.load %arg4[%c0_8, %c0_9, %c0_10] : memref<1x16x16xbf16, #tpu.memory_space<vmem>>, vector<1x16x16xbf16>
      %16 = vector.shape_cast %15 : vector<1x16x16xbf16> to vector<16x16xbf16>
      %c0_11 = arith.constant 0 : index
      %c0_12 = arith.constant 0 : index
      %c0_13 = arith.constant 0 : index
      %17 = vector.load %arg5[%c0_11, %c0_12, %c0_13] : memref<1x16x16xbf16, #tpu.memory_space<vmem>>, vector<1x16x16xbf16>
      %18 = vector.shape_cast %17 : vector<1x16x16xbf16> to vector<16x16xbf16>
      %cst = arith.constant dense<0.000000e+00> : vector<16x16xf32>
      %19 = tpu.matmul %14, %16, %cst {dimension_numbers = #tpu.dot_dimension_numbers<[1], [1], [0], [0], [0, 0, 1, 0], [], []>} : vector<16x16xbf16>, vector<16x16xbf16>, vector<16x16xf32> -> vector<16x16xf32>
      %cst_14 = arith.constant 2.500000e-01 : f32
      %20 = vector.broadcast %cst_14 : f32 to vector<16x16xf32>
      %21 = arith.mulf %19, %20 : vector<16x16xf32>
      %c16_i32_15 = arith.constant 16 : i32
      %22 = arith.muli %arg1, %c16_i32_15 : i32
      %23 = tpu.iota {dimensions = array<i32: 0>} : vector<16x16xi32>
      %24 = vector.broadcast %22 : i32 to vector<16x16xi32>
      %25 = arith.addi %24, %23 : vector<16x16xi32>
      %c16_i32_16 = arith.constant 16 : i32
      %26 = arith.muli %arg2, %c16_i32_16 : i32
      %27 = tpu.iota {dimensions = array<i32: 1>} : vector<16x16xi32>
      %28 = vector.broadcast %26 : i32 to vector<16x16xi32>
      %29 = arith.addi %28, %27 : vector<16x16xi32>
      %30 = arith.cmpi sle, %29, %25 : vector<16x16xi32>
      %cst_17 = arith.constant -1.000000e+30 : f32
      %31 = vector.broadcast %cst_17 : f32 to vector<16x16xf32>
      %32 = arith.select %30, %21, %31 : vector<16x16xi1>, vector<16x16xf32>
      %c0_18 = arith.constant 0 : index
      %c0_19 = arith.constant 0 : index
      %33 = vector.load %arg7[%c0_18, %c0_19] : memref<16x1xf32, #tpu.memory_space<vmem>>, vector<16x1xf32>
      %cst_20 = arith.constant dense<0xFF800000> : vector<16xf32>
      %34 = vector.multi_reduction <maximumf>, %32, %cst_20 [1] : vector<16x16xf32> to vector<16xf32>
      %35 = vector.shape_cast %34 : vector<16xf32> to vector<16x1xf32>
      %36 = arith.maximumf %33, %35 : vector<16x1xf32>
      %37 = arith.subf %33, %36 : vector<16x1xf32>
      %38 = math.exp %37 : vector<16x1xf32>
      %39 = vector.broadcast %36 : vector<16x1xf32> to vector<16x16xf32>
      %40 = arith.subf %32, %39 : vector<16x16xf32>
      %41 = math.exp %40 : vector<16x16xf32>
      %c0_21 = arith.constant 0 : index
      %c0_22 = arith.constant 0 : index
      %42 = vector.load %arg8[%c0_21, %c0_22] : memref<16x1xf32, #tpu.memory_space<vmem>>, vector<16x1xf32>
      %43 = arith.mulf %42, %38 : vector<16x1xf32>
      %cst_23 = arith.constant dense<0.000000e+00> : vector<16xf32>
      %44 = vector.multi_reduction <add>, %41, %cst_23 [1] : vector<16x16xf32> to vector<16xf32>
      %45 = vector.shape_cast %44 : vector<16xf32> to vector<16x1xf32>
      %46 = arith.addf %43, %45 : vector<16x1xf32>
      %c0_24 = arith.constant 0 : index
      %c0_25 = arith.constant 0 : index
      %47 = vector.load %arg8[%c0_24, %c0_25] : memref<16x1xf32, #tpu.memory_space<vmem>>, vector<16x1xf32>
      tpu.vector_store %arg8[%c0_24, %c0_25], %46 {strides = array<i32>} : memref<16x1xf32, #tpu.memory_space<vmem>>, vector<16x1xf32>,
      %c0_26 = arith.constant 0 : index
      %c0_27 = arith.constant 0 : index
      %48 = vector.load %arg9[%c0_26, %c0_27] : memref<16x16xf32, #tpu.memory_space<vmem>>, vector<16x16xf32>
      %49 = vector.broadcast %38 : vector<16x1xf32> to vector<16x16xf32>
      %50 = arith.mulf %48, %49 : vector<16x16xf32>
      %51 = arith.truncf %41 : vector<16x16xf32> to vector<16x16xbf16>
      %cst_28 = arith.constant dense<0.000000e+00> : vector<16x16xf32>
      %52 = tpu.matmul %51, %18, %cst_28 {dimension_numbers = #tpu.dot_dimension_numbers<[1], [0], [0], [1], [0, 0, 1, 1], [], []>} : vector<16x16xbf16>, vector<16x16xbf16>, vector<16x16xf32> -> vector<16x16xf32>
      %53 = arith.addf %50, %52 : vector<16x16xf32>
      %c0_29 = arith.constant 0 : index
      %c0_30 = arith.constant 0 : index
      %54 = vector.load %arg9[%c0_29, %c0_30] : memref<16x16xf32, #tpu.memory_space<vmem>>, vector<16x16xf32>
      tpu.vector_store %arg9[%c0_29, %c0_30], %53 {strides = array<i32>} : memref<16x16xf32, #tpu.memory_space<vmem>>, vector<16x16xf32>,
      %c0_31 = arith.constant 0 : index
      %c0_32 = arith.constant 0 : index
      %55 = vector.load %arg7[%c0_31, %c0_32] : memref<16x1xf32, #tpu.memory_space<vmem>>, vector<16x1xf32>
      tpu.vector_store %arg7[%c0_31, %c0_32], %36 {strides = array<i32>} : memref<16x1xf32, #tpu.memory_space<vmem>>, vector<16x1xf32>,
    } else {
    }
    %c0_i32_4 = arith.constant 0 : i32
    %10 = arith.cmpi eq, %arg2, %c0_i32_4 : i32
    %11 = arith.extui %10 : i1 to i32
    %c0_i32_5 = arith.constant 0 : i32
    %12 = arith.cmpi ne, %11, %c0_i32_5 : i32
    scf.if %12 {
      %c0 = arith.constant 0 : index
      %c0_6 = arith.constant 0 : index
      %13 = vector.load %arg8[%c0, %c0_6] : memref<16x1xf32, #tpu.memory_space<vmem>>, vector<16x1xf32>
      %14 = tpu.reciprocal %13 {approx = true} : vector<16x1xf32> -> vector<16x1xf32>
      %c0_7 = arith.constant 0 : index
      %c0_8 = arith.constant 0 : index
      %15 = vector.load %arg9[%c0_7, %c0_8] : memref<16x16xf32, #tpu.memory_space<vmem>>, vector<16x16xf32>
      %16 = vector.broadcast %14 : vector<16x1xf32> to vector<16x16xf32>
      %17 = arith.mulf %15, %16 : vector<16x16xf32>
      %18 = arith.truncf %17 : vector<16x16xf32> to vector<16x16xbf16>
      %c0_9 = arith.constant 0 : index
      %c0_10 = arith.constant 0 : index
      %c0_11 = arith.constant 0 : index
      %19 = vector.load %arg6[%c0_9, %c0_10, %c0_11] : memref<1x16x16xbf16, #tpu.memory_space<vmem>>, vector<1x16x16xbf16>
      %20 = vector.shape_cast %19 : vector<1x16x16xbf16> to vector<16x16xbf16>
      %21 = vector.shape_cast %18 : vector<16x16xbf16> to vector<1x16x16xbf16>
      tpu.vector_store %arg6[%c0_9, %c0_10, %c0_11], %21 {strides = array<i32>} : memref<1x16x16xbf16, #tpu.memory_space<vmem>>, vector<1x16x16xbf16>,
    } else {
    }
    return
  }
  func.func @transform_0(%arg0: i32, %arg1: i32, %arg2: i32) -> (i32, i32, i32) {
    %c0_i32 = arith.constant 0 : i32
    %c0_i32_0 = arith.constant 0 : i32
    return %arg0, %arg1, %c0_i32 : i32, i32, i32
  }
  func.func @transform_1(%arg0: i32, %arg1: i32, %arg2: i32) -> (i32, i32, i32) {
    %c0_i32 = arith.constant 0 : i32
    %c0_i32_0 = arith.constant 0 : i32
    return %arg0, %arg2, %c0_i32 : i32, i32, i32
  }
  func.func @transform_2(%arg0: i32, %arg1: i32, %arg2: i32) -> (i32, i32, i32) {
    %c0_i32 = arith.constant 0 : i32
    %c0_i32_0 = arith.constant 0 : i32
    return %arg0, %arg2, %c0_i32 : i32, i32, i32
  }
  func.func @transform_3(%arg0: i32, %arg1: i32, %arg2: i32) -> (i32, i32, i32) {
    %c0_i32 = arith.constant 0 : i32
    %c0_i32_0 = arith.constant 0 : i32
    return %arg0, %arg1, %c0_i32 : i32, i32, i32
  }
}

module attributes {stable_mosaic.version = 11 : i64} {
  func.func @kernel(%arg0: i32, %arg1: i32, %arg2: i32, %arg3: memref<32x32xbf16, #tpu.memory_space<vmem>>, %arg4: memref<32x32xbf16, #tpu.memory_space<vmem>>, %arg5: memref<1x32xf32, #tpu.memory_space<vmem>>, %arg6: memref<32x32xbf16, #tpu.memory_space<vmem>>, %arg7: memref<32x32xbf16, #tpu.memory_space<vmem>>, %arg8: memref<32x32xf32, #tpu.memory_space<vmem>>) attributes {dimension_semantics = [#tpu.dimension_semantics<parallel>, #tpu.dimension_semantics<parallel>, #tpu.dimension_semantics<arbitrary>], iteration_bounds = array<i64: 1, 1, 1>, scalar_prefetch = 0 : i64, scratch_operands = 1 : i64, tpu.core_type = #tpu.core_type<tc>, window_params = [{transform_indices = @transform_0, window_bounds = array<i64: 32, 32>}, {transform_indices = @transform_1, window_bounds = array<i64: 32, 32>}, {transform_indices = @transform_2, window_bounds = array<i64: 1, 32>}, {transform_indices = @transform_3, window_bounds = array<i64: 32, 32>}, {transform_indices = @transform_4, window_bounds = array<i64: 32, 32>}]} {
    %c0_i32 = arith.constant 0 : i32
    %0 = arith.cmpi eq, %arg2, %c0_i32 : i32
    %1 = arith.extui %0 : i1 to i32
    %c0_i32_0 = arith.constant 0 : i32
    %2 = arith.cmpi ne, %1, %c0_i32_0 : i32
    scf.if %2 {
      %cst_10 = arith.constant 0.000000e+00 : f32
      %12 = vector.broadcast %cst_10 : f32 to vector<32x32xf32>
      %c0_11 = arith.constant 0 : index
      %c0_12 = arith.constant 0 : index
      %13 = vector.load %arg8[%c0_11, %c0_12] : memref<32x32xf32, #tpu.memory_space<vmem>>, vector<32x32xf32>
      tpu.vector_store %arg8[%c0_11, %c0_12], %12 {strides = array<i32>} : memref<32x32xf32, #tpu.memory_space<vmem>>, vector<32x32xf32>,
    } else {
    }
    %c0 = arith.constant 0 : index
    %c0_1 = arith.constant 0 : index
    %3 = vector.load %arg8[%c0, %c0_1] : memref<32x32xf32, #tpu.memory_space<vmem>>, vector<32x32xf32>
    %c0_2 = arith.constant 0 : index
    %c0_3 = arith.constant 0 : index
    %4 = vector.load %arg3[%c0_2, %c0_3] : memref<32x32xbf16, #tpu.memory_space<vmem>>, vector<32x32xbf16>
    %c0_4 = arith.constant 0 : index
    %c0_5 = arith.constant 0 : index
    %5 = vector.load %arg4[%c0_4, %c0_5] : memref<32x32xbf16, #tpu.memory_space<vmem>>, vector<32x32xbf16>
    %cst = arith.constant dense<0.000000e+00> : vector<32x32xf32>
    %6 = tpu.matmul %4, %5, %cst {dimension_numbers = #tpu.dot_dimension_numbers<[1], [0], [0], [1], [0, 0, 1, 1], [], []>} : vector<32x32xbf16>, vector<32x32xbf16>, vector<32x32xf32> -> vector<32x32xf32>
    %7 = arith.addf %3, %6 : vector<32x32xf32>
    %c0_6 = arith.constant 0 : index
    %c0_7 = arith.constant 0 : index
    %8 = vector.load %arg8[%c0_6, %c0_7] : memref<32x32xf32, #tpu.memory_space<vmem>>, vector<32x32xf32>
    tpu.vector_store %arg8[%c0_6, %c0_7], %7 {strides = array<i32>} : memref<32x32xf32, #tpu.memory_space<vmem>>, vector<32x32xf32>,
    %c0_i32_8 = arith.constant 0 : i32
    %9 = arith.cmpi eq, %arg2, %c0_i32_8 : i32
    %10 = arith.extui %9 : i1 to i32
    %c0_i32_9 = arith.constant 0 : i32
    %11 = arith.cmpi ne, %10, %c0_i32_9 : i32
    scf.if %11 {
      %c0_10 = arith.constant 0 : index
      %c0_11 = arith.constant 0 : index
      %12 = vector.load %arg8[%c0_10, %c0_11] : memref<32x32xf32, #tpu.memory_space<vmem>>, vector<32x32xf32>
      %c0_12 = arith.constant 0 : index
      %c0_13 = arith.constant 0 : index
      %13 = vector.load %arg5[%c0_12, %c0_13] : memref<1x32xf32, #tpu.memory_space<vmem>>, vector<1x32xf32>
      %14 = vector.broadcast %13 : vector<1x32xf32> to vector<32x32xf32>
      %15 = arith.addf %12, %14 : vector<32x32xf32>
      %c0_14 = arith.constant 0 : index
      %c0_15 = arith.constant 0 : index
      %16 = vector.load %arg6[%c0_14, %c0_15] : memref<32x32xbf16, #tpu.memory_space<vmem>>, vector<32x32xbf16>
      %17 = arith.extf %16 : vector<32x32xbf16> to vector<32x32xf32>
      %18 = arith.addf %15, %17 : vector<32x32xf32>
      %19 = arith.truncf %18 : vector<32x32xf32> to vector<32x32xbf16>
      %c0_16 = arith.constant 0 : index
      %c0_17 = arith.constant 0 : index
      %20 = vector.load %arg7[%c0_16, %c0_17] : memref<32x32xbf16, #tpu.memory_space<vmem>>, vector<32x32xbf16>
      tpu.vector_store %arg7[%c0_16, %c0_17], %19 {strides = array<i32>} : memref<32x32xbf16, #tpu.memory_space<vmem>>, vector<32x32xbf16>,
    } else {
    }
    return
  }
  func.func @transform_0(%arg0: i32, %arg1: i32, %arg2: i32) -> (i32, i32) {
    %c0_i32 = arith.constant 0 : i32
    return %arg0, %arg2 : i32, i32
  }
  func.func @transform_1(%arg0: i32, %arg1: i32, %arg2: i32) -> (i32, i32) {
    %c0_i32 = arith.constant 0 : i32
    return %arg2, %arg1 : i32, i32
  }
  func.func @transform_2(%arg0: i32, %arg1: i32, %arg2: i32) -> (i32, i32) {
    %c0_i32 = arith.constant 0 : i32
    %c0_i32_0 = arith.constant 0 : i32
    return %c0_i32, %arg1 : i32, i32
  }
  func.func @transform_3(%arg0: i32, %arg1: i32, %arg2: i32) -> (i32, i32) {
    %c0_i32 = arith.constant 0 : i32
    return %arg0, %arg1 : i32, i32
  }
  func.func @transform_4(%arg0: i32, %arg1: i32, %arg2: i32) -> (i32, i32) {
    %c0_i32 = arith.constant 0 : i32
    return %arg0, %arg1 : i32, i32
  }
}

module attributes {stable_mosaic.version = 11 : i64} {
  func.func @kernel(%arg0: i32, %arg1: i32, %arg2: memref<32x32xbf16, #tpu.memory_space<vmem>>, %arg3: memref<1x32xf32, #tpu.memory_space<vmem>>, %arg4: memref<1x32xf32, #tpu.memory_space<vmem>>, %arg5: memref<32x64xbf16, #tpu.memory_space<vmem>>, %arg6: memref<1x64xf32, #tpu.memory_space<vmem>>, %arg7: memref<32x64xbf16, #tpu.memory_space<vmem>>) attributes {dimension_semantics = [#tpu.dimension_semantics<parallel>, #tpu.dimension_semantics<parallel>], iteration_bounds = array<i64: 1, 1>, scalar_prefetch = 0 : i64, scratch_operands = 0 : i64, tpu.core_type = #tpu.core_type<tc>, window_params = [{transform_indices = @transform_0, window_bounds = array<i64: 32, 32>}, {pipeline_mode = #tpu.pipeline_mode<synchronous>, transform_indices = @transform_1, window_bounds = array<i64: 1, 32>}, {pipeline_mode = #tpu.pipeline_mode<synchronous>, transform_indices = @transform_2, window_bounds = array<i64: 1, 32>}, {transform_indices = @transform_3, window_bounds = array<i64: 32, 64>}, {transform_indices = @transform_4, window_bounds = array<i64: 1, 64>}, {transform_indices = @transform_5, window_bounds = array<i64: 32, 64>}]} {
    %c0 = arith.constant 0 : index
    %c0_0 = arith.constant 0 : index
    %0 = vector.load %arg2[%c0, %c0_0] : memref<32x32xbf16, #tpu.memory_space<vmem>>, vector<32x32xbf16>
    %1 = arith.extf %0 : vector<32x32xbf16> to vector<32x32xf32>
    %cst = arith.constant dense<0.000000e+00> : vector<32xf32>
    %2 = vector.multi_reduction <add>, %1, %cst [1] : vector<32x32xf32> to vector<32xf32>
    %3 = vector.shape_cast %2 : vector<32xf32> to vector<32x1xf32>
    %cst_1 = arith.constant 3.200000e+01 : f32
    %4 = vector.broadcast %cst_1 : f32 to vector<32x1xf32>
    %5 = arith.divf %3, %4 : vector<32x1xf32>
    %6 = vector.broadcast %5 : vector<32x1xf32> to vector<32x32xf32>
    %7 = arith.subf %1, %6 : vector<32x32xf32>
    %8 = arith.mulf %7, %7 : vector<32x32xf32>
    %cst_2 = arith.constant dense<0.000000e+00> : vector<32xf32>
    %9 = vector.multi_reduction <add>, %8, %cst_2 [1] : vector<32x32xf32> to vector<32xf32>
    %10 = vector.shape_cast %9 : vector<32xf32> to vector<32x1xf32>
    %cst_3 = arith.constant 3.200000e+01 : f32
    %11 = vector.broadcast %cst_3 : f32 to vector<32x1xf32>
    %12 = arith.divf %10, %11 : vector<32x1xf32>
    %13 = vector.broadcast %5 : vector<32x1xf32> to vector<32x32xf32>
    %14 = arith.subf %1, %13 : vector<32x32xf32>
    %cst_4 = arith.constant 9.99999974E-6 : f32
    %15 = vector.broadcast %cst_4 : f32 to vector<32x1xf32>
    %16 = arith.addf %12, %15 : vector<32x1xf32>
    %17 = math.rsqrt %16 : vector<32x1xf32>
    %18 = vector.broadcast %17 : vector<32x1xf32> to vector<32x32xf32>
    %19 = arith.mulf %14, %18 : vector<32x32xf32>
    %c0_5 = arith.constant 0 : index
    %c0_6 = arith.constant 0 : index
    %20 = vector.load %arg3[%c0_5, %c0_6] : memref<1x32xf32, #tpu.memory_space<vmem>>, vector<1x32xf32>
    %21 = vector.broadcast %20 : vector<1x32xf32> to vector<32x32xf32>
    %22 = arith.mulf %19, %21 : vector<32x32xf32>
    %c0_7 = arith.constant 0 : index
    %c0_8 = arith.constant 0 : index
    %23 = vector.load %arg4[%c0_7, %c0_8] : memref<1x32xf32, #tpu.memory_space<vmem>>, vector<1x32xf32>
    %24 = vector.broadcast %23 : vector<1x32xf32> to vector<32x32xf32>
    %25 = arith.addf %22, %24 : vector<32x32xf32>
    %26 = arith.truncf %25 : vector<32x32xf32> to vector<32x32xbf16>
    %c0_9 = arith.constant 0 : index
    %c0_10 = arith.constant 0 : index
    %27 = vector.load %arg5[%c0_9, %c0_10] : memref<32x64xbf16, #tpu.memory_space<vmem>>, vector<32x64xbf16>
    %cst_11 = arith.constant dense<0.000000e+00> : vector<32x64xf32>
    %28 = tpu.matmul %26, %27, %cst_11 {dimension_numbers = #tpu.dot_dimension_numbers<[1], [0], [0], [1], [0, 0, 1, 1], [], []>} : vector<32x32xbf16>, vector<32x64xbf16>, vector<32x64xf32> -> vector<32x64xf32>
    %c0_12 = arith.constant 0 : index
    %c0_13 = arith.constant 0 : index
    %29 = vector.load %arg6[%c0_12, %c0_13] : memref<1x64xf32, #tpu.memory_space<vmem>>, vector<1x64xf32>
    %30 = vector.broadcast %29 : vector<1x64xf32> to vector<32x64xf32>
    %31 = arith.addf %28, %30 : vector<32x64xf32>
    %32 = arith.mulf %31, %31 : vector<32x64xf32>
    %33 = arith.mulf %31, %32 : vector<32x64xf32>
    %cst_14 = arith.constant 4.471500e-02 : f32
    %34 = vector.broadcast %cst_14 : f32 to vector<32x64xf32>
    %35 = arith.mulf %34, %33 : vector<32x64xf32>
    %36 = arith.addf %31, %35 : vector<32x64xf32>
    %cst_15 = arith.constant 0.797884583 : f32
    %37 = vector.broadcast %cst_15 : f32 to vector<32x64xf32>
    %38 = arith.mulf %37, %36 : vector<32x64xf32>
    %39 = math.tanh %38 : vector<32x64xf32>
    %cst_16 = arith.constant 1.000000e+00 : f32
    %40 = vector.broadcast %cst_16 : f32 to vector<32x64xf32>
    %41 = arith.addf %40, %39 : vector<32x64xf32>
    %cst_17 = arith.constant 5.000000e-01 : f32
    %42 = vector.broadcast %cst_17 : f32 to vector<32x64xf32>
    %43 = arith.mulf %42, %41 : vector<32x64xf32>
    %44 = arith.mulf %31, %43 : vector<32x64xf32>
    %45 = arith.truncf %44 : vector<32x64xf32> to vector<32x64xbf16>
    %c0_18 = arith.constant 0 : index
    %c0_19 = arith.constant 0 : index
    %46 = vector.load %arg7[%c0_18, %c0_19] : memref<32x64xbf16, #tpu.memory_space<vmem>>, vector<32x64xbf16>
    tpu.vector_store %arg7[%c0_18, %c0_19], %45 {strides = array<i32>} : memref<32x64xbf16, #tpu.memory_space<vmem>>, vector<32x64xbf16>,
    return
  }
  func.func @transform_0(%arg0: i32, %arg1: i32) -> (i32, i32) {
    %c0_i32 = arith.constant 0 : i32
    %c0_i32_0 = arith.constant 0 : i32
    return %arg0, %c0_i32 : i32, i32
  }
  func.func @transform_1(%arg0: i32, %arg1: i32) -> (i32, i32) {
    %c0_i32 = arith.constant 0 : i32
    %c0_i32_0 = arith.constant 0 : i32
    %c0_i32_1 = arith.constant 0 : i32
    return %c0_i32, %c0_i32_0 : i32, i32
  }
  func.func @transform_2(%arg0: i32, %arg1: i32) -> (i32, i32) {
    %c0_i32 = arith.constant 0 : i32
    %c0_i32_0 = arith.constant 0 : i32
    %c0_i32_1 = arith.constant 0 : i32
    return %c0_i32, %c0_i32_0 : i32, i32
  }
  func.func @transform_3(%arg0: i32, %arg1: i32) -> (i32, i32) {
    %c0_i32 = arith.constant 0 : i32
    %c0_i32_0 = arith.constant 0 : i32
    return %c0_i32, %arg1 : i32, i32
  }
  func.func @transform_4(%arg0: i32, %arg1: i32) -> (i32, i32) {
    %c0_i32 = arith.constant 0 : i32
    %c0_i32_0 = arith.constant 0 : i32
    return %c0_i32, %arg1 : i32, i32
  }
  func.func @transform_5(%arg0: i32, %arg1: i32) -> (i32, i32) {
    %c0_i32 = arith.constant 0 : i32
    return %arg0, %arg1 : i32, i32
  }
}

module attributes {stable_mosaic.version = 11 : i64} {
  func.func @kernel(%arg0: i32, %arg1: i32, %arg2: i32, %arg3: memref<32x64xbf16, #tpu.memory_space<vmem>>, %arg4: memref<64x32xbf16, #tpu.memory_space<vmem>>, %arg5: memref<1x32xf32, #tpu.memory_space<vmem>>, %arg6: memref<32x32xbf16, #tpu.memory_space<vmem>>, %arg7: memref<32x32xbf16, #tpu.memory_space<vmem>>, %arg8: memref<32x32xf32, #tpu.memory_space<vmem>>) attributes {dimension_semantics = [#tpu.dimension_semantics<parallel>, #tpu.dimension_semantics<parallel>, #tpu.dimension_semantics<arbitrary>], iteration_bounds = array<i64: 1, 1, 1>, scalar_prefetch = 0 : i64, scratch_operands = 1 : i64, tpu.core_type = #tpu.core_type<tc>, window_params = [{transform_indices = @transform_0, window_bounds = array<i64: 32, 64>}, {transform_indices = @transform_1, window_bounds = array<i64: 64, 32>}, {transform_indices = @transform_2, window_bounds = array<i64: 1, 32>}, {transform_indices = @transform_3, window_bounds = array<i64: 32, 32>}, {transform_indices = @transform_4, window_bounds = array<i64: 32, 32>}]} {
    %c0_i32 = arith.constant 0 : i32
    %0 = arith.cmpi eq, %arg2, %c0_i32 : i32
    %1 = arith.extui %0 : i1 to i32
    %c0_i32_0 = arith.constant 0 : i32
    %2 = arith.cmpi ne, %1, %c0_i32_0 : i32
    scf.if %2 {
      %cst_10 = arith.constant 0.000000e+00 : f32
      %12 = vector.broadcast %cst_10 : f32 to vector<32x32xf32>
      %c0_11 = arith.constant 0 : index
      %c0_12 = arith.constant 0 : index
      %13 = vector.load %arg8[%c0_11, %c0_12] : memref<32x32xf32, #tpu.memory_space<vmem>>, vector<32x32xf32>
      tpu.vector_store %arg8[%c0_11, %c0_12], %12 {strides = array<i32>} : memref<32x32xf32, #tpu.memory_space<vmem>>, vector<32x32xf32>,
    } else {
    }
    %c0 = arith.constant 0 : index
    %c0_1 = arith.constant 0 : index
    %3 = vector.load %arg8[%c0, %c0_1] : memref<32x32xf32, #tpu.memory_space<vmem>>, vector<32x32xf32>
    %c0_2 = arith.constant 0 : index
    %c0_3 = arith.constant 0 : index
    %4 = vector.load %arg3[%c0_2, %c0_3] : memref<32x64xbf16, #tpu.memory_space<vmem>>, vector<32x64xbf16>
    %c0_4 = arith.constant 0 : index
    %c0_5 = arith.constant 0 : index
    %5 = vector.load %arg4[%c0_4, %c0_5] : memref<64x32xbf16, #tpu.memory_space<vmem>>, vector<64x32xbf16>
    %cst = arith.constant dense<0.000000e+00> : vector<32x32xf32>
    %6 = tpu.matmul %4, %5, %cst {dimension_numbers = #tpu.dot_dimension_numbers<[1], [0], [0], [1], [0, 0, 1, 1], [], []>} : vector<32x64xbf16>, vector<64x32xbf16>, vector<32x32xf32> -> vector<32x32xf32>
    %7 = arith.addf %3, %6 : vector<32x32xf32>
    %c0_6 = arith.constant 0 : index
    %c0_7 = arith.constant 0 : index
    %8 = vector.load %arg8[%c0_6, %c0_7] : memref<32x32xf32, #tpu.memory_space<vmem>>, vector<32x32xf32>
    tpu.vector_store %arg8[%c0_6, %c0_7], %7 {strides = array<i32>} : memref<32x32xf32, #tpu.memory_space<vmem>>, vector<32x32xf32>,
    %c0_i32_8 = arith.constant 0 : i32
    %9 = arith.cmpi eq, %arg2, %c0_i32_8 : i32
    %10 = arith.extui %9 : i1 to i32
    %c0_i32_9 = arith.constant 0 : i32
    %11 = arith.cmpi ne, %10, %c0_i32_9 : i32
    scf.if %11 {
      %c0_10 = arith.constant 0 : index
      %c0_11 = arith.constant 0 : index
      %12 = vector.load %arg8[%c0_10, %c0_11] : memref<32x32xf32, #tpu.memory_space<vmem>>, vector<32x32xf32>
      %c0_12 = arith.constant 0 : index
      %c0_13 = arith.constant 0 : index
      %13 = vector.load %arg5[%c0_12, %c0_13] : memref<1x32xf32, #tpu.memory_space<vmem>>, vector<1x32xf32>
      %14 = vector.broadcast %13 : vector<1x32xf32> to vector<32x32xf32>
      %15 = arith.addf %12, %14 : vector<32x32xf32>
      %c0_14 = arith.constant 0 : index
      %c0_15 = arith.constant 0 : index
      %16 = vector.load %arg6[%c0_14, %c0_15] : memref<32x32xbf16, #tpu.memory_space<vmem>>, vector<32x32xbf16>
      %17 = arith.extf %16 : vector<32x32xbf16> to vector<32x32xf32>
      %18 = arith.addf %15, %17 : vector<32x32xf32>
      %19 = arith.truncf %18 : vector<32x32xf32> to vector<32x32xbf16>
      %c0_16 = arith.constant 0 : index
      %c0_17 = arith.constant 0 : index
      %20 = vector.load %arg7[%c0_16, %c0_17] : memref<32x32xbf16, #tpu.memory_space<vmem>>, vector<32x32xbf16>
      tpu.vector_store %arg7[%c0_16, %c0_17], %19 {strides = array<i32>} : memref<32x32xbf16, #tpu.memory_space<vmem>>, vector<32x32xbf16>,
    } else {
    }
    return
  }
  func.func @transform_0(%arg0: i32, %arg1: i32, %arg2: i32) -> (i32, i32) {
    %c0_i32 = arith.constant 0 : i32
    return %arg0, %arg2 : i32, i32
  }
  func.func @transform_1(%arg0: i32, %arg1: i32, %arg2: i32) -> (i32, i32) {
    %c0_i32 = arith.constant 0 : i32
    return %arg2, %arg1 : i32, i32
  }
  func.func @transform_2(%arg0: i32, %arg1: i32, %arg2: i32) -> (i32, i32) {
    %c0_i32 = arith.constant 0 : i32
    %c0_i32_0 = arith.constant 0 : i32
    return %c0_i32, %arg1 : i32, i32
  }
  func.func @transform_3(%arg0: i32, %arg1: i32, %arg2: i32) -> (i32, i32) {
    %c0_i32 = arith.constant 0 : i32
    return %arg0, %arg1 : i32, i32
  }
  func.func @transform_4(%arg0: i32, %arg1: i32, %arg2: i32) -> (i32, i32) {
    %c0_i32 = arith.constant 0 : i32
    return %arg0, %arg1 : i32, i32
  }
}

module attributes {stable_mosaic.version = 11 : i64} {
  func.func @kernel(%arg0: i32, %arg1: i32, %arg2: memref<32x32xbf16, #tpu.memory_space<vmem>>, %arg3: memref<1x32xf32, #tpu.memory_space<vmem>>, %arg4: memref<1x32xf32, #tpu.memory_space<vmem>>, %arg5: memref<32x64xbf16, #tpu.memory_space<vmem>>, %arg6: memref<32x64xf32, #tpu.memory_space<vmem>>) attributes {dimension_semantics = [#tpu.dimension_semantics<parallel>, #tpu.dimension_semantics<parallel>], iteration_bounds = array<i64: 1, 1>, scalar_prefetch = 0 : i64, scratch_operands = 0 : i64, tpu.core_type = #tpu.core_type<tc>, window_params = [{transform_indices = @transform_0, window_bounds = array<i64: 32, 32>}, {pipeline_mode = #tpu.pipeline_mode<synchronous>, transform_indices = @transform_1, window_bounds = array<i64: 1, 32>}, {pipeline_mode = #tpu.pipeline_mode<synchronous>, transform_indices = @transform_2, window_bounds = array<i64: 1, 32>}, {transform_indices = @transform_3, window_bounds = array<i64: 32, 64>}, {transform_indices = @transform_4, window_bounds = array<i64: 32, 64>}]} {
    %c0 = arith.constant 0 : index
    %c0_0 = arith.constant 0 : index
    %0 = vector.load %arg2[%c0, %c0_0] : memref<32x32xbf16, #tpu.memory_space<vmem>>, vector<32x32xbf16>
    %1 = arith.extf %0 : vector<32x32xbf16> to vector<32x32xf32>
    %cst = arith.constant dense<0.000000e+00> : vector<32xf32>
    %2 = vector.multi_reduction <add>, %1, %cst [1] : vector<32x32xf32> to vector<32xf32>
    %3 = vector.shape_cast %2 : vector<32xf32> to vector<32x1xf32>
    %cst_1 = arith.constant 3.200000e+01 : f32
    %4 = vector.broadcast %cst_1 : f32 to vector<32x1xf32>
    %5 = arith.divf %3, %4 : vector<32x1xf32>
    %6 = vector.broadcast %5 : vector<32x1xf32> to vector<32x32xf32>
    %7 = arith.subf %1, %6 : vector<32x32xf32>
    %8 = arith.mulf %7, %7 : vector<32x32xf32>
    %cst_2 = arith.constant dense<0.000000e+00> : vector<32xf32>
    %9 = vector.multi_reduction <add>, %8, %cst_2 [1] : vector<32x32xf32> to vector<32xf32>
    %10 = vector.shape_cast %9 : vector<32xf32> to vector<32x1xf32>
    %cst_3 = arith.constant 3.200000e+01 : f32
    %11 = vector.broadcast %cst_3 : f32 to vector<32x1xf32>
    %12 = arith.divf %10, %11 : vector<32x1xf32>
    %13 = vector.broadcast %5 : vector<32x1xf32> to vector<32x32xf32>
    %14 = arith.subf %1, %13 : vector<32x32xf32>
    %cst_4 = arith.constant 9.99999974E-6 : f32
    %15 = vector.broadcast %cst_4 : f32 to vector<32x1xf32>
    %16 = arith.addf %12, %15 : vector<32x1xf32>
    %17 = math.rsqrt %16 : vector<32x1xf32>
    %18 = vector.broadcast %17 : vector<32x1xf32> to vector<32x32xf32>
    %19 = arith.mulf %14, %18 : vector<32x32xf32>
    %c0_5 = arith.constant 0 : index
    %c0_6 = arith.constant 0 : index
    %20 = vector.load %arg3[%c0_5, %c0_6] : memref<1x32xf32, #tpu.memory_space<vmem>>, vector<1x32xf32>
    %21 = vector.broadcast %20 : vector<1x32xf32> to vector<32x32xf32>
    %22 = arith.mulf %19, %21 : vector<32x32xf32>
    %c0_7 = arith.constant 0 : index
    %c0_8 = arith.constant 0 : index
    %23 = vector.load %arg4[%c0_7, %c0_8] : memref<1x32xf32, #tpu.memory_space<vmem>>, vector<1x32xf32>
    %24 = vector.broadcast %23 : vector<1x32xf32> to vector<32x32xf32>
    %25 = arith.addf %22, %24 : vector<32x32xf32>
    %26 = arith.truncf %25 : vector<32x32xf32> to vector<32x32xbf16>
    %c0_9 = arith.constant 0 : index
    %c0_10 = arith.constant 0 : index
    %27 = vector.load %arg5[%c0_9, %c0_10] : memref<32x64xbf16, #tpu.memory_space<vmem>>, vector<32x64xbf16>
    %cst_11 = arith.constant dense<0.000000e+00> : vector<32x64xf32>
    %28 = tpu.matmul %26, %27, %cst_11 {dimension_numbers = #tpu.dot_dimension_numbers<[1], [0], [0], [1], [0, 0, 1, 1], [], []>} : vector<32x32xbf16>, vector<32x64xbf16>, vector<32x64xf32> -> vector<32x64xf32>
    %c0_12 = arith.constant 0 : index
    %c0_13 = arith.constant 0 : index
    %29 = vector.load %arg6[%c0_12, %c0_13] : memref<32x64xf32, #tpu.memory_space<vmem>>, vector<32x64xf32>
    tpu.vector_store %arg6[%c0_12, %c0_13], %28 {strides = array<i32>} : memref<32x64xf32, #tpu.memory_space<vmem>>, vector<32x64xf32>,
    return
  }
  func.func @transform_0(%arg0: i32, %arg1: i32) -> (i32, i32) {
    %c0_i32 = arith.constant 0 : i32
    %c0_i32_0 = arith.constant 0 : i32
    return %arg0, %c0_i32 : i32, i32
  }
  func.func @transform_1(%arg0: i32, %arg1: i32) -> (i32, i32) {
    %c0_i32 = arith.constant 0 : i32
    %c0_i32_0 = arith.constant 0 : i32
    %c0_i32_1 = arith.constant 0 : i32
    return %c0_i32, %c0_i32_0 : i32, i32
  }
  func.func @transform_2(%arg0: i32, %arg1: i32) -> (i32, i32) {
    %c0_i32 = arith.constant 0 : i32
    %c0_i32_0 = arith.constant 0 : i32
    %c0_i32_1 = arith.constant 0 : i32
    return %c0_i32, %c0_i32_0 : i32, i32
  }
  func.func @transform_3(%arg0: i32, %arg1: i32) -> (i32, i32) {
    %c0_i32 = arith.constant 0 : i32
    %c0_i32_0 = arith.constant 0 : i32
    return %c0_i32, %arg1 : i32, i32
  }
  func.func @transform_4(%arg0: i32, %arg1: i32) -> (i32, i32) {
    %c0_i32 = arith.constant 0 : i32
    return %arg0, %arg1 : i32, i32
  }
}

module attributes {stable_mosaic.version = 11 : i64} {
  func.func @kernel(%arg0: i32, %arg1: i32, %arg2: memref<32x64xf32, #tpu.memory_space<vmem>>, %arg3: memref<32x1xi32, #tpu.memory_space<vmem>>, %arg4: memref<32x1xf32, #tpu.memory_space<vmem>>, %arg5: memref<32x1xf32, #tpu.memory_space<vmem>>, %arg6: memref<32x1xf32, #tpu.memory_space<vmem>>, %arg7: memref<32x1xf32, #tpu.memory_space<vmem>>) attributes {dimension_semantics = [#tpu.dimension_semantics<parallel>, #tpu.dimension_semantics<arbitrary>], iteration_bounds = array<i64: 1, 1>, scalar_prefetch = 0 : i64, scratch_operands = 3 : i64, tpu.core_type = #tpu.core_type<tc>, window_params = [{transform_indices = @transform_0, window_bounds = array<i64: 32, 64>}, {transform_indices = @transform_1, window_bounds = array<i64: 32, 1>}, {transform_indices = @transform_2, window_bounds = array<i64: 32, 1>}]} {
    %c0_i32 = arith.constant 0 : i32
    %0 = arith.cmpi eq, %arg1, %c0_i32 : i32
    %1 = arith.extui %0 : i1 to i32
    %c0_i32_0 = arith.constant 0 : i32
    %2 = arith.cmpi ne, %1, %c0_i32_0 : i32
    scf.if %2 {
      %cst_21 = arith.constant 0xFF800000 : f32
      %37 = vector.broadcast %cst_21 : f32 to vector<32x1xf32>
      %c0_22 = arith.constant 0 : index
      %c0_23 = arith.constant 0 : index
      %38 = vector.load %arg5[%c0_22, %c0_23] : memref<32x1xf32, #tpu.memory_space<vmem>>, vector<32x1xf32>
      tpu.vector_store %arg5[%c0_22, %c0_23], %37 {strides = array<i32>} : memref<32x1xf32, #tpu.memory_space<vmem>>, vector<32x1xf32>,
      %cst_24 = arith.constant 0.000000e+00 : f32
      %39 = vector.broadcast %cst_24 : f32 to vector<32x1xf32>
      %c0_25 = arith.constant 0 : index
      %c0_26 = arith.constant 0 : index
      %40 = vector.load %arg6[%c0_25, %c0_26] : memref<32x1xf32, #tpu.memory_space<vmem>>, vector<32x1xf32>
      tpu.vector_store %arg6[%c0_25, %c0_26], %39 {strides = array<i32>} : memref<32x1xf32, #tpu.memory_space<vmem>>, vector<32x1xf32>,
      %cst_27 = arith.constant 0.000000e+00 : f32
      %41 = vector.broadcast %cst_27 : f32 to vector<32x1xf32>
      %c0_28 = arith.constant 0 : index
      %c0_29 = arith.constant 0 : index
      %42 = vector.load %arg7[%c0_28, %c0_29] : memref<32x1xf32, #tpu.memory_space<vmem>>, vector<32x1xf32>
      tpu.vector_store %arg7[%c0_28, %c0_29], %41 {strides = array<i32>} : memref<32x1xf32, #tpu.memory_space<vmem>>, vector<32x1xf32>,
    } else {
    }
    %c0 = arith.constant 0 : index
    %c0_1 = arith.constant 0 : index
    %3 = vector.load %arg2[%c0, %c0_1] : memref<32x64xf32, #tpu.memory_space<vmem>>, vector<32x64xf32>
    %c0_2 = arith.constant 0 : index
    %c0_3 = arith.constant 0 : index
    %4 = vector.load %arg3[%c0_2, %c0_3] : memref<32x1xi32, #tpu.memory_space<vmem>>, vector<32x1xi32>
    %c64_i32 = arith.constant 64 : i32
    %5 = arith.muli %arg1, %c64_i32 : i32
    %6 = tpu.iota {dimensions = array<i32: 1>} : vector<32x64xi32>
    %7 = vector.broadcast %5 : i32 to vector<32x64xi32>
    %8 = arith.addi %7, %6 : vector<32x64xi32>
    %c0_4 = arith.constant 0 : index
    %c0_5 = arith.constant 0 : index
    %9 = vector.load %arg5[%c0_4, %c0_5] : memref<32x1xf32, #tpu.memory_space<vmem>>, vector<32x1xf32>
    %cst = arith.constant dense<0xFF800000> : vector<32xf32>
    %10 = vector.multi_reduction <maximumf>, %3, %cst [1] : vector<32x64xf32> to vector<32xf32>
    %11 = vector.shape_cast %10 : vector<32xf32> to vector<32x1xf32>
    %12 = arith.maximumf %9, %11 : vector<32x1xf32>
    %c0_6 = arith.constant 0 : index
    %c0_7 = arith.constant 0 : index
    %13 = vector.load %arg6[%c0_6, %c0_7] : memref<32x1xf32, #tpu.memory_space<vmem>>, vector<32x1xf32>
    %14 = arith.subf %9, %12 : vector<32x1xf32>
    %15 = math.exp %14 : vector<32x1xf32>
    %16 = arith.mulf %13, %15 : vector<32x1xf32>
    %17 = vector.broadcast %12 : vector<32x1xf32> to vector<32x64xf32>
    %18 = arith.subf %3, %17 : vector<32x64xf32>
    %19 = math.exp %18 : vector<32x64xf32>
    %cst_8 = arith.constant dense<0.000000e+00> : vector<32xf32>
    %20 = vector.multi_reduction <add>, %19, %cst_8 [1] : vector<32x64xf32> to vector<32xf32>
    %21 = vector.shape_cast %20 : vector<32xf32> to vector<32x1xf32>
    %22 = arith.addf %16, %21 : vector<32x1xf32>
    %c0_9 = arith.constant 0 : index
    %c0_10 = arith.constant 0 : index
    %23 = vector.load %arg6[%c0_9, %c0_10] : memref<32x1xf32, #tpu.memory_space<vmem>>, vector<32x1xf32>
    tpu.vector_store %arg6[%c0_9, %c0_10], %22 {strides = array<i32>} : memref<32x1xf32, #tpu.memory_space<vmem>>, vector<32x1xf32>,
    %c0_11 = arith.constant 0 : index
    %c0_12 = arith.constant 0 : index
    %24 = vector.load %arg5[%c0_11, %c0_12] : memref<32x1xf32, #tpu.memory_space<vmem>>, vector<32x1xf32>
    tpu.vector_store %arg5[%c0_11, %c0_12], %12 {strides = array<i32>} : memref<32x1xf32, #tpu.memory_space<vmem>>, vector<32x1xf32>,
    %c0_13 = arith.constant 0 : index
    %c0_14 = arith.constant 0 : index
    %25 = vector.load %arg7[%c0_13, %c0_14] : memref<32x1xf32, #tpu.memory_space<vmem>>, vector<32x1xf32>
    %26 = vector.broadcast %4 : vector<32x1xi32> to vector<32x64xi32>
    %27 = arith.cmpi eq, %8, %26 : vector<32x64xi32>
    %cst_15 = arith.constant 0.000000e+00 : f32
    %28 = vector.broadcast %cst_15 : f32 to vector<32x64xf32>
    %29 = arith.select %27, %3, %28 : vector<32x64xi1>, vector<32x64xf32>
    %cst_16 = arith.constant dense<0.000000e+00> : vector<32xf32>
    %30 = vector.multi_reduction <add>, %29, %cst_16 [1] : vector<32x64xf32> to vector<32xf32>
    %31 = vector.shape_cast %30 : vector<32xf32> to vector<32x1xf32>
    %32 = arith.addf %25, %31 : vector<32x1xf32>
    %c0_17 = arith.constant 0 : index
    %c0_18 = arith.constant 0 : index
    %33 = vector.load %arg7[%c0_17, %c0_18] : memref<32x1xf32, #tpu.memory_space<vmem>>, vector<32x1xf32>
    tpu.vector_store %arg7[%c0_17, %c0_18], %32 {strides = array<i32>} : memref<32x1xf32, #tpu.memory_space<vmem>>, vector<32x1xf32>,
    %c0_i32_19 = arith.constant 0 : i32
    %34 = arith.cmpi eq, %arg1, %c0_i32_19 : i32
    %35 = arith.extui %34 : i1 to i32
    %c0_i32_20 = arith.constant 0 : i32
    %36 = arith.cmpi ne, %35, %c0_i32_20 : i32
    scf.if %36 {
      %c0_21 = arith.constant 0 : index
      %c0_22 = arith.constant 0 : index
      %37 = vector.load %arg5[%c0_21, %c0_22] : memref<32x1xf32, #tpu.memory_space<vmem>>, vector<32x1xf32>
      %c0_23 = arith.constant 0 : index
      %c0_24 = arith.constant 0 : index
      %38 = vector.load %arg6[%c0_23, %c0_24] : memref<32x1xf32, #tpu.memory_space<vmem>>, vector<32x1xf32>
      %39 = math.log %38 : vector<32x1xf32>
      %40 = arith.addf %37, %39 : vector<32x1xf32>
      %c0_25 = arith.constant 0 : index
      %c0_26 = arith.constant 0 : index
      %41 = vector.load %arg7[%c0_25, %c0_26] : memref<32x1xf32, #tpu.memory_space<vmem>>, vector<32x1xf32>
      %42 = arith.subf %40, %41 : vector<32x1xf32>
      %c0_27 = arith.constant 0 : index
      %c0_28 = arith.constant 0 : index
      %43 = vector.load %arg4[%c0_27, %c0_28] : memref<32x1xf32, #tpu.memory_space<vmem>>, vector<32x1xf32>
      tpu.vector_store %arg4[%c0_27, %c0_28], %42 {strides = array<i32>} : memref<32x1xf32, #tpu.memory_space<vmem>>, vector<32x1xf32>,
    } else {
    }
    return
  }
  func.func @transform_0(%arg0: i32, %arg1: i32) -> (i32, i32) {
    %c0_i32 = arith.constant 0 : i32
    return %arg0, %arg1 : i32, i32
  }
  func.func @transform_1(%arg0: i32, %arg1: i32) -> (i32, i32) {
    %c0_i32 = arith.constant 0 : i32
    %c0_i32_0 = arith.constant 0 : i32
    return %arg0, %c0_i32 : i32, i32
  }
  func.func @transform_2(%arg0: i32, %arg1: i32) -> (i32, i32) {
    %c0_i32 = arith.constant 0 : i32
    %c0_i32_0 = arith.constant 0 : i32
    return %arg0, %c0_i32 : i32, i32
  }
}

</mosaic_0001>

<llo_original>
// kernel: imagegpt_forward.13
$region0: #{imagegpt_forward.13}
  #allocation0 [shape = 'u32[]', space=smem, size = 0x4, offset = 0x4, fixed_abs, tag = 'smem constant byte address 0x4 - core index']
  #allocation1 [shape = 'u32[144,128]{1,0:T(1,128)}', space=vmem, size = 0x12000, scoped, tag = 'internal scratch']
  #allocation2 [shape = 'f32[32,32]{1,0:T(8,128)}', space=vmem, size = 0x4000, scoped, tag = 'scratch operand']
  %s0 = inlined_call_operand.vmem [shape: bf16[32,16], index: 0, kind: input, shape index: {}]
  %s1 = inlined_call_operand.vmem [shape: bf16[16,32], index: 1, kind: input, shape index: {}]
  %s2 = inlined_call_operand.vmem [shape: bf16[32,32], index: 2, kind: output, shape index: {}]
  %s3 = sld [smem:[#allocation0]]
  $region26: #{imagegpt_forward.13} parent=0
    _
  %s5 = ssub.s32 1, %s3
  %s6 = scalar_select 0, %s5, %s3
  // Predicated region
  $region2: #{imagegpt_forward.13} parent=0 // pred_check
    _
  $region3: #{imagegpt_forward.13} parent=0 // pred_check_branch
    %8 = sbr.rel (0) target = $region5
  $region4: #{imagegpt_forward.13} parent=0 // pred_region
    _
  $region5: #{imagegpt_forward.13} parent=0 // pred_fallthru
    _
  // Predicated region
  $region6: #{imagegpt_forward.13} parent=0 // pred_check
    _
  $region7: #{imagegpt_forward.13} parent=0 // pred_check_branch
    %10 = sbr.rel (0) target = $region9
  $region8: #{imagegpt_forward.13} parent=0 // pred_region
    _
  $region9: #{imagegpt_forward.13} parent=0 // pred_fallthru
    _
  %p12 = scmp.eq.s32.totalorder 0, 0
  // Predicated region
  $region10: #{imagegpt_forward.13} parent=0 // pred_check
    %p13 = pneg %p12
  $region11: #{imagegpt_forward.13} parent=0 // pred_check_branch
    %15 = sbr.rel (%p13) target = $region13
  $region12: #{imagegpt_forward.13} parent=0 // pred_region
    %vm16 = vcmask 261120
    %17 = vst.msk [vmem:[#allocation2] sm:$0xff] %vm16, 0.0
    %18 = vst.msk [vmem:[#allocation2 + $0x8] sm:$0xff] %vm16, 0.0
    %19 = vst.msk [vmem:[#allocation2 + $0x10] sm:$0xff] %vm16, 0.0
    %20 = vst.msk [vmem:[#allocation2 + $0x18] sm:$0xff] %vm16, 0.0
  $region13: #{imagegpt_forward.13} parent=0 // pred_fallthru
    _
  %v21 = vld [vmem:[#allocation2] sm:$0xff]
  %v22 = vld [vmem:[#allocation2 + $0x8] sm:$0xff]
  %v23 = vld [vmem:[#allocation2 + $0x10] sm:$0xff]
  %v24 = vld [vmem:[#allocation2 + $0x18] sm:$0xff]
  %v25 = vld [vmem:[%s0] sm:$0xf]
  %v26 = vld [vmem:[%s0 + $0x4] sm:$0xf]
  %v27 = vld [vmem:[%s0 + $0x8] sm:$0xf]
  %v28 = vld [vmem:[%s0 + $0xc] sm:$0xf]
  %v29 = vld [vmem:[%s1] sm:$0xf]
  %v30 = vld [vmem:[%s1 + $0x4] sm:$0xf]
  %v35 = vunpack.c.l.b16 %v25
  %v36 = vunpack.c.l.b16 %v26
  %v37 = vunpack.c.l.b16 %v27
  %v38 = vunpack.c.l.b16 %v28
  %v39 = vpack.c.b16 %v36, %v35
  %v40 = vpack.c.b16 %v38, %v37
  %v43 = vunpack.c.l.b16 %v29
  %v44 = vunpack.c.l.b16 %v30
  %v45 = vpack.c.b16 %v44, %v43
  %vm47 = vcmask 130048
  %v49 = vsel %vm47, %v39, 0
  %v52 = vsel %vm47, %v40, 0
  %54 = vmatprep.subr.bf16.mxu0 0
  %55 = vmatpush1.bf16.msra.mxu0 %v45
  %56 = vmatprep.subr.bf16.mxu0 0
  %57 = vmatpush1.bf16.msra.mxu0 0
  %58 = vmatprep.subr.bf16.mxu0 0
  %59 = vmatpush1.bf16.msra.mxu0 0
  %60 = vmatprep.subr.bf16.mxu0 0
  %61 = vmatpush1.bf16.msra.mxu0 0
  %62 = vmatprep.subr.bf16.mxu0 0
  %63 = vmatpush1.bf16.msra.mxu0 0
  %64 = vmatprep.subr.bf16.mxu0 0
  %65 = vmatpush1.bf16.msra.mxu0 0
  %66 = vmatprep.subr.bf16.mxu0 0
  %67 = vmatpush1.bf16.msra.mxu0 0
  %68 = vmatprep.subr.bf16.mxu0 0
  %69 = vmatpush1.bf16.msra.mxu0 0
  %70 = vmatprep.subr.bf16.mxu0 0
  %71 = vmatpush1.bf16.msra.mxu0 0
  %72 = vmatprep.subr.bf16.mxu0 0
  %73 = vmatpush1.bf16.msra.mxu0 0
  %74 = vmatprep.subr.bf16.mxu0 0
  %75 = vmatpush1.bf16.msra.mxu0 0
  %76 = vmatprep.subr.bf16.mxu0 0
  %77 = vmatpush1.bf16.msra.mxu0 0
  %78 = vmatprep.subr.bf16.mxu0 0
  %79 = vmatpush1.bf16.msra.mxu0 0
  %80 = vmatprep.subr.bf16.mxu0 0
  %81 = vmatpush1.bf16.msra.mxu0 0
  %82 = vmatprep.subr.bf16.mxu0 0
  %83 = vmatpush1.bf16.msra.mxu0 0
  %84 = vmatprep.subr.bf16.mxu0 0
  %85 = vmatpush1.bf16.msra.mxu0 0
  %86 = vmatprep.mubr.bf16.mxu0 0
  %87 = vmatmul.mubr.bf16.gmra.mrb[0].mxu0 %v49
  %v88 = vpop.f32.mrb[0].mxu0
  %v89 = vadd.f32 0.0, %v88
  %v90 = vpop.f32.mrb[0].mxu0
  %v91 = vpop.f32.mrb[0].mxu0
  %v92 = vadd.f32 0.0, %v91
  %v93 = vpop.f32.mrb[0].mxu0
  %94 = vmatprep.mubr.bf16.mxu0 0
  %95 = vmatmul.mubr.bf16.gmra.mrb[0].mxu0 %v52
  %v96 = vpop.f32.mrb[0].mxu0
  %v97 = vadd.f32 0.0, %v96
  %v98 = vpop.f32.mrb[0].mxu0
  %v99 = vpop.f32.mrb[0].mxu0
  %v100 = vadd.f32 0.0, %v99
  %v101 = vpop.f32.mrb[0].mxu0
  %102 = vdwg.mxu0
  %v103 = vadd.f32 %v21, %v89
  %v104 = vadd.f32 %v22, %v92
  %v105 = vadd.f32 %v23, %v97
  %v106 = vadd.f32 %v24, %v100
  %vm107 = vcmask 261120
  %108 = vst.msk [vmem:[#allocation2] sm:$0xff] %vm107, %v103
  %109 = vst.msk [vmem:[#allocation2 + $0x8] sm:$0xff] %vm107, %v104
  %110 = vst.msk [vmem:[#allocation2 + $0x10] sm:$0xff] %vm107, %v105
  %111 = vst.msk [vmem:[#allocation2 + $0x18] sm:$0xff] %vm107, %v106
  // Predicated region
  $region14: #{imagegpt_forward.13} parent=0 // pred_check
    %p112 = pneg %p12
  $region15: #{imagegpt_forward.13} parent=0 // pred_check_branch
    %114 = sbr.rel (%p112) target = $region17
  $region16: #{imagegpt_forward.13} parent=0 // pred_region
    %v115 = vld [vmem:[#allocation2] sm:$0xff]
    %v116 = vld [vmem:[#allocation2 + $0x8] sm:$0xff]
    %v117 = vld [vmem:[#allocation2 + $0x10] sm:$0xff]
    %v118 = vld [vmem:[#allocation2 + $0x18] sm:$0xff]
    %v119 = vpack.c.bf16 %v116, %v115
    %v120 = vpack.c.bf16 %v118, %v117
    %v123 = vunpack.c.l.b16 %v119
    %v124 = vunpack.c.h.b16 %v119
    %v125 = vunpack.c.l.b16 %v120
    %v126 = vunpack.c.h.b16 %v120
    %v127 = vpack.c.b16 %v123, %v123
    %v128 = vpack.c.b16 %v124, %v124
    %v129 = vpack.c.b16 %v125, %v125
    %v130 = vpack.c.b16 %v126, %v126
    %vm135 = vcmask 257024
    %136 = vst.msk [vmem:[%s2] sm:$0xf] %vm135, %v127
    %137 = vst.msk [vmem:[%s2 + $0x4] sm:$0xf] %vm135, %v128
    %138 = vst.msk [vmem:[%s2 + $0x8] sm:$0xf] %vm135, %v129
    %139 = vst.msk [vmem:[%s2 + $0xc] sm:$0xf] %vm135, %v130
  $region17: #{imagegpt_forward.13} parent=0 // pred_fallthru
    _
  // Predicated region
  $region18: #{imagegpt_forward.13} parent=0 // pred_check
    _
  $region19: #{imagegpt_forward.13} parent=0 // pred_check_branch
    %141 = sbr.rel (0) target = $region21
  $region20: #{imagegpt_forward.13} parent=0 // pred_region
    _
  $region21: #{imagegpt_forward.13} parent=0 // pred_fallthru
    _
  // Predicated region
  $region22: #{imagegpt_forward.13} parent=0 // pred_check
    _
  $region23: #{imagegpt_forward.13} parent=0 // pred_check_branch
    %143 = sbr.rel (0) target = $region25
  $region24: #{imagegpt_forward.13} parent=0 // pred_region
    _
  $region25: #{imagegpt_forward.13} parent=0 // pred_fallthru
    _

// kernel: imagegpt_forward.14
$region0: #{imagegpt_forward.14}
  #allocation0 [shape = 'u32[]', space=smem, size = 0x4, offset = 0x4, fixed_abs, tag = 'smem constant byte address 0x4 - core index']
  #allocation1 [shape = 'u32[144,128]{1,0:T(1,128)}', space=vmem, size = 0x12000, scoped, tag = 'internal scratch']
  %s0 = inlined_call_operand.vmem [shape: bf16[32,32], index: 0, kind: input, shape index: {}]
  %s1 = inlined_call_operand.vmem [shape: f32[1,32], index: 1, kind: input, shape index: {}]
  %s2 = inlined_call_operand.vmem [shape: f32[1,32], index: 2, kind: input, shape index: {}]
  %s3 = inlined_call_operand.vmem [shape: bf16[32,96], index: 3, kind: input, shape index: {}]
  %s4 = inlined_call_operand.vmem [shape: f32[1,96], index: 4, kind: input, shape index: {}]
  %s5 = inlined_call_operand.vmem [shape: bf16[32,96], index: 5, kind: output, shape index: {}]
  %s6 = sld [smem:[#allocation0]]
  $region30: #{imagegpt_forward.14} parent=0
    _
  %s8 = ssub.s32 1, %s6
  %s9 = scalar_select 0, %s8, %s6
  // Predicated region
  $region2: #{imagegpt_forward.14} parent=0 // pred_check
    _
  $region3: #{imagegpt_forward.14} parent=0 // pred_check_branch
    %11 = sbr.rel (0) target = $region5
  $region4: #{imagegpt_forward.14} parent=0 // pred_region
    _
  $region5: #{imagegpt_forward.14} parent=0 // pred_fallthru
    _
  // Predicated region
  $region6: #{imagegpt_forward.14} parent=0 // pred_check
    _
  $region7: #{imagegpt_forward.14} parent=0 // pred_check_branch
    %13 = sbr.rel (0) target = $region9
  $region8: #{imagegpt_forward.14} parent=0 // pred_region
    _
  $region9: #{imagegpt_forward.14} parent=0 // pred_fallthru
    _
  // Predicated region
  $region10: #{imagegpt_forward.14} parent=0 // pred_check
    _
  $region11: #{imagegpt_forward.14} parent=0 // pred_check_branch
    %15 = sbr.rel (0) target = $region13
  $region12: #{imagegpt_forward.14} parent=0 // pred_region
    _
  $region13: #{imagegpt_forward.14} parent=0 // pred_fallthru
    _
  // Predicated region
  $region14: #{imagegpt_forward.14} parent=0 // pred_check
    _
  $region15: #{imagegpt_forward.14} parent=0 // pred_check_branch
    %17 = sbr.rel (0) target = $region17
  $region16: #{imagegpt_forward.14} parent=0 // pred_region
    _
  $region17: #{imagegpt_forward.14} parent=0 // pred_fallthru
    _
  // Predicated region
  $region18: #{imagegpt_forward.14} parent=0 // pred_check
    _
  $region19: #{imagegpt_forward.14} parent=0 // pred_check_branch
    %19 = sbr.rel (0) target = $region21
  $region20: #{imagegpt_forward.14} parent=0 // pred_region
    _
  $region21: #{imagegpt_forward.14} parent=0 // pred_fallthru
    _
  %v21 = vld [vmem:[%s0] sm:$0xf]
  %v22 = vld [vmem:[%s0 + $0x4] sm:$0xf]
  %v23 = vld [vmem:[%s0 + $0x8] sm:$0xf]
  %v24 = vld [vmem:[%s0 + $0xc] sm:$0xf]
  %v25 = vunpack.c.l.bf16 %v21
  %v26 = vunpack.c.l.bf16 %v22
  %v27 = vunpack.c.l.bf16 %v23
  %v28 = vunpack.c.l.bf16 %v24
  %vm29 = vcmask 261120
  %v30 = vsel %vm29, %v25, 0.0
  %31 = vadd.xlane.f32.xlu0 %v30
  %v32 = vpop.xlane.xlu0 %31
  %v33 = vsel %vm29, %v26, 0.0
  %34 = vadd.xlane.f32.xlu0 %v33
  %v35 = vpop.xlane.xlu0 %34
  %v36 = vsel %vm29, %v27, 0.0
  %37 = vadd.xlane.f32.xlu0 %v36
  %v38 = vpop.xlane.xlu0 %37
  %v39 = vsel %vm29, %v28, 0.0
  %40 = vadd.xlane.f32.xlu0 %v39
  %v41 = vpop.xlane.xlu0 %40
  %v42 = vrcp.pop 32.0
  %v43 = vmul.f32 %v32, %v42
  %v44 = vmul.f32 %v35, %v42
  %v45 = vmul.f32 %v38, %v42
  %v46 = vmul.f32 %v41, %v42
  %v47 = vsub.f32 %v25, %v43
  %v48 = vsub.f32 %v26, %v44
  %v49 = vsub.f32 %v27, %v45
  %v50 = vsub.f32 %v28, %v46
  %v51 = vmul.f32 %v47, %v47
  %v52 = vmul.f32 %v48, %v48
  %v53 = vmul.f32 %v49, %v49
  %v54 = vmul.f32 %v50, %v50
  %v55 = vsel %vm29, %v51, 0.0
  %56 = vadd.xlane.f32.xlu0 %v55
  %v57 = vpop.xlane.xlu0 %56
  %v58 = vsel %vm29, %v52, 0.0
  %59 = vadd.xlane.f32.xlu0 %v58
  %v60 = vpop.xlane.xlu0 %59
  %v61 = vsel %vm29, %v53, 0.0
  %62 = vadd.xlane.f32.xlu0 %v61
  %v63 = vpop.xlane.xlu0 %62
  %v64 = vsel %vm29, %v54, 0.0
  %65 = vadd.xlane.f32.xlu0 %v64
  %v66 = vpop.xlane.xlu0 %65
  %v67 = vmul.f32 %v57, %v42
  %v68 = vmul.f32 %v60, %v42
  %v69 = vmul.f32 %v63, %v42
  %v70 = vmul.f32 %v66, %v42
  %v71 = vadd.f32 %v67, 1e-05
  %v72 = vadd.f32 %v68, 1e-05
  %v73 = vadd.f32 %v69, 1e-05
  %v74 = vadd.f32 %v70, 1e-05
  %v75 = vrsqrt.pop %v71
  %v76 = vrsqrt.pop %v72
  %v77 = vrsqrt.pop %v73
  %v78 = vrsqrt.pop %v74
  %v79 = vmul.f32 %v47, %v75
  %v80 = vmul.f32 %v48, %v76
  %v81 = vmul.f32 %v49, %v77
  %v82 = vmul.f32 %v50, %v78
  %v83 = vld [vmem:[%s1] sm:$0x1]
  %v85 = vlaneseq
  %v86 = vshrl.u32 %v85, 7
  %v87 = vsub.s32 0, %v86
  %v88 = vrot.slane %v83, %v87
  %v90 = vmul.f32 %v79, %v88
  %v91 = vmul.f32 %v80, %v88
  %v92 = vmul.f32 %v81, %v88
  %v93 = vmul.f32 %v82, %v88
  %v94 = vld [vmem:[%s2] sm:$0x1]
  %v96 = vlaneseq
  %v97 = vshrl.u32 %v96, 7
  %v98 = vsub.s32 0, %v97
  %v99 = vrot.slane %v94, %v98
  %v101 = vadd.f32 %v90, %v99
  %v102 = vadd.f32 %v91, %v99
  %v103 = vadd.f32 %v92, %v99
  %v104 = vadd.f32 %v93, %v99
  %v105 = vpack.c.bf16 %v102, %v101
  %v106 = vpack.c.bf16 %v104, %v103
  %v107 = vld [vmem:[%s3] sm:$0xf]
  %v108 = vld [vmem:[%s3 + $0x4] sm:$0xf]
  %v109 = vld [vmem:[%s3 + $0x8] sm:$0xf]
  %v110 = vld [vmem:[%s3 + $0xc] sm:$0xf]
  %v111 = vld [vmem:[%s4] sm:$0x1]
  %v113 = vlaneseq
  %v114 = vshrl.u32 %v113, 7
  %v115 = vsub.s32 0, %v114
  %v116 = vrot.slane %v111, %v115
  %v122 = vunpack.c.l.b16 %v107
  %v123 = vunpack.c.l.b16 %v108
  %v124 = vunpack.c.l.b16 %v109
  %v125 = vunpack.c.l.b16 %v110
  %v126 = vpack.c.b16 %v123, %v122
  %v127 = vpack.c.b16 %v125, %v124
  %v131 = vsel %vm29, %v105, 0
  %v134 = vsel %vm29, %v106, 0
  %136 = vmatprep.subr.bf16.mxu0 0
  %137 = vmatpush1.bf16.msra.mxu0 %v126
  %138 = vmatprep.subr.bf16.mxu0 0
  %139 = vmatpush1.bf16.msra.mxu0 %v127
  %140 = vmatprep.subr.bf16.mxu0 0
  %141 = vmatpush1.bf16.msra.mxu0 0
  %142 = vmatprep.subr.bf16.mxu0 0
  %143 = vmatpush1.bf16.msra.mxu0 0
  %144 = vmatprep.subr.bf16.mxu0 0
  %145 = vmatpush1.bf16.msra.mxu0 0
  %146 = vmatprep.subr.bf16.mxu0 0
  %147 = vmatpush1.bf16.msra.mxu0 0
  %148 = vmatprep.subr.bf16.mxu0 0
  %149 = vmatpush1.bf16.msra.mxu0 0
  %150 = vmatprep.subr.bf16.mxu0 0
  %151 = vmatpush1.bf16.msra.mxu0 0
  %152 = vmatprep.subr.bf16.mxu0 0
  %153 = vmatpush1.bf16.msra.mxu0 0
  %154 = vmatprep.subr.bf16.mxu0 0
  %155 = vmatpush1.bf16.msra.mxu0 0
  %156 = vmatprep.subr.bf16.mxu0 0
  %157 = vmatpush1.bf16.msra.mxu0 0
  %158 = vmatprep.subr.bf16.mxu0 0
  %159 = vmatpush1.bf16.msra.mxu0 0
  %160 = vmatprep.subr.bf16.mxu0 0
  %161 = vmatpush1.bf16.msra.mxu0 0
  %162 = vmatprep.subr.bf16.mxu0 0
  %163 = vmatpush1.bf16.msra.mxu0 0
  %164 = vmatprep.subr.bf16.mxu0 0
  %165 = vmatpush1.bf16.msra.mxu0 0
  %166 = vmatprep.subr.bf16.mxu0 0
  %167 = vmatpush1.bf16.msra.mxu0 0
  %168 = vmatprep.mubr.bf16.mxu0 0
  %169 = vmatmul.mubr.bf16.gmra.mrb[0].mxu0 %v131
  %v170 = vpop.f32.mrb[0].mxu0
  %v171 = vadd.f32 %v116, %v170
  %v172 = vpop.f32.mrb[0].mxu0
  %v173 = vpop.f32.mrb[0].mxu0
  %v174 = vadd.f32 %v116, %v173
  %v175 = vpop.f32.mrb[0].mxu0
  %176 = vmatprep.mubr.bf16.mxu0 0
  %177 = vmatmul.mubr.bf16.gmra.mrb[0].mxu0 %v134
  %v178 = vpop.f32.mrb[0].mxu0
  %v179 = vadd.f32 %v116, %v178
  %v180 = vpop.f32.mrb[0].mxu0
  %v181 = vpop.f32.mrb[0].mxu0
  %v182 = vadd.f32 %v116, %v181
  %v183 = vpop.f32.mrb[0].mxu0
  %184 = vdwg.mxu0
  %v185 = vpack.c.bf16 %v174, %v171
  %v186 = vpack.c.bf16 %v182, %v179
  %v189 = vunpack.c.l.b16 %v185
  %v190 = vunpack.c.h.b16 %v185
  %v191 = vunpack.c.l.b16 %v186
  %v192 = vunpack.c.h.b16 %v186
  %v193 = vpack.c.b16 %v189, %v189
  %v194 = vpack.c.b16 %v190, %v190
  %v195 = vpack.c.b16 %v191, %v191
  %v196 = vpack.c.b16 %v192, %v192
  %vm201 = vcmask 781312
  %202 = vst.msk [vmem:[%s5] sm:$0xf] %vm201, %v193
  %203 = vst.msk [vmem:[%s5 + $0x4] sm:$0xf] %vm201, %v194
  %204 = vst.msk [vmem:[%s5 + $0x8] sm:$0xf] %vm201, %v195
  %205 = vst.msk [vmem:[%s5 + $0xc] sm:$0xf] %vm201, %v196
  // Predicated region
  $region22: #{imagegpt_forward.14} parent=0 // pred_check
    _
  $region23: #{imagegpt_forward.14} parent=0 // pred_check_branch
    %207 = sbr.rel (0) target = $region25
  $region24: #{imagegpt_forward.14} parent=0 // pred_region
    _
  $region25: #{imagegpt_forward.14} parent=0 // pred_fallthru
    _
  // Predicated region
  $region26: #{imagegpt_forward.14} parent=0 // pred_check
    _
  $region27: #{imagegpt_forward.14} parent=0 // pred_check_branch
    %209 = sbr.rel (0) target = $region29
  $region28: #{imagegpt_forward.14} parent=0 // pred_region
    _
  $region29: #{imagegpt_forward.14} parent=0 // pred_fallthru
    _

// kernel: imagegpt_forward.15
$region0: #{imagegpt_forward.15}
  #allocation0 [shape = 'u32[]', space=smem, size = 0x4, offset = 0x4, fixed_abs, tag = 'smem constant byte address 0x4 - core index']
  #allocation1 [shape = 'u32[144,128]{1,0:T(1,128)}', space=vmem, size = 0x12000, scoped, tag = 'internal scratch']
  #allocation2 [shape = 'f32[16,1]{1,0:T(8,128)}', space=vmem, size = 0x2000, scoped, tag = 'scratch operand']
  #allocation3 [shape = 'f32[16,1]{1,0:T(8,128)}', space=vmem, size = 0x2000, scoped, tag = 'scratch operand']
  #allocation4 [shape = 'f32[16,16]{1,0:T(8,128)}', space=vmem, size = 0x2000, scoped, tag = 'scratch operand']
  %s0 = inlined_call_operand.vmem [shape: bf16[4,16,16], index: 0, kind: input, shape index: {}]
  %s1 = inlined_call_operand.vmem [shape: bf16[4,16,16], index: 1, kind: input, shape index: {}]
  %s2 = inlined_call_operand.vmem [shape: bf16[4,16,16], index: 2, kind: input, shape index: {}]
  %s3 = inlined_call_operand.vmem [shape: bf16[4,16,16], index: 3, kind: output, shape index: {}]
  %s4 = sld [smem:[#allocation0]]
  $region57: #{imagegpt_forward.15} parent=0
    _
  %s6 = ssub.s32 1, %s4
  %s7 = scalar_select 0, %s6, %s4
  loop: start=0, step=1, limit=6
  $region2: #{imagegpt_forward.15} parent=0 // loop_pre_header
    _
  $region3: #{imagegpt_forward.15} parent=0 // loop_header
    %s9 = sphi 0, %s13
    %p10 = scmp.ge.s32.totalorder %s9, 6
    %s16 = sphi 0, %s35
    %s17 = sphi 0, %s31
    %s18 = sphi 0, %s27
    %s19 = sphi 0, %s16
    %s20 = sphi 0, %s17
    %s21 = sphi 0, %s18
    %s22 = sphi 0, %s19
    %s23 = sphi 0, %s20
    %s24 = sphi 0, %s21
    %s40 = sphi 0, %s42
    %s43 = sphi 0, %s40
    %s44 = sphi 0, %s43
    %s60 = sphi 0, %s44
    %s68 = sphi 0, %s70
    %s71 = sphi 0, %s68
    %s72 = sphi 0, %s71
    %s88 = sphi 0, %s72
    %s96 = sphi 0, %s98
    %s99 = sphi 0, %s96
    %s100 = sphi 0, %s99
    %s116 = sphi 0, %s100
    %s124 = sphi 0, %s126
    %s127 = sphi 0, %s124
    %s128 = sphi 0, %s127
    %s144 = sphi 0, %s128
  $region4: #{imagegpt_forward.15} parent=0 // loop_header_branch
    %12 = sbr.rel (%p10) target = $region8
  $region5: #{imagegpt_forward.15} parent=0 // loop_body
    %s14 = ssub.s32 %s9, 1
    %s15 = ssub.s32 %s9, 2
    %s25 = sadd.s32 1, %s18
    %p26 = scmp.ge.s32.totalorder %s25, 1
    %s27 = scalar_select %p26, 0, %s25
    %s28 = sadd.s32 1, %s17
    %s29 = scalar_select %p26, %s28, %s17
    %p30 = scmp.ge.s32.totalorder %s29, 1
    %s31 = scalar_select %p30, 0, %s29
    %s32 = sadd.s32 1, %s16
    %s33 = scalar_select %p30, %s32, %s16
    %p34 = scmp.ge.s32.totalorder %s33, 4
    %s35 = scalar_select %p34, 0, %s33
    %s36 = ssub.s32 %s16, %s35
    %s37 = ssub.s32 %s17, %s31
    %s38 = sor.u32 %s36, %s37
    %p39 = scmp.eq.s32.totalorder %s38, 0
    %s41 = sadd.s32 %s40, 1
    %s42 = scalar_select %p39, %s40, %s41
    %p45 = pneg %p39
    %p46 = scmp.eq.s32.totalorder %s9, 3
    %p47 = por %p45, %p46
    %p48 = scmp.ne.s32.totalorder %s40, %s43
    %p49 = scmp.eq.s32.totalorder %s9, 0
    %p50 = por %p48, %p49
    %p51 = scmp.ne.s32.totalorder %s40, %s43
    %p52 = scmp.eq.s32.totalorder %s14, 3
    %p53 = por %p51, %p52
    %p54 = scmp.ne.s32.totalorder %s43, %s44
    %p55 = scmp.eq.s32.totalorder %s14, 0
    %p56 = por %p54, %p55
    %p57 = scmp.ne.s32.totalorder %s43, %s44
    %p58 = scmp.eq.s32.totalorder %s15, 3
    %p59 = por %p57, %p58
    %p61 = scmp.ne.s32.totalorder %s44, %s60
    %p62 = scmp.eq.s32.totalorder %s15, 0
    %p63 = por %p61, %p62
    %s64 = ssub.s32 %s16, %s35
    %s65 = ssub.s32 %s18, %s27
    %s66 = sor.u32 %s64, %s65
    %p67 = scmp.eq.s32.totalorder %s66, 0
    %s69 = sadd.s32 %s68, 1
    %s70 = scalar_select %p67, %s68, %s69
    %p73 = pneg %p67
    %p74 = scmp.eq.s32.totalorder %s9, 3
    %p75 = por %p73, %p74
    %p76 = scmp.ne.s32.totalorder %s68, %s71
    %p77 = scmp.eq.s32.totalorder %s9, 0
    %p78 = por %p76, %p77
    %p79 = scmp.ne.s32.totalorder %s68, %s71
    %p80 = scmp.eq.s32.totalorder %s14, 3
    %p81 = por %p79, %p80
    %p82 = scmp.ne.s32.totalorder %s71, %s72
    %p83 = scmp.eq.s32.totalorder %s14, 0
    %p84 = por %p82, %p83
    %p85 = scmp.ne.s32.totalorder %s71, %s72
    %p86 = scmp.eq.s32.totalorder %s15, 3
    %p87 = por %p85, %p86
    %p89 = scmp.ne.s32.totalorder %s72, %s88
    %p90 = scmp.eq.s32.totalorder %s15, 0
    %p91 = por %p89, %p90
    %s92 = ssub.s32 %s16, %s35
    %s93 = ssub.s32 %s18, %s27
    %s94 = sor.u32 %s92, %s93
    %p95 = scmp.eq.s32.totalorder %s94, 0
    %s97 = sadd.s32 %s96, 1
    %s98 = scalar_select %p95, %s96, %s97
    %p101 = pneg %p95
    %p102 = scmp.eq.s32.totalorder %s9, 3
    %p103 = por %p101, %p102
    %p104 = scmp.ne.s32.totalorder %s96, %s99
    %p105 = scmp.eq.s32.totalorder %s9, 0
    %p106 = por %p104, %p105
    %p107 = scmp.ne.s32.totalorder %s96, %s99
    %p108 = scmp.eq.s32.totalorder %s14, 3
    %p109 = por %p107, %p108
    %p110 = scmp.ne.s32.totalorder %s99, %s100
    %p111 = scmp.eq.s32.totalorder %s14, 0
    %p112 = por %p110, %p111
    %p113 = scmp.ne.s32.totalorder %s99, %s100
    %p114 = scmp.eq.s32.totalorder %s15, 3
    %p115 = por %p113, %p114
    %p117 = scmp.ne.s32.totalorder %s100, %s116
    %p118 = scmp.eq.s32.totalorder %s15, 0
    %p119 = por %p117, %p118
    %s120 = ssub.s32 %s16, %s35
    %s121 = ssub.s32 %s17, %s31
    %s122 = sor.u32 %s120, %s121
    %p123 = scmp.eq.s32.totalorder %s122, 0
    %s125 = sadd.s32 %s124, 1
    %s126 = scalar_select %p123, %s124, %s125
    %p129 = pneg %p123
    %p130 = scmp.eq.s32.totalorder %s9, 3
    %p131 = por %p129, %p130
    %p132 = scmp.ne.s32.totalorder %s124, %s127
    %p133 = scmp.eq.s32.totalorder %s9, 0
    %p134 = por %p132, %p133
    %p135 = scmp.ne.s32.totalorder %s124, %s127
    %p136 = scmp.eq.s32.totalorder %s14, 3
    %p137 = por %p135, %p136
    %p138 = scmp.ne.s32.totalorder %s127, %s128
    %p139 = scmp.eq.s32.totalorder %s14, 0
    %p140 = por %p138, %p139
    %p141 = scmp.ne.s32.totalorder %s127, %s128
    %p142 = scmp.eq.s32.totalorder %s15, 3
    %p143 = por %p141, %p142
    %p145 = scmp.ne.s32.totalorder %s128, %s144
    %p146 = scmp.eq.s32.totalorder %s15, 0
    %p147 = por %p145, %p146
    %p148 = scmp.le.s32.totalorder 1, %s9
    %p149 = scmp.lt.s32.totalorder %s9, 5
    %p150 = pnand %p148, %p149
    %p151 = pneg %p150
    // Predicated region
    $region9: #{imagegpt_forward.15} parent=5 // pred_check
      _
    $region10: #{imagegpt_forward.15} parent=5 // pred_check_branch
      %153 = sbr.rel (%p150) target = $region12
    $region11: #{imagegpt_forward.15} parent=5 // pred_region
      %s154 = ssub.s32 %s9, 1
    $region12: #{imagegpt_forward.15} parent=5 // pred_fallthru
      _
    %p155 = scmp.lt.s32.totalorder %s9, 4
    // Predicated region
    $region13: #{imagegpt_forward.15} parent=5 // pred_check
      %p156 = pneg %p155
    $region14: #{imagegpt_forward.15} parent=5 // pred_check_branch
      %158 = sbr.rel (%p156) target = $region16
    $region15: #{imagegpt_forward.15} parent=5 // pred_region
      // Predicated region
      $region17: #{imagegpt_forward.15} parent=15 // pred_check
        %p159 = pneg %p50
      $region18: #{imagegpt_forward.15} parent=15 // pred_check_branch
        %161 = sbr.rel (%p159) target = $region20
      $region19: #{imagegpt_forward.15} parent=15 // pred_region
        %s162 = smul.u32 2, %s17
        %p163 = scmp.lt.s32.totalorder %s16, 3
        %s164 = scalar_select %p163, %s16, 3
        %p165 = scmp.lt.s32.totalorder %s162, 1
        %s166 = scalar_select %p165, %s162, 1
        %s167 = smul.addr %s164, 2
        %s168 = sadd.s32 %s166, %s167
        %s169 = smul.addr %s168, 4
        %s170 = scalar_lea.vmem %s0, %s169
        %s171 = smul.u32 2, %s17
      $region20: #{imagegpt_forward.15} parent=15 // pred_fallthru
        _
      // Predicated region
      $region21: #{imagegpt_forward.15} parent=15 // pred_check
        %p172 = pneg %p78
      $region22: #{imagegpt_forward.15} parent=15 // pred_check_branch
        %174 = sbr.rel (%p172) target = $region24
      $region23: #{imagegpt_forward.15} parent=15 // pred_region
        %s175 = smul.u32 2, %s18
        %p176 = scmp.lt.s32.totalorder %s16, 3
        %s177 = scalar_select %p176, %s16, 3
        %p178 = scmp.lt.s32.totalorder %s175, 1
        %s179 = scalar_select %p178, %s175, 1
        %s180 = smul.addr %s177, 2
        %s181 = sadd.s32 %s179, %s180
        %s182 = smul.addr %s181, 4
        %s183 = scalar_lea.vmem %s1, %s182
        %s184 = smul.u32 2, %s18
      $region24: #{imagegpt_forward.15} parent=15 // pred_fallthru
        _
      // Predicated region
      $region25: #{imagegpt_forward.15} parent=15 // pred_check
        %p185 = pneg %p106
      $region26: #{imagegpt_forward.15} parent=15 // pred_check_branch
        %187 = sbr.rel (%p185) target = $region28
      $region27: #{imagegpt_forward.15} parent=15 // pred_region
        %s188 = smul.u32 2, %s18
        %p189 = scmp.lt.s32.totalorder %s16, 3
        %s190 = scalar_select %p189, %s16, 3
        %p191 = scmp.lt.s32.totalorder %s188, 1
        %s192 = scalar_select %p191, %s188, 1
        %s193 = smul.addr %s190, 2
        %s194 = sadd.s32 %s192, %s193
        %s195 = smul.addr %s194, 4
        %s196 = scalar_lea.vmem %s2, %s195
        %s197 = smul.u32 2, %s18
      $region28: #{imagegpt_forward.15} parent=15 // pred_fallthru
        _
    $region16: #{imagegpt_forward.15} parent=5 // pred_fallthru
      _
    %p198 = scmp.le.s32.totalorder 1, %s9
    %p199 = scmp.lt.s32.totalorder %s9, 5
    %p200 = pnand %p198, %p199
    %p201 = pneg %p200
    // Predicated region
    $region29: #{imagegpt_forward.15} parent=5 // pred_check
      _
    $region30: #{imagegpt_forward.15} parent=5 // pred_check_branch
      %203 = sbr.rel (%p200) target = $region32
    $region31: #{imagegpt_forward.15} parent=5 // pred_region
      %s204 = ssub.s32 %s9, 1
      %s205 = smul.u32 2, %s20
      %p206 = scmp.lt.s32.totalorder %s19, 3
      %s207 = scalar_select %p206, %s19, 3
      %p208 = scmp.lt.s32.totalorder %s205, 1
      %s209 = scalar_select %p208, %s205, 1
      %s210 = smul.addr %s207, 2
      %s211 = sadd.s32 %s209, %s210
      %s212 = smul.addr %s211, 4
      %s213 = scalar_lea.vmem %s0, %s212
      %p214 = pneg %p56
      %p215 = pneg %p53
      %s216 = smul.u32 2, %s21
      %p217 = scmp.lt.s32.totalorder %s19, 3
      %s218 = scalar_select %p217, %s19, 3
      %p219 = scmp.lt.s32.totalorder %s216, 1
      %s220 = scalar_select %p219, %s216, 1
      %s221 = smul.addr %s218, 2
      %s222 = sadd.s32 %s220, %s221
      %s223 = smul.addr %s222, 4
      %s224 = scalar_lea.vmem %s1, %s223
      %p225 = pneg %p84
      %p226 = pneg %p81
      %s227 = smul.u32 2, %s21
      %p228 = scmp.lt.s32.totalorder %s19, 3
      %s229 = scalar_select %p228, %s19, 3
      %p230 = scmp.lt.s32.totalorder %s227, 1
      %s231 = scalar_select %p230, %s227, 1
      %s232 = smul.addr %s229, 2
      %s233 = sadd.s32 %s231, %s232
      %s234 = smul.addr %s233, 4
      %s235 = scalar_lea.vmem %s2, %s234
      %p236 = pneg %p112
      %p237 = pneg %p109
      %p238 = pneg %p140
      %p239 = pneg %p137
      %s240 = smul.u32 2, %s20
      %p241 = scmp.lt.s32.totalorder %s19, 3
      %s242 = scalar_select %p241, %s19, 3
      %p243 = scmp.lt.s32.totalorder %s240, 1
      %s244 = scalar_select %p243, %s240, 1
      %s245 = smul.addr %s242, 2
      %s246 = sadd.s32 %s244, %s245
      %s247 = smul.addr %s246, 4
      %s248 = scalar_lea.vmem %s3, %s247
      %s249 = smul.u32 2, %s20
      %p250 = scmp.lt.s32.totalorder %s19, 3
      %s251 = scalar_select %p250, %s19, 3
      %p252 = scmp.lt.s32.totalorder %s249, 1
      %s253 = scalar_select %p252, %s249, 1
      %s254 = smul.addr %s251, 2
      %s255 = sadd.s32 %s253, %s254
      %s256 = smul.addr %s255, 4
      %s257 = scalar_lea.vmem %s0, %s256
      %s258 = smul.u32 2, %s20
      %s259 = smul.u32 2, %s21
      %p260 = scmp.lt.s32.totalorder %s19, 3
      %s261 = scalar_select %p260, %s19, 3
      %p262 = scmp.lt.s32.totalorder %s259, 1
      %s263 = scalar_select %p262, %s259, 1
      %s264 = smul.addr %s261, 2
      %s265 = sadd.s32 %s263, %s264
      %s266 = smul.addr %s265, 4
      %s267 = scalar_lea.vmem %s1, %s266
      %s268 = smul.u32 2, %s21
      %s269 = smul.u32 2, %s21
      %p270 = scmp.lt.s32.totalorder %s19, 3
      %s271 = scalar_select %p270, %s19, 3
      %p272 = scmp.lt.s32.totalorder %s269, 1
      %s273 = scalar_select %p272, %s269, 1
      %s274 = smul.addr %s271, 2
      %s275 = sadd.s32 %s273, %s274
      %s276 = smul.addr %s275, 4
      %s277 = scalar_lea.vmem %s2, %s276
      %s278 = smul.u32 2, %s21
      %s279 = smul.u32 2, %s20
      %p280 = scmp.lt.s32.totalorder %s19, 3
      %s281 = scalar_select %p280, %s19, 3
      %p282 = scmp.lt.s32.totalorder %s279, 1
      %s283 = scalar_select %p282, %s279, 1
      %s284 = smul.addr %s281, 2
      %s285 = sadd.s32 %s283, %s284
      %s286 = smul.addr %s285, 4
      %s287 = scalar_lea.vmem %s3, %s286
      %s288 = smul.u32 2, %s20
      %p290 = scmp.eq.s32.totalorder %s21, 0
      // Predicated region
      $region33: #{imagegpt_forward.15} parent=31 // pred_check
        %p291 = pneg %p290
      $region34: #{imagegpt_forward.15} parent=31 // pred_check_branch
        %293 = sbr.rel (%p291) target = $region36
      $region35: #{imagegpt_forward.15} parent=31 // pred_region
        %vm294 = vcmask 7168
        %295 = vst.msk [vmem:[#allocation2] sm:$0xff] %vm294, -inf
        %296 = vst.msk [vmem:[#allocation2 + $0x8] sm:$0xff] %vm294, -inf
        %297 = vst.msk [vmem:[#allocation3] sm:$0xff] %vm294, 0.0
        %298 = vst.msk [vmem:[#allocation3 + $0x8] sm:$0xff] %vm294, 0.0
        %vm299 = vcmask 130048
        %300 = vst.msk [vmem:[#allocation4] sm:$0xff] %vm299, 0.0
        %301 = vst.msk [vmem:[#allocation4 + $0x8] sm:$0xff] %vm299, 0.0
      $region36: #{imagegpt_forward.15} parent=31 // pred_fallthru
        _
      %s302 = smul.u32 %s21, 16
      %s303 = smul.u32 %s20, 16
      %s304 = sadd.s32 %s303, 15
      %p305 = scmp.le.s32.totalorder %s302, %s304
      // Predicated region
      $region37: #{imagegpt_forward.15} parent=31 // pred_check
        %p306 = pneg %p305
      $region38: #{imagegpt_forward.15} parent=31 // pred_check_branch
        %308 = sbr.rel (%p306) target = $region40
      $region39: #{imagegpt_forward.15} parent=31 // pred_region
        %v309 = vld [vmem:[%s257] sm:$0xf]
        %v310 = vld [vmem:[%s257 + $0x4] sm:$0xf]
        %v311 = vld [vmem:[%s267] sm:$0xf]
        %v312 = vld [vmem:[%s267 + $0x4] sm:$0xf]
        %v313 = vld [vmem:[%s277] sm:$0xf]
        %v314 = vld [vmem:[%s277 + $0x4] sm:$0xf]
        %v317 = vunpack.c.l.b16 %v309
        %v318 = vunpack.c.l.b16 %v310
        %v319 = vpack.c.b16 %v318, %v317
        %v322 = vunpack.c.l.b16 %v311
        %v323 = vunpack.c.l.b16 %v312
        %v324 = vpack.c.b16 %v323, %v322
        %vm325 = vcmask 130048
        %v327 = vsel %vm325, %v319, 0
        %v330 = vsel %vm325, %v324, 0
        %332 = vmatprep.subr.bf16.mxu0 0
        %333 = vmatpush1.bf16.xpose.msra.mxu0 %v330
        %334 = vmatprep.subr.bf16.mxu0 0
        %335 = vmatpush1.bf16.xpose.msra.mxu0 0
        %336 = vmatprep.subr.bf16.mxu0 0
        %337 = vmatpush1.bf16.xpose.msra.mxu0 0
        %338 = vmatprep.subr.bf16.mxu0 0
        %339 = vmatpush1.bf16.xpose.msra.mxu0 0
        %340 = vmatprep.subr.bf16.mxu0 0
        %341 = vmatpush1.bf16.xpose.msra.mxu0 0
        %342 = vmatprep.subr.bf16.mxu0 0
        %343 = vmatpush1.bf16.xpose.msra.mxu0 0
        %344 = vmatprep.subr.bf16.mxu0 0
        %345 = vmatpush1.bf16.xpose.msra.mxu0 0
        %346 = vmatprep.subr.bf16.mxu0 0
        %347 = vmatpush1.bf16.xpose.msra.mxu0 0
        %348 = vmatprep.subr.bf16.mxu0 0
        %349 = vmatpush1.bf16.xpose.msra.mxu0 0
        %350 = vmatprep.subr.bf16.mxu0 0
        %351 = vmatpush1.bf16.xpose.msra.mxu0 0
        %352 = vmatprep.subr.bf16.mxu0 0
        %353 = vmatpush1.bf16.xpose.msra.mxu0 0
        %354 = vmatprep.subr.bf16.mxu0 0
        %355 = vmatpush1.bf16.xpose.msra.mxu0 0
        %356 = vmatprep.subr.bf16.mxu0 0
        %357 = vmatpush1.bf16.xpose.msra.mxu0 0
        %358 = vmatprep.subr.bf16.mxu0 0
        %359 = vmatpush1.bf16.xpose.msra.mxu0 0
        %360 = vmatprep.subr.bf16.mxu0 0
        %361 = vmatpush1.bf16.xpose.msra.mxu0 0
        %362 = vmatprep.subr.bf16.mxu0 0
        %363 = vmatpush1.bf16.xpose.msra.mxu0 0
        %364 = vmatprep.mubr.bf16.mxu0 0
        %365 = vmatmul.mubr.bf16.gmra.mrb[0].mxu0 %v327
        %v366 = vpop.f32.mrb[0].mxu0
        %v367 = vadd.f32 0.0, %v366
        %v368 = vpop.f32.mrb[0].mxu0
        %v369 = vpop.f32.mrb[0].mxu0
        %v370 = vadd.f32 0.0, %v369
        %v371 = vpop.f32.mrb[0].mxu0
        %372 = vdwg.mxu0
        %v373 = vmul.f32 %v367, 0.25
        %v374 = vmul.f32 %v370, 0.25
        %v375 = vlaneseq
        %v376 = vshrl.u32 %v375, 7
        %v377 = vadd.s32 %v376, 8
        %v378 = vstv %s303
        %v379 = vadd.s32 %v378, %v376
        %v380 = vadd.s32 %v378, %v377
        %v381 = vlaneseq
        %v382 = vand.u32 %v381, 127
        %v383 = vstv %s302
        %v384 = vadd.s32 %v383, %v382
        %vm385 = vcmp.le.s32.totalorder %v384, %v379
        %vm386 = vcmp.le.s32.totalorder %v384, %v380
        %v387 = vsel %vm385, %v373, -1e+30
        %v388 = vsel %vm386, %v374, -1e+30
        %v389 = vld [vmem:[#allocation2] sm:$0xff]
        %v390 = vld [vmem:[#allocation2 + $0x8] sm:$0xff]
        %v391 = vsel %vm325, %v387, -inf
        %392 = vmax.xlane.f32.xlu0 %v391
        %v393 = vpop.xlane.xlu0 %392
        %v394 = vsel %vm325, %v388, -inf
        %395 = vmax.xlane.f32.xlu0 %v394
        %v396 = vpop.xlane.xlu0 %395
        %v397 = vmax.f32 %v389, %v393
        %v398 = vmax.f32 %v390, %v396
        %v399 = vsub.f32 %v389, %v397
        %v400 = vsub.f32 %v390, %v398
        %v401 = vmul.f32 %v399, 1.442695
        %v402 = vpow.pop %v401
        %v403 = vmul.f32 %v400, 1.442695
        %v404 = vpow.pop %v403
        %406 = vset.pattern.permute.xlu0 0
        %407 = vperm.xlu0 %406, %v397
        %v408 = vpop.permute.xlu0 %407
        %411 = vset.pattern.permute.xlu0 0
        %412 = vperm.xlu0 %411, %v398
        %v413 = vpop.permute.xlu0 %412
        %v415 = vsub.f32 %v387, %v408
        %v416 = vsub.f32 %v388, %v413
        %v417 = vmul.f32 %v415, 1.442695
        %v418 = vpow.pop %v417
        %v419 = vmul.f32 %v416, 1.442695
        %v420 = vpow.pop %v419
        %v421 = vld [vmem:[#allocation3] sm:$0xff]
        %v422 = vld [vmem:[#allocation3 + $0x8] sm:$0xff]
        %v423 = vmul.f32 %v421, %v402
        %v424 = vmul.f32 %v422, %v404
        %v425 = vsel %vm325, %v418, 0.0
        %426 = vadd.xlane.f32.xlu0 %v425
        %v427 = vpop.xlane.xlu0 %426
        %v428 = vsel %vm325, %v420, 0.0
        %429 = vadd.xlane.f32.xlu0 %v428
        %v430 = vpop.xlane.xlu0 %429
        %v431 = vadd.f32 %v423, %v427
        %v432 = vadd.f32 %v424, %v430
        %vm433 = vcmask 7168
        %434 = vst.msk [vmem:[#allocation3] sm:$0xff] %vm433, %v431
        %435 = vst.msk [vmem:[#allocation3 + $0x8] sm:$0xff] %vm433, %v432
        %v436 = vld [vmem:[#allocation4] sm:$0xff]
        %v437 = vld [vmem:[#allocation4 + $0x8] sm:$0xff]
        %439 = vset.pattern.permute.xlu0 0
        %440 = vperm.xlu0 %439, %v402
        %v441 = vpop.permute.xlu0 %440
        %444 = vset.pattern.permute.xlu0 0
        %445 = vperm.xlu0 %444, %v404
        %v446 = vpop.permute.xlu0 %445
        %v448 = vmul.f32 %v436, %v441
        %v449 = vmul.f32 %v437, %v446
        %v450 = vpack.c.bf16 %v420, %v418
        %v453 = vunpack.c.l.b16 %v313
        %v454 = vunpack.c.l.b16 %v314
        %v455 = vpack.c.b16 %v454, %v453
        %v458 = vsel %vm325, %v450, 0
        %460 = vmatprep.subr.bf16.mxu0 0
        %461 = vmatpush1.bf16.msra.mxu0 %v455
        %462 = vmatprep.subr.bf16.mxu0 0
        %463 = vmatpush1.bf16.msra.mxu0 0
        %464 = vmatprep.subr.bf16.mxu0 0
        %465 = vmatpush1.bf16.msra.mxu0 0
        %466 = vmatprep.subr.bf16.mxu0 0
        %467 = vmatpush1.bf16.msra.mxu0 0
        %468 = vmatprep.subr.bf16.mxu0 0
        %469 = vmatpush1.bf16.msra.mxu0 0
        %470 = vmatprep.subr.bf16.mxu0 0
        %471 = vmatpush1.bf16.msra.mxu0 0
        %472 = vmatprep.subr.bf16.mxu0 0
        %473 = vmatpush1.bf16.msra.mxu0 0
        %474 = vmatprep.subr.bf16.mxu0 0
        %475 = vmatpush1.bf16.msra.mxu0 0
        %476 = vmatprep.subr.bf16.mxu0 0
        %477 = vmatpush1.bf16.msra.mxu0 0
        %478 = vmatprep.subr.bf16.mxu0 0
        %479 = vmatpush1.bf16.msra.mxu0 0
        %480 = vmatprep.subr.bf16.mxu0 0
        %481 = vmatpush1.bf16.msra.mxu0 0
        %482 = vmatprep.subr.bf16.mxu0 0
        %483 = vmatpush1.bf16.msra.mxu0 0
        %484 = vmatprep.subr.bf16.mxu0 0
        %485 = vmatpush1.bf16.msra.mxu0 0
        %486 = vmatprep.subr.bf16.mxu0 0
        %487 = vmatpush1.bf16.msra.mxu0 0
        %488 = vmatprep.subr.bf16.mxu0 0
        %489 = vmatpush1.bf16.msra.mxu0 0
        %490 = vmatprep.subr.bf16.mxu0 0
        %491 = vmatpush1.bf16.msra.mxu0 0
        %492 = vmatprep.mubr.bf16.mxu0 0
        %493 = vmatmul.mubr.bf16.gmra.mrb[0].mxu0 %v458
        %v494 = vpop.f32.mrb[0].mxu0
        %v495 = vadd.f32 0.0, %v494
        %v496 = vpop.f32.mrb[0].mxu0
        %v497 = vpop.f32.mrb[0].mxu0
        %v498 = vadd.f32 0.0, %v497
        %v499 = vpop.f32.mrb[0].mxu0
        %500 = vdwg.mxu0
        %v501 = vadd.f32 %v448, %v495
        %v502 = vadd.f32 %v449, %v498
        %503 = vst.msk [vmem:[#allocation4] sm:$0xff] %vm325, %v501
        %504 = vst.msk [vmem:[#allocation4 + $0x8] sm:$0xff] %vm325, %v502
        %505 = vst.msk [vmem:[#allocation2] sm:$0xff] %vm433, %v397
        %506 = vst.msk [vmem:[#allocation2 + $0x8] sm:$0xff] %vm433, %v398
      $region40: #{imagegpt_forward.15} parent=31 // pred_fallthru
        _
      // Predicated region
      $region41: #{imagegpt_forward.15} parent=31 // pred_check
        %p507 = pneg %p290
      $region42: #{imagegpt_forward.15} parent=31 // pred_check_branch
        %509 = sbr.rel (%p507) target = $region44
      $region43: #{imagegpt_forward.15} parent=31 // pred_region
        %v510 = vld [vmem:[#allocation3] sm:$0xff]
        %v511 = vld [vmem:[#allocation3 + $0x8] sm:$0xff]
        %v512 = vrcp.pop %v510
        %v513 = vrcp.pop %v511
        %v514 = vld [vmem:[#allocation4] sm:$0xff]
        %v515 = vld [vmem:[#allocation4 + $0x8] sm:$0xff]
        %517 = vset.pattern.permute.xlu0 0
        %518 = vperm.xlu0 %517, %v512
        %v519 = vpop.permute.xlu0 %518
        %522 = vset.pattern.permute.xlu0 0
        %523 = vperm.xlu0 %522, %v513
        %v524 = vpop.permute.xlu0 %523
        %v526 = vmul.f32 %v514, %v519
        %v527 = vmul.f32 %v515, %v524
        %v528 = vpack.c.bf16 %v527, %v526
        %v530 = vunpack.c.l.b16 %v528
        %v531 = vunpack.c.h.b16 %v528
        %v532 = vpack.c.b16 %v530, %v530
        %v533 = vpack.c.b16 %v531, %v531
        %vm536 = vcmask 125952
        %537 = vst.msk [vmem:[%s287] sm:$0xf] %vm536, %v532
        %538 = vst.msk [vmem:[%s287 + $0x4] sm:$0xf] %vm536, %v533
      $region44: #{imagegpt_forward.15} parent=31 // pred_fallthru
        _
      %s539 = smul.u32 2, %s20
      %p540 = scmp.lt.s32.totalorder %s19, 3
      %s541 = scalar_select %p540, %s19, 3
      %p542 = scmp.lt.s32.totalorder %s539, 1
      %s543 = scalar_select %p542, %s539, 1
      %s544 = smul.addr %s541, 2
      %s545 = sadd.s32 %s543, %s544
      %s546 = smul.addr %s545, 4
      %s547 = scalar_lea.vmem %s3, %s546
      // Predicated region
      $region45: #{imagegpt_forward.15} parent=31 // pred_check
        %p548 = pneg %p137
      $region46: #{imagegpt_forward.15} parent=31 // pred_check_branch
        %550 = sbr.rel (%p548) target = $region48
      $region47: #{imagegpt_forward.15} parent=31 // pred_region
        %s551 = smul.u32 2, %s20
      $region48: #{imagegpt_forward.15} parent=31 // pred_fallthru
        _
    $region32: #{imagegpt_forward.15} parent=5 // pred_fallthru
      _
    %p552 = scmp.le.s32.totalorder 2, %s9
    // Predicated region
    $region49: #{imagegpt_forward.15} parent=5 // pred_check
      %p553 = pneg %p552
    $region50: #{imagegpt_forward.15} parent=5 // pred_check_branch
      %555 = sbr.rel (%p553) target = $region52
    $region51: #{imagegpt_forward.15} parent=5 // pred_region
      %s556 = ssub.s32 %s9, 2
      // Predicated region
      $region53: #{imagegpt_forward.15} parent=51 // pred_check
        %p557 = pneg %p143
      $region54: #{imagegpt_forward.15} parent=51 // pred_check_branch
        %559 = sbr.rel (%p557) target = $region56
      $region55: #{imagegpt_forward.15} parent=51 // pred_region
        %s560 = smul.u32 2, %s23
        %p561 = scmp.lt.s32.totalorder %s22, 3
        %s562 = scalar_select %p561, %s22, 3
        %p563 = scmp.lt.s32.totalorder %s560, 1
        %s564 = scalar_select %p563, %s560, 1
        %s565 = smul.addr %s562, 2
        %s566 = sadd.s32 %s564, %s565
        %s567 = smul.addr %s566, 4
        %s568 = scalar_lea.vmem %s3, %s567
      $region56: #{imagegpt_forward.15} parent=51 // pred_fallthru
        _
    $region52: #{imagegpt_forward.15} parent=5 // pred_fallthru
      _
  $region6: #{imagegpt_forward.15} parent=0 // loop_footer
    %s13 = sadd.s32 1, %s9
  $region7: #{imagegpt_forward.15} parent=0 // loop_footer_branch
    %8 = sbr.rel target = $region3
  $region8: #{imagegpt_forward.15} parent=0 // loop_exit
    _

// kernel: imagegpt_forward.16
$region0: #{imagegpt_forward.16}
  #allocation0 [shape = 'u32[]', space=smem, size = 0x4, offset = 0x4, fixed_abs, tag = 'smem constant byte address 0x4 - core index']
  #allocation1 [shape = 'u32[144,128]{1,0:T(1,128)}', space=vmem, size = 0x12000, scoped, tag = 'internal scratch']
  #allocation2 [shape = 'f32[32,32]{1,0:T(8,128)}', space=vmem, size = 0x4000, scoped, tag = 'scratch operand']
  %s0 = inlined_call_operand.vmem [shape: bf16[32,32], index: 0, kind: input, shape index: {}]
  %s1 = inlined_call_operand.vmem [shape: bf16[32,32], index: 1, kind: input, shape index: {}]
  %s2 = inlined_call_operand.vmem [shape: f32[1,32], index: 2, kind: input, shape index: {}]
  %s3 = inlined_call_operand.vmem [shape: bf16[32,32], index: 3, kind: input, shape index: {}]
  %s4 = inlined_call_operand.vmem [shape: bf16[32,32], index: 4, kind: output, shape index: {}]
  %s5 = sld [smem:[#allocation0]]
  $region34: #{imagegpt_forward.16} parent=0
    _
  %s7 = ssub.s32 1, %s5
  %s8 = scalar_select 0, %s7, %s5
  // Predicated region
  $region2: #{imagegpt_forward.16} parent=0 // pred_check
    _
  $region3: #{imagegpt_forward.16} parent=0 // pred_check_branch
    %10 = sbr.rel (0) target = $region5
  $region4: #{imagegpt_forward.16} parent=0 // pred_region
    _
  $region5: #{imagegpt_forward.16} parent=0 // pred_fallthru
    _
  // Predicated region
  $region6: #{imagegpt_forward.16} parent=0 // pred_check
    _
  $region7: #{imagegpt_forward.16} parent=0 // pred_check_branch
    %12 = sbr.rel (0) target = $region9
  $region8: #{imagegpt_forward.16} parent=0 // pred_region
    _
  $region9: #{imagegpt_forward.16} parent=0 // pred_fallthru
    _
  // Predicated region
  $region10: #{imagegpt_forward.16} parent=0 // pred_check
    _
  $region11: #{imagegpt_forward.16} parent=0 // pred_check_branch
    %14 = sbr.rel (0) target = $region13
  $region12: #{imagegpt_forward.16} parent=0 // pred_region
    _
  $region13: #{imagegpt_forward.16} parent=0 // pred_fallthru
    _
  // Predicated region
  $region14: #{imagegpt_forward.16} parent=0 // pred_check
    _
  $region15: #{imagegpt_forward.16} parent=0 // pred_check_branch
    %16 = sbr.rel (0) target = $region17
  $region16: #{imagegpt_forward.16} parent=0 // pred_region
    _
  $region17: #{imagegpt_forward.16} parent=0 // pred_fallthru
    _
  %p18 = scmp.eq.s32.totalorder 0, 0
  // Predicated region
  $region18: #{imagegpt_forward.16} parent=0 // pred_check
    %p19 = pneg %p18
  $region19: #{imagegpt_forward.16} parent=0 // pred_check_branch
    %21 = sbr.rel (%p19) target = $region21
  $region20: #{imagegpt_forward.16} parent=0 // pred_region
    %vm22 = vcmask 261120
    %23 = vst.msk [vmem:[#allocation2] sm:$0xff] %vm22, 0.0
    %24 = vst.msk [vmem:[#allocation2 + $0x8] sm:$0xff] %vm22, 0.0
    %25 = vst.msk [vmem:[#allocation2 + $0x10] sm:$0xff] %vm22, 0.0
    %26 = vst.msk [vmem:[#allocation2 + $0x18] sm:$0xff] %vm22, 0.0
  $region21: #{imagegpt_forward.16} parent=0 // pred_fallthru
    _
  %v27 = vld [vmem:[#allocation2] sm:$0xff]
  %v28 = vld [vmem:[#allocation2 + $0x8] sm:$0xff]
  %v29 = vld [vmem:[#allocation2 + $0x10] sm:$0xff]
  %v30 = vld [vmem:[#allocation2 + $0x18] sm:$0xff]
  %v31 = vld [vmem:[%s0] sm:$0xf]
  %v32 = vld [vmem:[%s0 + $0x4] sm:$0xf]
  %v33 = vld [vmem:[%s0 + $0x8] sm:$0xf]
  %v34 = vld [vmem:[%s0 + $0xc] sm:$0xf]
  %v35 = vld [vmem:[%s1] sm:$0xf]
  %v36 = vld [vmem:[%s1 + $0x4] sm:$0xf]
  %v37 = vld [vmem:[%s1 + $0x8] sm:$0xf]
  %v38 = vld [vmem:[%s1 + $0xc] sm:$0xf]
  %v43 = vunpack.c.l.b16 %v31
  %v44 = vunpack.c.l.b16 %v32
  %v45 = vunpack.c.l.b16 %v33
  %v46 = vunpack.c.l.b16 %v34
  %v47 = vpack.c.b16 %v44, %v43
  %v48 = vpack.c.b16 %v46, %v45
  %v53 = vunpack.c.l.b16 %v35
  %v54 = vunpack.c.l.b16 %v36
  %v55 = vunpack.c.l.b16 %v37
  %v56 = vunpack.c.l.b16 %v38
  %v57 = vpack.c.b16 %v54, %v53
  %v58 = vpack.c.b16 %v56, %v55
  %vm61 = vcmask 261120
  %v63 = vsel %vm61, %v47, 0
  %v66 = vsel %vm61, %v48, 0
  %68 = vmatprep.subr.bf16.mxu0 0
  %69 = vmatpush1.bf16.msra.mxu0 %v57
  %70 = vmatprep.subr.bf16.mxu0 0
  %71 = vmatpush1.bf16.msra.mxu0 %v58
  %72 = vmatprep.subr.bf16.mxu0 0
  %73 = vmatpush1.bf16.msra.mxu0 0
  %74 = vmatprep.subr.bf16.mxu0 0
  %75 = vmatpush1.bf16.msra.mxu0 0
  %76 = vmatprep.subr.bf16.mxu0 0
  %77 = vmatpush1.bf16.msra.mxu0 0
  %78 = vmatprep.subr.bf16.mxu0 0
  %79 = vmatpush1.bf16.msra.mxu0 0
  %80 = vmatprep.subr.bf16.mxu0 0
  %81 = vmatpush1.bf16.msra.mxu0 0
  %82 = vmatprep.subr.bf16.mxu0 0
  %83 = vmatpush1.bf16.msra.mxu0 0
  %84 = vmatprep.subr.bf16.mxu0 0
  %85 = vmatpush1.bf16.msra.mxu0 0
  %86 = vmatprep.subr.bf16.mxu0 0
  %87 = vmatpush1.bf16.msra.mxu0 0
  %88 = vmatprep.subr.bf16.mxu0 0
  %89 = vmatpush1.bf16.msra.mxu0 0
  %90 = vmatprep.subr.bf16.mxu0 0
  %91 = vmatpush1.bf16.msra.mxu0 0
  %92 = vmatprep.subr.bf16.mxu0 0
  %93 = vmatpush1.bf16.msra.mxu0 0
  %94 = vmatprep.subr.bf16.mxu0 0
  %95 = vmatpush1.bf16.msra.mxu0 0
  %96 = vmatprep.subr.bf16.mxu0 0
  %97 = vmatpush1.bf16.msra.mxu0 0
  %98 = vmatprep.subr.bf16.mxu0 0
  %99 = vmatpush1.bf16.msra.mxu0 0
  %100 = vmatprep.mubr.bf16.mxu0 0
  %101 = vmatmul.mubr.bf16.gmra.mrb[0].mxu0 %v63
  %v102 = vpop.f32.mrb[0].mxu0
  %v103 = vadd.f32 0.0, %v102
  %v104 = vpop.f32.mrb[0].mxu0
  %v105 = vpop.f32.mrb[0].mxu0
  %v106 = vadd.f32 0.0, %v105
  %v107 = vpop.f32.mrb[0].mxu0
  %108 = vmatprep.mubr.bf16.mxu0 0
  %109 = vmatmul.mubr.bf16.gmra.mrb[0].mxu0 %v66
  %v110 = vpop.f32.mrb[0].mxu0
  %v111 = vadd.f32 0.0, %v110
  %v112 = vpop.f32.mrb[0].mxu0
  %v113 = vpop.f32.mrb[0].mxu0
  %v114 = vadd.f32 0.0, %v113
  %v115 = vpop.f32.mrb[0].mxu0
  %116 = vdwg.mxu0
  %v117 = vadd.f32 %v27, %v103
  %v118 = vadd.f32 %v28, %v106
  %v119 = vadd.f32 %v29, %v111
  %v120 = vadd.f32 %v30, %v114
  %121 = vst.msk [vmem:[#allocation2] sm:$0xff] %vm61, %v117
  %122 = vst.msk [vmem:[#allocation2 + $0x8] sm:$0xff] %vm61, %v118
  %123 = vst.msk [vmem:[#allocation2 + $0x10] sm:$0xff] %vm61, %v119
  %124 = vst.msk [vmem:[#allocation2 + $0x18] sm:$0xff] %vm61, %v120
  // Predicated region
  $region22: #{imagegpt_forward.16} parent=0 // pred_check
    %p125 = pneg %p18
  $region23: #{imagegpt_forward.16} parent=0 // pred_check_branch
    %127 = sbr.rel (%p125) target = $region25
  $region24: #{imagegpt_forward.16} parent=0 // pred_region
    %v128 = vld [vmem:[#allocation2] sm:$0xff]
    %v129 = vld [vmem:[#allocation2 + $0x8] sm:$0xff]
    %v130 = vld [vmem:[#allocation2 + $0x10] sm:$0xff]
    %v131 = vld [vmem:[#allocation2 + $0x18] sm:$0xff]
    %v132 = vld [vmem:[%s2] sm:$0x1]
    %v134 = vlaneseq
    %v135 = vshrl.u32 %v134, 7
    %v136 = vsub.s32 0, %v135
    %v137 = vrot.slane %v132, %v136
    %v139 = vadd.f32 %v128, %v137
    %v140 = vadd.f32 %v129, %v137
    %v141 = vadd.f32 %v130, %v137
    %v142 = vadd.f32 %v131, %v137
    %v143 = vld [vmem:[%s3] sm:$0xf]
    %v144 = vld [vmem:[%s3 + $0x4] sm:$0xf]
    %v145 = vld [vmem:[%s3 + $0x8] sm:$0xf]
    %v146 = vld [vmem:[%s3 + $0xc] sm:$0xf]
    %v147 = vunpack.c.l.bf16 %v143
    %v148 = vunpack.c.l.bf16 %v144
    %v149 = vunpack.c.l.bf16 %v145
    %v150 = vunpack.c.l.bf16 %v146
    %v151 = vadd.f32 %v139, %v147
    %v152 = vadd.f32 %v140, %v148
    %v153 = vadd.f32 %v141, %v149
    %v154 = vadd.f32 %v142, %v150
    %v155 = vpack.c.bf16 %v152, %v151
    %v156 = vpack.c.bf16 %v154, %v153
    %v159 = vunpack.c.l.b16 %v155
    %v160 = vunpack.c.h.b16 %v155
    %v161 = vunpack.c.l.b16 %v156
    %v162 = vunpack.c.h.b16 %v156
    %v163 = vpack.c.b16 %v159, %v159
    %v164 = vpack.c.b16 %v160, %v160
    %v165 = vpack.c.b16 %v161, %v161
    %v166 = vpack.c.b16 %v162, %v162
    %vm171 = vcmask 257024
    %172 = vst.msk [vmem:[%s4] sm:$0xf] %vm171, %v163
    %173 = vst.msk [vmem:[%s4 + $0x4] sm:$0xf] %vm171, %v164
    %174 = vst.msk [vmem:[%s4 + $0x8] sm:$0xf] %vm171, %v165
    %175 = vst.msk [vmem:[%s4 + $0xc] sm:$0xf] %vm171, %v166
  $region25: #{imagegpt_forward.16} parent=0 // pred_fallthru
    _
  // Predicated region
  $region26: #{imagegpt_forward.16} parent=0 // pred_check
    _
  $region27: #{imagegpt_forward.16} parent=0 // pred_check_branch
    %177 = sbr.rel (0) target = $region29
  $region28: #{imagegpt_forward.16} parent=0 // pred_region
    _
  $region29: #{imagegpt_forward.16} parent=0 // pred_fallthru
    _
  // Predicated region
  $region30: #{imagegpt_forward.16} parent=0 // pred_check
    _
  $region31: #{imagegpt_forward.16} parent=0 // pred_check_branch
    %179 = sbr.rel (0) target = $region33
  $region32: #{imagegpt_forward.16} parent=0 // pred_region
    _
  $region33: #{imagegpt_forward.16} parent=0 // pred_fallthru
    _

// kernel: imagegpt_forward.18
$region0: #{imagegpt_forward.18}
  #allocation0 [shape = 'u32[]', space=smem, size = 0x4, offset = 0x4, fixed_abs, tag = 'smem constant byte address 0x4 - core index']
  #allocation1 [shape = 'u32[144,128]{1,0:T(1,128)}', space=vmem, size = 0x12000, scoped, tag = 'internal scratch']
  #allocation2 [shape = 'f32[32,32]{1,0:T(8,128)}', space=vmem, size = 0x4000, scoped, tag = 'scratch operand']
  %s0 = inlined_call_operand.vmem [shape: bf16[32,64], index: 0, kind: input, shape index: {}]
  %s1 = inlined_call_operand.vmem [shape: bf16[64,32], index: 1, kind: input, shape index: {}]
  %s2 = inlined_call_operand.vmem [shape: f32[1,32], index: 2, kind: input, shape index: {}]
  %s3 = inlined_call_operand.vmem [shape: bf16[32,32], index: 3, kind: input, shape index: {}]
  %s4 = inlined_call_operand.vmem [shape: bf16[32,32], index: 4, kind: output, shape index: {}]
  %s5 = sld [smem:[#allocation0]]
  $region34: #{imagegpt_forward.18} parent=0
    _
  %s7 = ssub.s32 1, %s5
  %s8 = scalar_select 0, %s7, %s5
  // Predicated region
  $region2: #{imagegpt_forward.18} parent=0 // pred_check
    _
  $region3: #{imagegpt_forward.18} parent=0 // pred_check_branch
    %10 = sbr.rel (0) target = $region5
  $region4: #{imagegpt_forward.18} parent=0 // pred_region
    _
  $region5: #{imagegpt_forward.18} parent=0 // pred_fallthru
    _
  // Predicated region
  $region6: #{imagegpt_forward.18} parent=0 // pred_check
    _
  $region7: #{imagegpt_forward.18} parent=0 // pred_check_branch
    %12 = sbr.rel (0) target = $region9
  $region8: #{imagegpt_forward.18} parent=0 // pred_region
    _
  $region9: #{imagegpt_forward.18} parent=0 // pred_fallthru
    _
  // Predicated region
  $region10: #{imagegpt_forward.18} parent=0 // pred_check
    _
  $region11: #{imagegpt_forward.18} parent=0 // pred_check_branch
    %14 = sbr.rel (0) target = $region13
  $region12: #{imagegpt_forward.18} parent=0 // pred_region
    _
  $region13: #{imagegpt_forward.18} parent=0 // pred_fallthru
    _
  // Predicated region
  $region14: #{imagegpt_forward.18} parent=0 // pred_check
    _
  $region15: #{imagegpt_forward.18} parent=0 // pred_check_branch
    %16 = sbr.rel (0) target = $region17
  $region16: #{imagegpt_forward.18} parent=0 // pred_region
    _
  $region17: #{imagegpt_forward.18} parent=0 // pred_fallthru
    _
  %p18 = scmp.eq.s32.totalorder 0, 0
  // Predicated region
  $region18: #{imagegpt_forward.18} parent=0 // pred_check
    %p19 = pneg %p18
  $region19: #{imagegpt_forward.18} parent=0 // pred_check_branch
    %21 = sbr.rel (%p19) target = $region21
  $region20: #{imagegpt_forward.18} parent=0 // pred_region
    %vm22 = vcmask 261120
    %23 = vst.msk [vmem:[#allocation2] sm:$0xff] %vm22, 0.0
    %24 = vst.msk [vmem:[#allocation2 + $0x8] sm:$0xff] %vm22, 0.0
    %25 = vst.msk [vmem:[#allocation2 + $0x10] sm:$0xff] %vm22, 0.0
    %26 = vst.msk [vmem:[#allocation2 + $0x18] sm:$0xff] %vm22, 0.0
  $region21: #{imagegpt_forward.18} parent=0 // pred_fallthru
    _
  %v27 = vld [vmem:[#allocation2] sm:$0xff]
  %v28 = vld [vmem:[#allocation2 + $0x8] sm:$0xff]
  %v29 = vld [vmem:[#allocation2 + $0x10] sm:$0xff]
  %v30 = vld [vmem:[#allocation2 + $0x18] sm:$0xff]
  %v31 = vld [vmem:[%s0] sm:$0xf]
  %v32 = vld [vmem:[%s0 + $0x4] sm:$0xf]
  %v33 = vld [vmem:[%s0 + $0x8] sm:$0xf]
  %v34 = vld [vmem:[%s0 + $0xc] sm:$0xf]
  %v35 = vld [vmem:[%s1] sm:$0xf]
  %v36 = vld [vmem:[%s1 + $0x4] sm:$0xf]
  %v37 = vld [vmem:[%s1 + $0x8] sm:$0xf]
  %v38 = vld [vmem:[%s1 + $0xc] sm:$0xf]
  %v39 = vld [vmem:[%s1 + $0x10] sm:$0xf]
  %v40 = vld [vmem:[%s1 + $0x14] sm:$0xf]
  %v41 = vld [vmem:[%s1 + $0x18] sm:$0xf]
  %v42 = vld [vmem:[%s1 + $0x1c] sm:$0xf]
  %v47 = vunpack.c.l.b16 %v31
  %v48 = vunpack.c.l.b16 %v32
  %v49 = vunpack.c.l.b16 %v33
  %v50 = vunpack.c.l.b16 %v34
  %v51 = vpack.c.b16 %v48, %v47
  %v52 = vpack.c.b16 %v50, %v49
  %v61 = vunpack.c.l.b16 %v35
  %v62 = vunpack.c.l.b16 %v36
  %v63 = vunpack.c.l.b16 %v37
  %v64 = vunpack.c.l.b16 %v38
  %v65 = vunpack.c.l.b16 %v39
  %v66 = vunpack.c.l.b16 %v40
  %v67 = vunpack.c.l.b16 %v41
  %v68 = vunpack.c.l.b16 %v42
  %v69 = vpack.c.b16 %v62, %v61
  %v70 = vpack.c.b16 %v64, %v63
  %v71 = vpack.c.b16 %v66, %v65
  %v72 = vpack.c.b16 %v68, %v67
  %vm77 = vcmask 523264
  %v79 = vsel %vm77, %v51, 0
  %v82 = vsel %vm77, %v52, 0
  %84 = vmatprep.subr.bf16.mxu0 0
  %85 = vmatpush1.bf16.msra.mxu0 %v69
  %86 = vmatprep.subr.bf16.mxu0 0
  %87 = vmatpush1.bf16.msra.mxu0 %v70
  %88 = vmatprep.subr.bf16.mxu0 0
  %89 = vmatpush1.bf16.msra.mxu0 %v71
  %90 = vmatprep.subr.bf16.mxu0 0
  %91 = vmatpush1.bf16.msra.mxu0 %v72
  %92 = vmatprep.subr.bf16.mxu0 0
  %93 = vmatpush1.bf16.msra.mxu0 0
  %94 = vmatprep.subr.bf16.mxu0 0
  %95 = vmatpush1.bf16.msra.mxu0 0
  %96 = vmatprep.subr.bf16.mxu0 0
  %97 = vmatpush1.bf16.msra.mxu0 0
  %98 = vmatprep.subr.bf16.mxu0 0
  %99 = vmatpush1.bf16.msra.mxu0 0
  %100 = vmatprep.subr.bf16.mxu0 0
  %101 = vmatpush1.bf16.msra.mxu0 0
  %102 = vmatprep.subr.bf16.mxu0 0
  %103 = vmatpush1.bf16.msra.mxu0 0
  %104 = vmatprep.subr.bf16.mxu0 0
  %105 = vmatpush1.bf16.msra.mxu0 0
  %106 = vmatprep.subr.bf16.mxu0 0
  %107 = vmatpush1.bf16.msra.mxu0 0
  %108 = vmatprep.subr.bf16.mxu0 0
  %109 = vmatpush1.bf16.msra.mxu0 0
  %110 = vmatprep.subr.bf16.mxu0 0
  %111 = vmatpush1.bf16.msra.mxu0 0
  %112 = vmatprep.subr.bf16.mxu0 0
  %113 = vmatpush1.bf16.msra.mxu0 0
  %114 = vmatprep.subr.bf16.mxu0 0
  %115 = vmatpush1.bf16.msra.mxu0 0
  %116 = vmatprep.mubr.bf16.mxu0 0
  %117 = vmatmul.mubr.bf16.gmra.mrb[0].mxu0 %v79
  %v118 = vpop.f32.mrb[0].mxu0
  %v119 = vadd.f32 0.0, %v118
  %v120 = vpop.f32.mrb[0].mxu0
  %v121 = vpop.f32.mrb[0].mxu0
  %v122 = vadd.f32 0.0, %v121
  %v123 = vpop.f32.mrb[0].mxu0
  %124 = vmatprep.mubr.bf16.mxu0 0
  %125 = vmatmul.mubr.bf16.gmra.mrb[0].mxu0 %v82
  %v126 = vpop.f32.mrb[0].mxu0
  %v127 = vadd.f32 0.0, %v126
  %v128 = vpop.f32.mrb[0].mxu0
  %v129 = vpop.f32.mrb[0].mxu0
  %v130 = vadd.f32 0.0, %v129
  %v131 = vpop.f32.mrb[0].mxu0
  %132 = vdwg.mxu0
  %v133 = vadd.f32 %v27, %v119
  %v134 = vadd.f32 %v28, %v122
  %v135 = vadd.f32 %v29, %v127
  %v136 = vadd.f32 %v30, %v130
  %vm137 = vcmask 261120
  %138 = vst.msk [vmem:[#allocation2] sm:$0xff] %vm137, %v133
  %139 = vst.msk [vmem:[#allocation2 + $0x8] sm:$0xff] %vm137, %v134
  %140 = vst.msk [vmem:[#allocation2 + $0x10] sm:$0xff] %vm137, %v135
  %141 = vst.msk [vmem:[#allocation2 + $0x18] sm:$0xff] %vm137, %v136
  // Predicated region
  $region22: #{imagegpt_forward.18} parent=0 // pred_check
    %p142 = pneg %p18
  $region23: #{imagegpt_forward.18} parent=0 // pred_check_branch
    %144 = sbr.rel (%p142) target = $region25
  $region24: #{imagegpt_forward.18} parent=0 // pred_region
    %v145 = vld [vmem:[#allocation2] sm:$0xff]
    %v146 = vld [vmem:[#allocation2 + $0x8] sm:$0xff]
    %v147 = vld [vmem:[#allocation2 + $0x10] sm:$0xff]
    %v148 = vld [vmem:[#allocation2 + $0x18] sm:$0xff]
    %v149 = vld [vmem:[%s2] sm:$0x1]
    %v151 = vlaneseq
    %v152 = vshrl.u32 %v151, 7
    %v153 = vsub.s32 0, %v152
    %v154 = vrot.slane %v149, %v153
    %v156 = vadd.f32 %v145, %v154
    %v157 = vadd.f32 %v146, %v154
    %v158 = vadd.f32 %v147, %v154
    %v159 = vadd.f32 %v148, %v154
    %v160 = vld [vmem:[%s3] sm:$0xf]
    %v161 = vld [vmem:[%s3 + $0x4] sm:$0xf]
    %v162 = vld [vmem:[%s3 + $0x8] sm:$0xf]
    %v163 = vld [vmem:[%s3 + $0xc] sm:$0xf]
    %v164 = vunpack.c.l.bf16 %v160
    %v165 = vunpack.c.l.bf16 %v161
    %v166 = vunpack.c.l.bf16 %v162
    %v167 = vunpack.c.l.bf16 %v163
    %v168 = vadd.f32 %v156, %v164
    %v169 = vadd.f32 %v157, %v165
    %v170 = vadd.f32 %v158, %v166
    %v171 = vadd.f32 %v159, %v167
    %v172 = vpack.c.bf16 %v169, %v168
    %v173 = vpack.c.bf16 %v171, %v170
    %v176 = vunpack.c.l.b16 %v172
    %v177 = vunpack.c.h.b16 %v172
    %v178 = vunpack.c.l.b16 %v173
    %v179 = vunpack.c.h.b16 %v173
    %v180 = vpack.c.b16 %v176, %v176
    %v181 = vpack.c.b16 %v177, %v177
    %v182 = vpack.c.b16 %v178, %v178
    %v183 = vpack.c.b16 %v179, %v179
    %vm188 = vcmask 257024
    %189 = vst.msk [vmem:[%s4] sm:$0xf] %vm188, %v180
    %190 = vst.msk [vmem:[%s4 + $0x4] sm:$0xf] %vm188, %v181
    %191 = vst.msk [vmem:[%s4 + $0x8] sm:$0xf] %vm188, %v182
    %192 = vst.msk [vmem:[%s4 + $0xc] sm:$0xf] %vm188, %v183
  $region25: #{imagegpt_forward.18} parent=0 // pred_fallthru
    _
  // Predicated region
  $region26: #{imagegpt_forward.18} parent=0 // pred_check
    _
  $region27: #{imagegpt_forward.18} parent=0 // pred_check_branch
    %194 = sbr.rel (0) target = $region29
  $region28: #{imagegpt_forward.18} parent=0 // pred_region
    _
  $region29: #{imagegpt_forward.18} parent=0 // pred_fallthru
    _
  // Predicated region
  $region30: #{imagegpt_forward.18} parent=0 // pred_check
    _
  $region31: #{imagegpt_forward.18} parent=0 // pred_check_branch
    %196 = sbr.rel (0) target = $region33
  $region32: #{imagegpt_forward.18} parent=0 // pred_region
    _
  $region33: #{imagegpt_forward.18} parent=0 // pred_fallthru
    _

// kernel: imagegpt_forward.17
$region0: #{imagegpt_forward.17}
  #allocation0 [shape = 'u32[]', space=smem, size = 0x4, offset = 0x4, fixed_abs, tag = 'smem constant byte address 0x4 - core index']
  #allocation1 [shape = 'u32[144,128]{1,0:T(1,128)}', space=vmem, size = 0x12000, scoped, tag = 'internal scratch']
  %s0 = inlined_call_operand.vmem [shape: bf16[32,32], index: 0, kind: input, shape index: {}]
  %s1 = inlined_call_operand.vmem [shape: f32[1,32], index: 1, kind: input, shape index: {}]
  %s2 = inlined_call_operand.vmem [shape: f32[1,32], index: 2, kind: input, shape index: {}]
  %s3 = inlined_call_operand.vmem [shape: bf16[32,64], index: 3, kind: input, shape index: {}]
  %s4 = inlined_call_operand.vmem [shape: f32[1,64], index: 4, kind: input, shape index: {}]
  %s5 = inlined_call_operand.vmem [shape: bf16[32,64], index: 5, kind: output, shape index: {}]
  %s6 = sld [smem:[#allocation0]]
  $region30: #{imagegpt_forward.17} parent=0
    _
  %s8 = ssub.s32 1, %s6
  %s9 = scalar_select 0, %s8, %s6
  // Predicated region
  $region2: #{imagegpt_forward.17} parent=0 // pred_check
    _
  $region3: #{imagegpt_forward.17} parent=0 // pred_check_branch
    %11 = sbr.rel (0) target = $region5
  $region4: #{imagegpt_forward.17} parent=0 // pred_region
    _
  $region5: #{imagegpt_forward.17} parent=0 // pred_fallthru
    _
  // Predicated region
  $region6: #{imagegpt_forward.17} parent=0 // pred_check
    _
  $region7: #{imagegpt_forward.17} parent=0 // pred_check_branch
    %13 = sbr.rel (0) target = $region9
  $region8: #{imagegpt_forward.17} parent=0 // pred_region
    _
  $region9: #{imagegpt_forward.17} parent=0 // pred_fallthru
    _
  // Predicated region
  $region10: #{imagegpt_forward.17} parent=0 // pred_check
    _
  $region11: #{imagegpt_forward.17} parent=0 // pred_check_branch
    %15 = sbr.rel (0) target = $region13
  $region12: #{imagegpt_forward.17} parent=0 // pred_region
    _
  $region13: #{imagegpt_forward.17} parent=0 // pred_fallthru
    _
  // Predicated region
  $region14: #{imagegpt_forward.17} parent=0 // pred_check
    _
  $region15: #{imagegpt_forward.17} parent=0 // pred_check_branch
    %17 = sbr.rel (0) target = $region17
  $region16: #{imagegpt_forward.17} parent=0 // pred_region
    _
  $region17: #{imagegpt_forward.17} parent=0 // pred_fallthru
    _
  // Predicated region
  $region18: #{imagegpt_forward.17} parent=0 // pred_check
    _
  $region19: #{imagegpt_forward.17} parent=0 // pred_check_branch
    %19 = sbr.rel (0) target = $region21
  $region20: #{imagegpt_forward.17} parent=0 // pred_region
    _
  $region21: #{imagegpt_forward.17} parent=0 // pred_fallthru
    _
  %v21 = vld [vmem:[%s0] sm:$0xf]
  %v22 = vld [vmem:[%s0 + $0x4] sm:$0xf]
  %v23 = vld [vmem:[%s0 + $0x8] sm:$0xf]
  %v24 = vld [vmem:[%s0 + $0xc] sm:$0xf]
  %v25 = vunpack.c.l.bf16 %v21
  %v26 = vunpack.c.l.bf16 %v22
  %v27 = vunpack.c.l.bf16 %v23
  %v28 = vunpack.c.l.bf16 %v24
  %vm29 = vcmask 261120
  %v30 = vsel %vm29, %v25, 0.0
  %31 = vadd.xlane.f32.xlu0 %v30
  %v32 = vpop.xlane.xlu0 %31
  %v33 = vsel %vm29, %v26, 0.0
  %34 = vadd.xlane.f32.xlu0 %v33
  %v35 = vpop.xlane.xlu0 %34
  %v36 = vsel %vm29, %v27, 0.0
  %37 = vadd.xlane.f32.xlu0 %v36
  %v38 = vpop.xlane.xlu0 %37
  %v39 = vsel %vm29, %v28, 0.0
  %40 = vadd.xlane.f32.xlu0 %v39
  %v41 = vpop.xlane.xlu0 %40
  %v42 = vrcp.pop 32.0
  %v43 = vmul.f32 %v32, %v42
  %v44 = vmul.f32 %v35, %v42
  %v45 = vmul.f32 %v38, %v42
  %v46 = vmul.f32 %v41, %v42
  %v47 = vsub.f32 %v25, %v43
  %v48 = vsub.f32 %v26, %v44
  %v49 = vsub.f32 %v27, %v45
  %v50 = vsub.f32 %v28, %v46
  %v51 = vmul.f32 %v47, %v47
  %v52 = vmul.f32 %v48, %v48
  %v53 = vmul.f32 %v49, %v49
  %v54 = vmul.f32 %v50, %v50
  %v55 = vsel %vm29, %v51, 0.0
  %56 = vadd.xlane.f32.xlu0 %v55
  %v57 = vpop.xlane.xlu0 %56
  %v58 = vsel %vm29, %v52, 0.0
  %59 = vadd.xlane.f32.xlu0 %v58
  %v60 = vpop.xlane.xlu0 %59
  %v61 = vsel %vm29, %v53, 0.0
  %62 = vadd.xlane.f32.xlu0 %v61
  %v63 = vpop.xlane.xlu0 %62
  %v64 = vsel %vm29, %v54, 0.0
  %65 = vadd.xlane.f32.xlu0 %v64
  %v66 = vpop.xlane.xlu0 %65
  %v67 = vmul.f32 %v57, %v42
  %v68 = vmul.f32 %v60, %v42
  %v69 = vmul.f32 %v63, %v42
  %v70 = vmul.f32 %v66, %v42
  %v71 = vadd.f32 %v67, 1e-05
  %v72 = vadd.f32 %v68, 1e-05
  %v73 = vadd.f32 %v69, 1e-05
  %v74 = vadd.f32 %v70, 1e-05
  %v75 = vrsqrt.pop %v71
  %v76 = vrsqrt.pop %v72
  %v77 = vrsqrt.pop %v73
  %v78 = vrsqrt.pop %v74
  %v79 = vmul.f32 %v47, %v75
  %v80 = vmul.f32 %v48, %v76
  %v81 = vmul.f32 %v49, %v77
  %v82 = vmul.f32 %v50, %v78
  %v83 = vld [vmem:[%s1] sm:$0x1]
  %v85 = vlaneseq
  %v86 = vshrl.u32 %v85, 7
  %v87 = vsub.s32 0, %v86
  %v88 = vrot.slane %v83, %v87
  %v90 = vmul.f32 %v79, %v88
  %v91 = vmul.f32 %v80, %v88
  %v92 = vmul.f32 %v81, %v88
  %v93 = vmul.f32 %v82, %v88
  %v94 = vld [vmem:[%s2] sm:$0x1]
  %v96 = vlaneseq
  %v97 = vshrl.u32 %v96, 7
  %v98 = vsub.s32 0, %v97
  %v99 = vrot.slane %v94, %v98
  %v101 = vadd.f32 %v90, %v99
  %v102 = vadd.f32 %v91, %v99
  %v103 = vadd.f32 %v92, %v99
  %v104 = vadd.f32 %v93, %v99
  %v105 = vpack.c.bf16 %v102, %v101
  %v106 = vpack.c.bf16 %v104, %v103
  %v107 = vld [vmem:[%s3] sm:$0xf]
  %v108 = vld [vmem:[%s3 + $0x4] sm:$0xf]
  %v109 = vld [vmem:[%s3 + $0x8] sm:$0xf]
  %v110 = vld [vmem:[%s3 + $0xc] sm:$0xf]
  %v111 = vld [vmem:[%s4] sm:$0x1]
  %v113 = vlaneseq
  %v114 = vshrl.u32 %v113, 7
  %v115 = vsub.s32 0, %v114
  %v116 = vrot.slane %v111, %v115
  %v122 = vunpack.c.l.b16 %v107
  %v123 = vunpack.c.l.b16 %v108
  %v124 = vunpack.c.l.b16 %v109
  %v125 = vunpack.c.l.b16 %v110
  %v126 = vpack.c.b16 %v123, %v122
  %v127 = vpack.c.b16 %v125, %v124
  %v131 = vsel %vm29, %v105, 0
  %v134 = vsel %vm29, %v106, 0
  %136 = vmatprep.subr.bf16.mxu0 0
  %137 = vmatpush1.bf16.msra.mxu0 %v126
  %138 = vmatprep.subr.bf16.mxu0 0
  %139 = vmatpush1.bf16.msra.mxu0 %v127
  %140 = vmatprep.subr.bf16.mxu0 0
  %141 = vmatpush1.bf16.msra.mxu0 0
  %142 = vmatprep.subr.bf16.mxu0 0
  %143 = vmatpush1.bf16.msra.mxu0 0
  %144 = vmatprep.subr.bf16.mxu0 0
  %145 = vmatpush1.bf16.msra.mxu0 0
  %146 = vmatprep.subr.bf16.mxu0 0
  %147 = vmatpush1.bf16.msra.mxu0 0
  %148 = vmatprep.subr.bf16.mxu0 0
  %149 = vmatpush1.bf16.msra.mxu0 0
  %150 = vmatprep.subr.bf16.mxu0 0
  %151 = vmatpush1.bf16.msra.mxu0 0
  %152 = vmatprep.subr.bf16.mxu0 0
  %153 = vmatpush1.bf16.msra.mxu0 0
  %154 = vmatprep.subr.bf16.mxu0 0
  %155 = vmatpush1.bf16.msra.mxu0 0
  %156 = vmatprep.subr.bf16.mxu0 0
  %157 = vmatpush1.bf16.msra.mxu0 0
  %158 = vmatprep.subr.bf16.mxu0 0
  %159 = vmatpush1.bf16.msra.mxu0 0
  %160 = vmatprep.subr.bf16.mxu0 0
  %161 = vmatpush1.bf16.msra.mxu0 0
  %162 = vmatprep.subr.bf16.mxu0 0
  %163 = vmatpush1.bf16.msra.mxu0 0
  %164 = vmatprep.subr.bf16.mxu0 0
  %165 = vmatpush1.bf16.msra.mxu0 0
  %166 = vmatprep.subr.bf16.mxu0 0
  %167 = vmatpush1.bf16.msra.mxu0 0
  %168 = vmatprep.mubr.bf16.mxu0 0
  %169 = vmatmul.mubr.bf16.gmra.mrb[0].mxu0 %v131
  %v170 = vpop.f32.mrb[0].mxu0
  %v171 = vadd.f32 %v116, %v170
  %v172 = vpop.f32.mrb[0].mxu0
  %v173 = vpop.f32.mrb[0].mxu0
  %v174 = vadd.f32 %v116, %v173
  %v175 = vpop.f32.mrb[0].mxu0
  %176 = vmatprep.mubr.bf16.mxu0 0
  %177 = vmatmul.mubr.bf16.gmra.mrb[0].mxu0 %v134
  %v178 = vpop.f32.mrb[0].mxu0
  %v179 = vadd.f32 %v116, %v178
  %v180 = vpop.f32.mrb[0].mxu0
  %v181 = vpop.f32.mrb[0].mxu0
  %v182 = vadd.f32 %v116, %v181
  %v183 = vpop.f32.mrb[0].mxu0
  %184 = vdwg.mxu0
  %v185 = vmul.f32 %v171, %v171
  %v186 = vmul.f32 %v174, %v174
  %v187 = vmul.f32 %v179, %v179
  %v188 = vmul.f32 %v182, %v182
  %v189 = vmul.f32 %v171, %v185
  %v190 = vmul.f32 %v174, %v186
  %v191 = vmul.f32 %v179, %v187
  %v192 = vmul.f32 %v182, %v188
  %v193 = vmul.f32 %v189, 0.044715
  %v194 = vmul.f32 %v190, 0.044715
  %v195 = vmul.f32 %v191, 0.044715
  %v196 = vmul.f32 %v192, 0.044715
  %v197 = vadd.f32 %v171, %v193
  %v198 = vadd.f32 %v174, %v194
  %v199 = vadd.f32 %v179, %v195
  %v200 = vadd.f32 %v182, %v196
  %v201 = vmul.f32 %v197, 0.7978846
  %v202 = vmul.f32 %v198, 0.7978846
  %v203 = vmul.f32 %v199, 0.7978846
  %v204 = vmul.f32 %v200, 0.7978846
  %v205 = vtanh.pop %v201
  %v206 = vtanh.pop %v202
  %v207 = vtanh.pop %v203
  %v208 = vtanh.pop %v204
  %v209 = vadd.f32 %v205, 1.0
  %v210 = vadd.f32 %v206, 1.0
  %v211 = vadd.f32 %v207, 1.0
  %v212 = vadd.f32 %v208, 1.0
  %v213 = vmul.f32 %v209, 0.5
  %v214 = vmul.f32 %v210, 0.5
  %v215 = vmul.f32 %v211, 0.5
  %v216 = vmul.f32 %v212, 0.5
  %v217 = vmul.f32 %v171, %v213
  %v218 = vmul.f32 %v174, %v214
  %v219 = vmul.f32 %v179, %v215
  %v220 = vmul.f32 %v182, %v216
  %v221 = vpack.c.bf16 %v218, %v217
  %v222 = vpack.c.bf16 %v220, %v219
  %v225 = vunpack.c.l.b16 %v221
  %v226 = vunpack.c.h.b16 %v221
  %v227 = vunpack.c.l.b16 %v222
  %v228 = vunpack.c.h.b16 %v222
  %v229 = vpack.c.b16 %v225, %v225
  %v230 = vpack.c.b16 %v226, %v226
  %v231 = vpack.c.b16 %v227, %v227
  %v232 = vpack.c.b16 %v228, %v228
  %vm237 = vcmask 519168
  %238 = vst.msk [vmem:[%s5] sm:$0xf] %vm237, %v229
  %239 = vst.msk [vmem:[%s5 + $0x4] sm:$0xf] %vm237, %v230
  %240 = vst.msk [vmem:[%s5 + $0x8] sm:$0xf] %vm237, %v231
  %241 = vst.msk [vmem:[%s5 + $0xc] sm:$0xf] %vm237, %v232
  // Predicated region
  $region22: #{imagegpt_forward.17} parent=0 // pred_check
    _
  $region23: #{imagegpt_forward.17} parent=0 // pred_check_branch
    %243 = sbr.rel (0) target = $region25
  $region24: #{imagegpt_forward.17} parent=0 // pred_region
    _
  $region25: #{imagegpt_forward.17} parent=0 // pred_fallthru
    _
  // Predicated region
  $region26: #{imagegpt_forward.17} parent=0 // pred_check
    _
  $region27: #{imagegpt_forward.17} parent=0 // pred_check_branch
    %245 = sbr.rel (0) target = $region29
  $region28: #{imagegpt_forward.17} parent=0 // pred_region
    _
  $region29: #{imagegpt_forward.17} parent=0 // pred_fallthru
    _

// kernel: imagegpt_forward.24
$region0: #{imagegpt_forward.24}
  #allocation0 [shape = 'u32[]', space=smem, size = 0x4, offset = 0x4, fixed_abs, tag = 'smem constant byte address 0x4 - core index']
  #allocation1 [shape = 'u32[144,128]{1,0:T(1,128)}', space=vmem, size = 0x12000, scoped, tag = 'internal scratch']
  %s0 = inlined_call_operand.vmem [shape: bf16[32,32], index: 0, kind: input, shape index: {}]
  %s1 = inlined_call_operand.vmem [shape: f32[1,32], index: 1, kind: input, shape index: {}]
  %s2 = inlined_call_operand.vmem [shape: f32[1,32], index: 2, kind: input, shape index: {}]
  %s3 = inlined_call_operand.vmem [shape: bf16[32,64], index: 3, kind: input, shape index: {}]
  %s4 = inlined_call_operand.vmem [shape: f32[32,64], index: 4, kind: output, shape index: {}]
  %s5 = sld [smem:[#allocation0]]
  $region26: #{imagegpt_forward.24} parent=0
    _
  %s7 = ssub.s32 1, %s5
  %s8 = scalar_select 0, %s7, %s5
  // Predicated region
  $region2: #{imagegpt_forward.24} parent=0 // pred_check
    _
  $region3: #{imagegpt_forward.24} parent=0 // pred_check_branch
    %10 = sbr.rel (0) target = $region5
  $region4: #{imagegpt_forward.24} parent=0 // pred_region
    _
  $region5: #{imagegpt_forward.24} parent=0 // pred_fallthru
    _
  // Predicated region
  $region6: #{imagegpt_forward.24} parent=0 // pred_check
    _
  $region7: #{imagegpt_forward.24} parent=0 // pred_check_branch
    %12 = sbr.rel (0) target = $region9
  $region8: #{imagegpt_forward.24} parent=0 // pred_region
    _
  $region9: #{imagegpt_forward.24} parent=0 // pred_fallthru
    _
  // Predicated region
  $region10: #{imagegpt_forward.24} parent=0 // pred_check
    _
  $region11: #{imagegpt_forward.24} parent=0 // pred_check_branch
    %14 = sbr.rel (0) target = $region13
  $region12: #{imagegpt_forward.24} parent=0 // pred_region
    _
  $region13: #{imagegpt_forward.24} parent=0 // pred_fallthru
    _
  // Predicated region
  $region14: #{imagegpt_forward.24} parent=0 // pred_check
    _
  $region15: #{imagegpt_forward.24} parent=0 // pred_check_branch
    %16 = sbr.rel (0) target = $region17
  $region16: #{imagegpt_forward.24} parent=0 // pred_region
    _
  $region17: #{imagegpt_forward.24} parent=0 // pred_fallthru
    _
  %v18 = vld [vmem:[%s0] sm:$0xf]
  %v19 = vld [vmem:[%s0 + $0x4] sm:$0xf]
  %v20 = vld [vmem:[%s0 + $0x8] sm:$0xf]
  %v21 = vld [vmem:[%s0 + $0xc] sm:$0xf]
  %v22 = vunpack.c.l.bf16 %v18
  %v23 = vunpack.c.l.bf16 %v19
  %v24 = vunpack.c.l.bf16 %v20
  %v25 = vunpack.c.l.bf16 %v21
  %vm26 = vcmask 261120
  %v27 = vsel %vm26, %v22, 0.0
  %28 = vadd.xlane.f32.xlu0 %v27
  %v29 = vpop.xlane.xlu0 %28
  %v30 = vsel %vm26, %v23, 0.0
  %31 = vadd.xlane.f32.xlu0 %v30
  %v32 = vpop.xlane.xlu0 %31
  %v33 = vsel %vm26, %v24, 0.0
  %34 = vadd.xlane.f32.xlu0 %v33
  %v35 = vpop.xlane.xlu0 %34
  %v36 = vsel %vm26, %v25, 0.0
  %37 = vadd.xlane.f32.xlu0 %v36
  %v38 = vpop.xlane.xlu0 %37
  %v39 = vrcp.pop 32.0
  %v40 = vmul.f32 %v29, %v39
  %v41 = vmul.f32 %v32, %v39
  %v42 = vmul.f32 %v35, %v39
  %v43 = vmul.f32 %v38, %v39
  %v44 = vsub.f32 %v22, %v40
  %v45 = vsub.f32 %v23, %v41
  %v46 = vsub.f32 %v24, %v42
  %v47 = vsub.f32 %v25, %v43
  %v48 = vmul.f32 %v44, %v44
  %v49 = vmul.f32 %v45, %v45
  %v50 = vmul.f32 %v46, %v46
  %v51 = vmul.f32 %v47, %v47
  %v52 = vsel %vm26, %v48, 0.0
  %53 = vadd.xlane.f32.xlu0 %v52
  %v54 = vpop.xlane.xlu0 %53
  %v55 = vsel %vm26, %v49, 0.0
  %56 = vadd.xlane.f32.xlu0 %v55
  %v57 = vpop.xlane.xlu0 %56
  %v58 = vsel %vm26, %v50, 0.0
  %59 = vadd.xlane.f32.xlu0 %v58
  %v60 = vpop.xlane.xlu0 %59
  %v61 = vsel %vm26, %v51, 0.0
  %62 = vadd.xlane.f32.xlu0 %v61
  %v63 = vpop.xlane.xlu0 %62
  %v64 = vmul.f32 %v54, %v39
  %v65 = vmul.f32 %v57, %v39
  %v66 = vmul.f32 %v60, %v39
  %v67 = vmul.f32 %v63, %v39
  %v68 = vadd.f32 %v64, 1e-05
  %v69 = vadd.f32 %v65, 1e-05
  %v70 = vadd.f32 %v66, 1e-05
  %v71 = vadd.f32 %v67, 1e-05
  %v72 = vrsqrt.pop %v68
  %v73 = vrsqrt.pop %v69
  %v74 = vrsqrt.pop %v70
  %v75 = vrsqrt.pop %v71
  %v76 = vmul.f32 %v44, %v72
  %v77 = vmul.f32 %v45, %v73
  %v78 = vmul.f32 %v46, %v74
  %v79 = vmul.f32 %v47, %v75
  %v80 = vld [vmem:[%s1] sm:$0x1]
  %v82 = vlaneseq
  %v83 = vshrl.u32 %v82, 7
  %v84 = vsub.s32 0, %v83
  %v85 = vrot.slane %v80, %v84
  %v87 = vmul.f32 %v76, %v85
  %v88 = vmul.f32 %v77, %v85
  %v89 = vmul.f32 %v78, %v85
  %v90 = vmul.f32 %v79, %v85
  %v91 = vld [vmem:[%s2] sm:$0x1]
  %v93 = vlaneseq
  %v94 = vshrl.u32 %v93, 7
  %v95 = vsub.s32 0, %v94
  %v96 = vrot.slane %v91, %v95
  %v98 = vadd.f32 %v87, %v96
  %v99 = vadd.f32 %v88, %v96
  %v100 = vadd.f32 %v89, %v96
  %v101 = vadd.f32 %v90, %v96
  %v102 = vpack.c.bf16 %v99, %v98
  %v103 = vpack.c.bf16 %v101, %v100
  %v104 = vld [vmem:[%s3] sm:$0xf]
  %v105 = vld [vmem:[%s3 + $0x4] sm:$0xf]
  %v106 = vld [vmem:[%s3 + $0x8] sm:$0xf]
  %v107 = vld [vmem:[%s3 + $0xc] sm:$0xf]
  %v112 = vunpack.c.l.b16 %v104
  %v113 = vunpack.c.l.b16 %v105
  %v114 = vunpack.c.l.b16 %v106
  %v115 = vunpack.c.l.b16 %v107
  %v116 = vpack.c.b16 %v113, %v112
  %v117 = vpack.c.b16 %v115, %v114
  %v121 = vsel %vm26, %v102, 0
  %v124 = vsel %vm26, %v103, 0
  %126 = vmatprep.subr.bf16.mxu0 0
  %127 = vmatpush1.bf16.msra.mxu0 %v116
  %128 = vmatprep.subr.bf16.mxu0 0
  %129 = vmatpush1.bf16.msra.mxu0 %v117
  %130 = vmatprep.subr.bf16.mxu0 0
  %131 = vmatpush1.bf16.msra.mxu0 0
  %132 = vmatprep.subr.bf16.mxu0 0
  %133 = vmatpush1.bf16.msra.mxu0 0
  %134 = vmatprep.subr.bf16.mxu0 0
  %135 = vmatpush1.bf16.msra.mxu0 0
  %136 = vmatprep.subr.bf16.mxu0 0
  %137 = vmatpush1.bf16.msra.mxu0 0
  %138 = vmatprep.subr.bf16.mxu0 0
  %139 = vmatpush1.bf16.msra.mxu0 0
  %140 = vmatprep.subr.bf16.mxu0 0
  %141 = vmatpush1.bf16.msra.mxu0 0
  %142 = vmatprep.subr.bf16.mxu0 0
  %143 = vmatpush1.bf16.msra.mxu0 0
  %144 = vmatprep.subr.bf16.mxu0 0
  %145 = vmatpush1.bf16.msra.mxu0 0
  %146 = vmatprep.subr.bf16.mxu0 0
  %147 = vmatpush1.bf16.msra.mxu0 0
  %148 = vmatprep.subr.bf16.mxu0 0
  %149 = vmatpush1.bf16.msra.mxu0 0
  %150 = vmatprep.subr.bf16.mxu0 0
  %151 = vmatpush1.bf16.msra.mxu0 0
  %152 = vmatprep.subr.bf16.mxu0 0
  %153 = vmatpush1.bf16.msra.mxu0 0
  %154 = vmatprep.subr.bf16.mxu0 0
  %155 = vmatpush1.bf16.msra.mxu0 0
  %156 = vmatprep.subr.bf16.mxu0 0
  %157 = vmatpush1.bf16.msra.mxu0 0
  %158 = vmatprep.mubr.bf16.mxu0 0
  %159 = vmatmul.mubr.bf16.gmra.mrb[0].mxu0 %v121
  %v160 = vpop.f32.mrb[0].mxu0
  %v161 = vadd.f32 0.0, %v160
  %v162 = vpop.f32.mrb[0].mxu0
  %v163 = vpop.f32.mrb[0].mxu0
  %v164 = vadd.f32 0.0, %v163
  %v165 = vpop.f32.mrb[0].mxu0
  %166 = vmatprep.mubr.bf16.mxu0 0
  %167 = vmatmul.mubr.bf16.gmra.mrb[0].mxu0 %v124
  %v168 = vpop.f32.mrb[0].mxu0
  %v169 = vadd.f32 0.0, %v168
  %v170 = vpop.f32.mrb[0].mxu0
  %v171 = vpop.f32.mrb[0].mxu0
  %v172 = vadd.f32 0.0, %v171
  %v173 = vpop.f32.mrb[0].mxu0
  %174 = vdwg.mxu0
  %vm175 = vcmask 523264
  %176 = vst.msk [vmem:[%s4] sm:$0xff] %vm175, %v161
  %177 = vst.msk [vmem:[%s4 + $0x8] sm:$0xff] %vm175, %v164
  %178 = vst.msk [vmem:[%s4 + $0x10] sm:$0xff] %vm175, %v169
  %179 = vst.msk [vmem:[%s4 + $0x18] sm:$0xff] %vm175, %v172
  // Predicated region
  $region18: #{imagegpt_forward.24} parent=0 // pred_check
    _
  $region19: #{imagegpt_forward.24} parent=0 // pred_check_branch
    %181 = sbr.rel (0) target = $region21
  $region20: #{imagegpt_forward.24} parent=0 // pred_region
    _
  $region21: #{imagegpt_forward.24} parent=0 // pred_fallthru
    _
  // Predicated region
  $region22: #{imagegpt_forward.24} parent=0 // pred_check
    _
  $region23: #{imagegpt_forward.24} parent=0 // pred_check_branch
    %183 = sbr.rel (0) target = $region25
  $region24: #{imagegpt_forward.24} parent=0 // pred_region
    _
  $region25: #{imagegpt_forward.24} parent=0 // pred_fallthru
    _

// kernel: imagegpt_forward.25
$region0: #{imagegpt_forward.25}
  #allocation0 [shape = 'u32[]', space=smem, size = 0x4, offset = 0x4, fixed_abs, tag = 'smem constant byte address 0x4 - core index']
  #allocation1 [shape = 'u32[144,128]{1,0:T(1,128)}', space=vmem, size = 0x12000, scoped, tag = 'internal scratch']
  #allocation2 [shape = 'f32[32,1]{1,0:T(8,128)}', space=vmem, size = 0x4000, scoped, tag = 'scratch operand']
  #allocation3 [shape = 'f32[32,1]{1,0:T(8,128)}', space=vmem, size = 0x4000, scoped, tag = 'scratch operand']
  #allocation4 [shape = 'f32[32,1]{1,0:T(8,128)}', space=vmem, size = 0x4000, scoped, tag = 'scratch operand']
  %s0 = inlined_call_operand.vmem [shape: f32[32,64], index: 0, kind: input, shape index: {}]
  %s1 = inlined_call_operand.vmem [shape: s32[32,1], index: 1, kind: input, shape index: {}]
  %s2 = inlined_call_operand.vmem [shape: f32[32,1], index: 2, kind: output, shape index: {}]
  %s3 = sld [smem:[#allocation0]]
  $region26: #{imagegpt_forward.25} parent=0
    _
  %s5 = ssub.s32 1, %s3
  %s6 = scalar_select 0, %s5, %s3
  // Predicated region
  $region2: #{imagegpt_forward.25} parent=0 // pred_check
    _
  $region3: #{imagegpt_forward.25} parent=0 // pred_check_branch
    %8 = sbr.rel (0) target = $region5
  $region4: #{imagegpt_forward.25} parent=0 // pred_region
    _
  $region5: #{imagegpt_forward.25} parent=0 // pred_fallthru
    _
  // Predicated region
  $region6: #{imagegpt_forward.25} parent=0 // pred_check
    _
  $region7: #{imagegpt_forward.25} parent=0 // pred_check_branch
    %10 = sbr.rel (0) target = $region9
  $region8: #{imagegpt_forward.25} parent=0 // pred_region
    _
  $region9: #{imagegpt_forward.25} parent=0 // pred_fallthru
    _
  %p11 = scmp.eq.s32.totalorder 0, 0
  // Predicated region
  $region10: #{imagegpt_forward.25} parent=0 // pred_check
    %p12 = pneg %p11
  $region11: #{imagegpt_forward.25} parent=0 // pred_check_branch
    %14 = sbr.rel (%p12) target = $region13
  $region12: #{imagegpt_forward.25} parent=0 // pred_region
    %vm15 = vcmask 7168
    %16 = vst.msk [vmem:[#allocation2] sm:$0xff] %vm15, -inf
    %17 = vst.msk [vmem:[#allocation2 + $0x8] sm:$0xff] %vm15, -inf
    %18 = vst.msk [vmem:[#allocation2 + $0x10] sm:$0xff] %vm15, -inf
    %19 = vst.msk [vmem:[#allocation2 + $0x18] sm:$0xff] %vm15, -inf
    %20 = vst.msk [vmem:[#allocation3] sm:$0xff] %vm15, 0.0
    %21 = vst.msk [vmem:[#allocation3 + $0x8] sm:$0xff] %vm15, 0.0
    %22 = vst.msk [vmem:[#allocation3 + $0x10] sm:$0xff] %vm15, 0.0
    %23 = vst.msk [vmem:[#allocation3 + $0x18] sm:$0xff] %vm15, 0.0
    %24 = vst.msk [vmem:[#allocation4] sm:$0xff] %vm15, 0.0
    %25 = vst.msk [vmem:[#allocation4 + $0x8] sm:$0xff] %vm15, 0.0
    %26 = vst.msk [vmem:[#allocation4 + $0x10] sm:$0xff] %vm15, 0.0
    %27 = vst.msk [vmem:[#allocation4 + $0x18] sm:$0xff] %vm15, 0.0
  $region13: #{imagegpt_forward.25} parent=0 // pred_fallthru
    _
  %v28 = vld [vmem:[%s0] sm:$0xff]
  %v29 = vld [vmem:[%s0 + $0x8] sm:$0xff]
  %v30 = vld [vmem:[%s0 + $0x10] sm:$0xff]
  %v31 = vld [vmem:[%s0 + $0x18] sm:$0xff]
  %v32 = vld [vmem:[%s1] sm:$0xff]
  %v33 = vld [vmem:[%s1 + $0x8] sm:$0xff]
  %v34 = vld [vmem:[%s1 + $0x10] sm:$0xff]
  %v35 = vld [vmem:[%s1 + $0x18] sm:$0xff]
  %s36 = smul.u32 0, 64
  %v37 = vlaneseq
  %v38 = vand.u32 %v37, 127
  %v39 = vstv %s36
  %v40 = vadd.s32 %v39, %v38
  %v41 = vld [vmem:[#allocation2] sm:$0xff]
  %v42 = vld [vmem:[#allocation2 + $0x8] sm:$0xff]
  %v43 = vld [vmem:[#allocation2 + $0x10] sm:$0xff]
  %v44 = vld [vmem:[#allocation2 + $0x18] sm:$0xff]
  %vm45 = vcmask 523264
  %v46 = vsel %vm45, %v28, -inf
  %47 = vmax.xlane.f32.xlu0 %v46
  %v48 = vpop.xlane.xlu0 %47
  %v49 = vsel %vm45, %v29, -inf
  %50 = vmax.xlane.f32.xlu0 %v49
  %v51 = vpop.xlane.xlu0 %50
  %v52 = vsel %vm45, %v30, -inf
  %53 = vmax.xlane.f32.xlu0 %v52
  %v54 = vpop.xlane.xlu0 %53
  %v55 = vsel %vm45, %v31, -inf
  %56 = vmax.xlane.f32.xlu0 %v55
  %v57 = vpop.xlane.xlu0 %56
  %v58 = vmax.f32 %v41, %v48
  %v59 = vmax.f32 %v42, %v51
  %v60 = vmax.f32 %v43, %v54
  %v61 = vmax.f32 %v44, %v57
  %v62 = vld [vmem:[#allocation3] sm:$0xff]
  %v63 = vld [vmem:[#allocation3 + $0x8] sm:$0xff]
  %v64 = vld [vmem:[#allocation3 + $0x10] sm:$0xff]
  %v65 = vld [vmem:[#allocation3 + $0x18] sm:$0xff]
  %v66 = vsub.f32 %v41, %v58
  %v67 = vsub.f32 %v42, %v59
  %v68 = vsub.f32 %v43, %v60
  %v69 = vsub.f32 %v44, %v61
  %v70 = vmul.f32 %v66, 1.442695
  %v71 = vpow.pop %v70
  %v72 = vmul.f32 %v67, 1.442695
  %v73 = vpow.pop %v72
  %v74 = vmul.f32 %v68, 1.442695
  %v75 = vpow.pop %v74
  %v76 = vmul.f32 %v69, 1.442695
  %v77 = vpow.pop %v76
  %v78 = vmul.f32 %v62, %v71
  %v79 = vmul.f32 %v63, %v73
  %v80 = vmul.f32 %v64, %v75
  %v81 = vmul.f32 %v65, %v77
  %83 = vset.pattern.permute.xlu0 0
  %84 = vperm.xlu0 %83, %v58
  %v85 = vpop.permute.xlu0 %84
  %88 = vset.pattern.permute.xlu0 0
  %89 = vperm.xlu0 %88, %v59
  %v90 = vpop.permute.xlu0 %89
  %93 = vset.pattern.permute.xlu0 0
  %94 = vperm.xlu0 %93, %v60
  %v95 = vpop.permute.xlu0 %94
  %98 = vset.pattern.permute.xlu0 0
  %99 = vperm.xlu0 %98, %v61
  %v100 = vpop.permute.xlu0 %99
  %v102 = vsub.f32 %v28, %v85
  %v103 = vsub.f32 %v29, %v90
  %v104 = vsub.f32 %v30, %v95
  %v105 = vsub.f32 %v31, %v100
  %v106 = vmul.f32 %v102, 1.442695
  %v107 = vpow.pop %v106
  %v108 = vmul.f32 %v103, 1.442695
  %v109 = vpow.pop %v108
  %v110 = vmul.f32 %v104, 1.442695
  %v111 = vpow.pop %v110
  %v112 = vmul.f32 %v105, 1.442695
  %v113 = vpow.pop %v112
  %v114 = vsel %vm45, %v107, 0.0
  %115 = vadd.xlane.f32.xlu0 %v114
  %v116 = vpop.xlane.xlu0 %115
  %v117 = vsel %vm45, %v109, 0.0
  %118 = vadd.xlane.f32.xlu0 %v117
  %v119 = vpop.xlane.xlu0 %118
  %v120 = vsel %vm45, %v111, 0.0
  %121 = vadd.xlane.f32.xlu0 %v120
  %v122 = vpop.xlane.xlu0 %121
  %v123 = vsel %vm45, %v113, 0.0
  %124 = vadd.xlane.f32.xlu0 %v123
  %v125 = vpop.xlane.xlu0 %124
  %v126 = vadd.f32 %v78, %v116
  %v127 = vadd.f32 %v79, %v119
  %v128 = vadd.f32 %v80, %v122
  %v129 = vadd.f32 %v81, %v125
  %vm130 = vcmask 7168
  %131 = vst.msk [vmem:[#allocation3] sm:$0xff] %vm130, %v126
  %132 = vst.msk [vmem:[#allocation3 + $0x8] sm:$0xff] %vm130, %v127
  %133 = vst.msk [vmem:[#allocation3 + $0x10] sm:$0xff] %vm130, %v128
  %134 = vst.msk [vmem:[#allocation3 + $0x18] sm:$0xff] %vm130, %v129
  %135 = vst.msk [vmem:[#allocation2] sm:$0xff] %vm130, %v58
  %136 = vst.msk [vmem:[#allocation2 + $0x8] sm:$0xff] %vm130, %v59
  %137 = vst.msk [vmem:[#allocation2 + $0x10] sm:$0xff] %vm130, %v60
  %138 = vst.msk [vmem:[#allocation2 + $0x18] sm:$0xff] %vm130, %v61
  %v139 = vld [vmem:[#allocation4] sm:$0xff]
  %v140 = vld [vmem:[#allocation4 + $0x8] sm:$0xff]
  %v141 = vld [vmem:[#allocation4 + $0x10] sm:$0xff]
  %v142 = vld [vmem:[#allocation4 + $0x18] sm:$0xff]
  %143 = vset.pattern.permute.xlu0 0
  %144 = vperm.xlu0 %143, %v32
  %v145 = vpop.permute.xlu0 %144
  %146 = vset.pattern.permute.xlu0 0
  %147 = vperm.xlu0 %146, %v33
  %v148 = vpop.permute.xlu0 %147
  %149 = vset.pattern.permute.xlu0 0
  %150 = vperm.xlu0 %149, %v34
  %v151 = vpop.permute.xlu0 %150
  %152 = vset.pattern.permute.xlu0 0
  %153 = vperm.xlu0 %152, %v35
  %v154 = vpop.permute.xlu0 %153
  %vm155 = vcmp.eq.s32.totalorder %v40, %v145
  %vm156 = vcmp.eq.s32.totalorder %v40, %v148
  %vm157 = vcmp.eq.s32.totalorder %v40, %v151
  %vm158 = vcmp.eq.s32.totalorder %v40, %v154
  %v159 = vsel %vm155, %v28, 0.0
  %v160 = vsel %vm156, %v29, 0.0
  %v161 = vsel %vm157, %v30, 0.0
  %v162 = vsel %vm158, %v31, 0.0
  %v163 = vsel %vm45, %v159, 0.0
  %164 = vadd.xlane.f32.xlu0 %v163
  %v165 = vpop.xlane.xlu0 %164
  %v166 = vsel %vm45, %v160, 0.0
  %167 = vadd.xlane.f32.xlu0 %v166
  %v168 = vpop.xlane.xlu0 %167
  %v169 = vsel %vm45, %v161, 0.0
  %170 = vadd.xlane.f32.xlu0 %v169
  %v171 = vpop.xlane.xlu0 %170
  %v172 = vsel %vm45, %v162, 0.0
  %173 = vadd.xlane.f32.xlu0 %v172
  %v174 = vpop.xlane.xlu0 %173
  %v175 = vadd.f32 %v139, %v165
  %v176 = vadd.f32 %v140, %v168
  %v177 = vadd.f32 %v141, %v171
  %v178 = vadd.f32 %v142, %v174
  %179 = vst.msk [vmem:[#allocation4] sm:$0xff] %vm130, %v175
  %180 = vst.msk [vmem:[#allocation4 + $0x8] sm:$0xff] %vm130, %v176
  %181 = vst.msk [vmem:[#allocation4 + $0x10] sm:$0xff] %vm130, %v177
  %182 = vst.msk [vmem:[#allocation4 + $0x18] sm:$0xff] %vm130, %v178
  // Predicated region
  $region14: #{imagegpt_forward.25} parent=0 // pred_check
    %p183 = pneg %p11
  $region15: #{imagegpt_forward.25} parent=0 // pred_check_branch
    %185 = sbr.rel (%p183) target = $region17
  $region16: #{imagegpt_forward.25} parent=0 // pred_region
    %v186 = vld [vmem:[#allocation2] sm:$0xff]
    %v187 = vld [vmem:[#allocation2 + $0x8] sm:$0xff]
    %v188 = vld [vmem:[#allocation2 + $0x10] sm:$0xff]
    %v189 = vld [vmem:[#allocation2 + $0x18] sm:$0xff]
    %v190 = vld [vmem:[#allocation3] sm:$0xff]
    %v191 = vld [vmem:[#allocation3 + $0x8] sm:$0xff]
    %v192 = vld [vmem:[#allocation3 + $0x10] sm:$0xff]
    %v193 = vld [vmem:[#allocation3 + $0x18] sm:$0xff]
    %v194 = vlog2.pop %v190
    %v195 = vmul.f32 %v194, 0.6931472
    %v196 = vlog2.pop %v191
    %v197 = vmul.f32 %v196, 0.6931472
    %v198 = vlog2.pop %v192
    %v199 = vmul.f32 %v198, 0.6931472
    %v200 = vlog2.pop %v193
    %v201 = vmul.f32 %v200, 0.6931472
    %v202 = vadd.f32 %v186, %v195
    %v203 = vadd.f32 %v187, %v197
    %v204 = vadd.f32 %v188, %v199
    %v205 = vadd.f32 %v189, %v201
    %v206 = vld [vmem:[#allocation4] sm:$0xff]
    %v207 = vld [vmem:[#allocation4 + $0x8] sm:$0xff]
    %v208 = vld [vmem:[#allocation4 + $0x10] sm:$0xff]
    %v209 = vld [vmem:[#allocation4 + $0x18] sm:$0xff]
    %v210 = vsub.f32 %v202, %v206
    %v211 = vsub.f32 %v203, %v207
    %v212 = vsub.f32 %v204, %v208
    %v213 = vsub.f32 %v205, %v209
    %214 = vst.msk [vmem:[%s2] sm:$0xff] %vm130, %v210
    %215 = vst.msk [vmem:[%s2 + $0x8] sm:$0xff] %vm130, %v211
    %216 = vst.msk [vmem:[%s2 + $0x10] sm:$0xff] %vm130, %v212
    %217 = vst.msk [vmem:[%s2 + $0x18] sm:$0xff] %vm130, %v213
  $region17: #{imagegpt_forward.25} parent=0 // pred_fallthru
    _
  // Predicated region
  $region18: #{imagegpt_forward.25} parent=0 // pred_check
    _
  $region19: #{imagegpt_forward.25} parent=0 // pred_check_branch
    %219 = sbr.rel (0) target = $region21
  $region20: #{imagegpt_forward.25} parent=0 // pred_region
    _
  $region21: #{imagegpt_forward.25} parent=0 // pred_fallthru
    _
  // Predicated region
  $region22: #{imagegpt_forward.25} parent=0 // pred_check
    _
  $region23: #{imagegpt_forward.25} parent=0 // pred_check_branch
    %221 = sbr.rel (0) target = $region25
  $region24: #{imagegpt_forward.25} parent=0 // pred_region
    _
  $region25: #{imagegpt_forward.25} parent=0 // pred_fallthru
    _

</llo_original>
